<compile_context>
chip_gen: v6e
topology: v6e:2x2x1
jax: 0.10.0
libtpu: 0.0.40
codegen_flags: <defaults>
</compile_context>

<pallas_src>
import functools

import jax
import jax.numpy as jnp
from jax.experimental import pallas as pl
from jax.experimental.pallas import tpu as pltpu


def cross_attn_kernel(x_ref, y_ref, wq_ref, wkv_ref, wp_ref, bp_ref, o_ref, *,
                      num_heads):
    # x_ref: (Bb, Nx, C)   y_ref: (Bb, Ny, C)
    # wq_ref: (C, C) [scale pre-folded]  wkv_ref: (C, 2C)  wp_ref: (C, C)
    # bp_ref: (1, C)
    Bb, Nx, C = x_ref.shape
    Ny = y_ref.shape[1]
    hd = C // num_heads
    cdt = x_ref.dtype  # MXU operand dtype (bf16 in production, f32 in toy test)

    # Fold the batch block into the MXU M dimension for the projections.
    x2 = x_ref[...].reshape(Bb * Nx, C)
    y2 = y_ref[...].reshape(Bb * Ny, C)

    # Q projection (softmax scale pre-folded into wq); fused K/V projection.
    # f32 accumulation, operands stay in the input/weight dtype.
    q = jnp.dot(x2, wq_ref[...], preferred_element_type=jnp.float32)
    kv = jnp.dot(y2, wkv_ref[...], preferred_element_type=jnp.float32)

    # Cast back to the input dtype so the attention matmuls run as native
    # bf16 MXU passes in production (accumulation stays f32 below).
    q3 = q.astype(cdt).reshape(Bb, Nx, C)              # (Bb, Nx, C)
    kv3 = kv.astype(cdt).reshape(Bb, Ny, 2 * C)        # (Bb, Ny, 2C)

    # Head-accumulation into the output projection (no concat of head slabs).
    acc = None
    for h in range(num_heads):             # num_heads is small -> static unroll
        qh = q3[:, :, h * hd:(h + 1) * hd]             # (Bb, Nx, hd)
        kh = kv3[:, :, h * hd:(h + 1) * hd]            # (Bb, Ny, hd)
        vh = kv3[:, :, C + h * hd:C + (h + 1) * hd]    # (Bb, Ny, hd)

        # Transpose-free batched score matmul (contracts last dims), f32 acc.
        s = jnp.einsum('bqd,bkd->bqk', qh, kh,
                       preferred_element_type=jnp.float32)      # (Bb, Nx, Ny)

        # Numerically-stable softmax numerator; keep the row sum in f32.
        s = s - jnp.max(s, axis=-1, keepdims=True)
        p = jnp.exp(s)
        l = jnp.sum(p, axis=-1, keepdims=True)                  # (Bb, Nx, 1)

        # PV matmul on unnormalized probabilities (bf16 operands, f32 acc),
        # then normalize the (Nx, hd) output -- Ny/hd fewer VPU multiplies
        # than normalizing p, and the reciprocal goes to the EUP slot.
        oh = jnp.einsum('bqk,bkd->bqd', p.astype(cdt), vh,
                        preferred_element_type=jnp.float32)     # (Bb, Nx, hd)
        oh = oh * pl.reciprocal(l, approx=True)

        # Accumulate this head's contribution to the final projection:
        # concat(head_outs) @ wp == sum_h head_out_h @ wp[h*hd:(h+1)*hd, :]
        contrib = jnp.dot(oh.astype(cdt).reshape(Bb * Nx, hd),
                          wp_ref[h * hd:(h + 1) * hd, :],
                          preferred_element_type=jnp.float32)   # (Bb*Nx, C)
        acc = contrib if acc is None else acc + contrib

    out = acc + bp_ref[...].astype(jnp.float32)                 # + proj bias
    o_ref[...] = out.reshape(Bb, Nx, C).astype(o_ref.dtype)


def prepare_cross_attention_params(wq, wk, wv, wp, bp, *, num_heads,
                                   param_dtype=None):
    """One-time parameter prep (call once, reuse across forward calls).

    Folds the softmax scale into wq and fuses wk/wv into a single (C, 2C)
    operand, so neither is re-materialized per forward call.  Optionally casts
    params to `param_dtype` (bf16 for production: halves weight VMEM and lets
    the MXU run native bf16 passes).
    """
    C = wq.shape[0]
    assert C % num_heads == 0, "C must be divisible by num_heads"
    scale = (C // num_heads) ** (-0.5)
    wq_scaled = wq * scale
    wkv = jnp.concatenate([wk, wv], axis=1)
    params = (wq_scaled, wkv, wp, bp)
    if param_dtype is not None:
        params = tuple(p.astype(param_dtype) for p in params)
    return params


def _pick_batch_block(B, Nx, *, m_target=256, min_grid=2):
    """Largest divisor of B such that Bb*Nx stays near the MXU M tile, while
    keeping at least `min_grid` grid steps (both v7x TensorCores busy).

    m_target: 256 fills the v6e/v7x 2x256^2 MXU; use 128 on v5e (4x128^2).
    """
    cap = max(1, B // min_grid) if B >= min_grid else B
    target = min(B, cap, max(1, m_target // max(Nx, 1)))
    for bb in range(target, 0, -1):
        if B % bb == 0:
            return bb
    return 1


def _vmem_limit_bytes(Bb, Nx, Ny, C, act_itemsize, w_itemsize,
                      weight_buffers=1):
    """Explicit scoped-VMEM budget from the actual footprint (+2x headroom)."""
    # x / y / out blocks are double-buffered by the pipeline.
    act = 2 * (Bb * Nx * C + Bb * Ny * C + Bb * Nx * C) * act_itemsize
    # wq + wkv + wp + bias.
    wts = weight_buffers * (C * C + 2 * C * C + C * C + C) * w_itemsize
    # f32 intermediates: q, kv, acc (+ one head's s/p/l slabs live at a time).
    interm = 4 * (Bb * Nx * C + 2 * Bb * Ny * C + Bb * Nx * C)
    interm += 4 * 3 * Bb * Nx * Ny
    est = act + wts + interm
    return int(min(64 << 20, max(16 << 20, 2 * est)))


def _weight_spec(shape, pipeline_mode):
    idx_map = lambda b: (0,) * len(shape)
    if pipeline_mode is None:
        return pl.BlockSpec(shape, idx_map)
    return pl.BlockSpec(shape, idx_map, pipeline_mode=pipeline_mode)


def cross_attention(x, y, params, *, num_heads, batch_block=None,
                    m_target=256):
    """x: (B, Nx, C), y: (B, Ny, C); params from prepare_cross_attention_params."""
    wq, wkv, wp, bp = params
    B, Nx, C = x.shape
    Ny = y.shape[1]
    assert C % num_heads == 0, "C must be divisible by num_heads"
    assert wkv.shape == (C, 2 * C), "use prepare_cross_attention_params()"

    Bb = batch_block or _pick_batch_block(B, Nx, m_target=m_target)
    assert B % Bb == 0

    kernel = functools.partial(cross_attn_kernel, num_heads=num_heads)
    vmem_limit = _vmem_limit_bytes(Bb, Nx, Ny, C,
                                   jnp.dtype(x.dtype).itemsize,
                                   jnp.dtype(wq.dtype).itemsize,
                                   weight_buffers=1)

    def build_and_run(single_buffer_weights):
        # Grid-invariant weights: single-buffer them (their block index never
        # changes) so f32/bf16 weights are not double-buffered in VMEM.
        pm = pl.Buffered(1) if single_buffer_weights else None
        in_specs = [
            pl.BlockSpec((Bb, Nx, C), lambda b: (b, 0, 0)),      # x
            pl.BlockSpec((Bb, Ny, C), lambda b: (b, 0, 0)),      # y
            _weight_spec((C, C), pm),                            # wq (scaled)
            _weight_spec((C, 2 * C), pm),                        # wkv (fused)
            _weight_spec((C, C), pm),                            # wp (proj)
            _weight_spec((1, C), pm),                            # proj bias
        ]
        return pl.pallas_call(
            kernel,
            out_shape=jax.ShapeDtypeStruct((B, Nx, C), x.dtype),
            grid=(B // Bb,),
            in_specs=in_specs,
            out_specs=pl.BlockSpec((Bb, Nx, C), lambda b: (b, 0, 0)),
            compiler_params=pltpu.CompilerParams(
                dimension_semantics=("parallel",),               # megacore
                vmem_limit_bytes=vmem_limit),
        )(x, y, wq, wkv, wp, bp)

    try:
        return build_and_run(True)
    except Exception:
        # Fallback if this jax build rejects pipeline_mode=pl.Buffered(1);
        # weights then use the default double-buffering.
        return build_and_run(False)


def cross_attention_ref(x, y, wq, wk, wv, wp, bp, *, num_heads):
    """Pure-JAX reference mirroring the PyTorch forward exactly."""
    B, Nx, C = x.shape
    Ny = y.shape[1]
    hd = C // num_heads
    scale = hd ** (-0.5)

    q = (x @ wq).reshape(B, Nx, num_heads, hd).transpose(0, 2, 1, 3)
    k = (y @ wk).reshape(B, Ny, num_heads, hd).transpose(0, 2, 1, 3)
    v = (y @ wv).reshape(B, Ny, num_heads, hd).transpose(0, 2, 1, 3)

    attn = jnp.einsum('bhqd,bhkd->bhqk', q, k) * scale
    attn = jax.nn.softmax(attn, axis=-1)
    out = jnp.einsum('bhqk,bhkd->bhqd', attn, v)
    out = out.transpose(0, 2, 1, 3).reshape(B, Nx, C)
    return out @ wp + bp


if __name__ == "__main__":
    # Small shapes consistent with the module:
    B, Nx, Ny, C = 2, 8, 16, 32
    num_heads = 4                       # head_dim = 8

    key = jax.random.PRNGKey(0)
    kx, ky, kq, kk, kvk, kp, kb = jax.random.split(key, 7)

    x = jax.random.normal(kx, (B, Nx, C), jnp.float32)
    y = jax.random.normal(ky, (B, Ny, C), jnp.float32)

    # nn.Linear weights are (out, in); stored pre-transposed as (in, out).
    # qkv_bias=False -> no q/k/v bias; proj has a bias.
    wq = jax.random.normal(kq, (C, C), jnp.float32) * 0.05
    wk = jax.random.normal(kk, (C, C), jnp.float32) * 0.05
    wv = jax.random.normal(kvk, (C, C), jnp.float32) * 0.05
    wp = jax.random.normal(kp, (C, C), jnp.float32) * 0.05
    bp = jax.random.normal(kb, (1, C), jnp.float32) * 0.05

    ref = cross_attention_ref(x, y, wq, wk, wv, wp, bp, num_heads=num_heads)

    # --- f32 path --------------------------------------------------------
    params_f32 = prepare_cross_attention_params(wq, wk, wv, wp, bp,
                                                num_heads=num_heads)
    out = cross_attention(x, y, params_f32, num_heads=num_heads)
    out = jax.block_until_ready(out)
    assert out.shape == (B, Nx, C)
    # Tolerance relaxed slightly for the EUP approximate-reciprocal softmax.
    assert jnp.allclose(out, ref, atol=3e-3, rtol=3e-3), "f32 mismatch vs ref"

    # --- bf16 production path (native bf16 MXU operands, f32 accumulate) --
    params_bf16 = prepare_cross_attention_params(wq, wk, wv, wp, bp,
                                                 num_heads=num_heads,
                                                 param_dtype=jnp.bfloat16)
    out_bf16 = cross_attention(x.astype(jnp.bfloat16), y.astype(jnp.bfloat16),
                               params_bf16, num_heads=num_heads)
    out_bf16 = jax.block_until_ready(out_bf16)
    assert out_bf16.dtype == jnp.bfloat16
    assert jnp.allclose(out_bf16.astype(jnp.float32), ref,
                        atol=5e-2, rtol=5e-2), "bf16 mismatch vs ref"

    print("KERNEL_OK")
</pallas_src>

<mosaic_0001>
module attributes {stable_mosaic.version = 11 : i64} {
  func.func @cross_attn_kernel(%arg0: i32, %arg1: memref<1x8x32xf32, #tpu.memory_space<vmem>>, %arg2: memref<1x16x32xf32, #tpu.memory_space<vmem>>, %arg3: memref<32x32xf32, #tpu.memory_space<vmem>>, %arg4: memref<32x64xf32, #tpu.memory_space<vmem>>, %arg5: memref<32x32xf32, #tpu.memory_space<vmem>>, %arg6: memref<1x32xf32, #tpu.memory_space<vmem>>, %arg7: memref<1x8x32xf32, #tpu.memory_space<vmem>>) attributes {dimension_semantics = [#tpu.dimension_semantics<parallel>], iteration_bounds = array<i64: 2>, scalar_prefetch = 0 : i64, scratch_operands = 0 : i64, tpu.core_type = #tpu.core_type<tc>, window_params = [{transform_indices = @transform_0, window_bounds = array<i64: 1, 8, 32>}, {transform_indices = @transform_1, window_bounds = array<i64: 1, 16, 32>}, {pipeline_mode = #tpu.pipeline_mode<synchronous>, transform_indices = @transform_2, window_bounds = array<i64: 32, 32>}, {pipeline_mode = #tpu.pipeline_mode<synchronous>, transform_indices = @transform_3, window_bounds = array<i64: 32, 64>}, {pipeline_mode = #tpu.pipeline_mode<synchronous>, transform_indices = @transform_4, window_bounds = array<i64: 32, 32>}, {pipeline_mode = #tpu.pipeline_mode<synchronous>, transform_indices = @transform_5, window_bounds = array<i64: 1, 32>}, {transform_indices = @transform_6, window_bounds = array<i64: 1, 8, 32>}]} {
    %c0 = arith.constant 0 : index
    %c0_0 = arith.constant 0 : index
    %c0_1 = arith.constant 0 : index
    %0 = vector.load %arg1[%c0, %c0_0, %c0_1] : memref<1x8x32xf32, #tpu.memory_space<vmem>>, vector<1x8x32xf32>
    %1 = vector.shape_cast %0 : vector<1x8x32xf32> to vector<8x32xf32>
    %c0_2 = arith.constant 0 : index
    %c0_3 = arith.constant 0 : index
    %c0_4 = arith.constant 0 : index
    %2 = vector.load %arg2[%c0_2, %c0_3, %c0_4] : memref<1x16x32xf32, #tpu.memory_space<vmem>>, vector<1x16x32xf32>
    %3 = vector.shape_cast %2 : vector<1x16x32xf32> to vector<16x32xf32>
    %c0_5 = arith.constant 0 : index
    %c0_6 = arith.constant 0 : index
    %4 = vector.load %arg3[%c0_5, %c0_6] : memref<32x32xf32, #tpu.memory_space<vmem>>, vector<32x32xf32>
    %cst = arith.constant dense<0.000000e+00> : vector<8x32xf32>
    %5 = tpu.matmul %1, %4, %cst {dimension_numbers = #tpu.dot_dimension_numbers<[1], [0], [0], [1], [0, 0, 1, 1], [], []>} : vector<8x32xf32>, vector<32x32xf32>, vector<8x32xf32> -> vector<8x32xf32>
    %c0_7 = arith.constant 0 : index
    %c0_8 = arith.constant 0 : index
    %6 = vector.load %arg4[%c0_7, %c0_8] : memref<32x64xf32, #tpu.memory_space<vmem>>, vector<32x64xf32>
    %cst_9 = arith.constant dense<0.000000e+00> : vector<16x64xf32>
    %7 = tpu.matmul %3, %6, %cst_9 {dimension_numbers = #tpu.dot_dimension_numbers<[1], [0], [0], [1], [0, 0, 1, 1], [], []>} : vector<16x32xf32>, vector<32x64xf32>, vector<16x64xf32> -> vector<16x64xf32>
    %8 = vector.shape_cast %5 : vector<8x32xf32> to vector<1x8x32xf32>
    %9 = vector.shape_cast %7 : vector<16x64xf32> to vector<1x16x64xf32>
    %10 = vector.extract_strided_slice %8 {offsets = [0, 0, 0], sizes = [1, 8, 8], strides = [1, 1, 1]} : vector<1x8x32xf32> to vector<1x8x8xf32>
    %11 = vector.extract_strided_slice %9 {offsets = [0, 0, 0], sizes = [1, 16, 8], strides = [1, 1, 1]} : vector<1x16x64xf32> to vector<1x16x8xf32>
    %12 = vector.extract_strided_slice %9 {offsets = [0, 0, 32], sizes = [1, 16, 8], strides = [1, 1, 1]} : vector<1x16x64xf32> to vector<1x16x8xf32>
    "tpu.trace_start"() <{level = 10 : i32, message = "bqd,bkd->bqk"}> : () -> ()
    %cst_10 = arith.constant dense<0.000000e+00> : vector<1x8x16xf32>
    %13 = tpu.matmul %10, %11, %cst_10 {dimension_numbers = #tpu.dot_dimension_numbers<[2], [2], [1], [1], [0, 0, 0, 1, 1, 1], [0], [0]>} : vector<1x8x8xf32>, vector<1x16x8xf32>, vector<1x8x16xf32> -> vector<1x8x16xf32>
    "tpu.trace_stop"() : () -> ()
    %cst_11 = arith.constant dense<0xFF800000> : vector<1x8xf32>
    %14 = vector.multi_reduction <maximumf>, %13, %cst_11 [2] : vector<1x8x16xf32> to vector<1x8xf32>
    %15 = vector.shape_cast %14 : vector<1x8xf32> to vector<1x8x1xf32>
    %16 = vector.broadcast %15 : vector<1x8x1xf32> to vector<1x8x16xf32>
    %17 = arith.subf %13, %16 : vector<1x8x16xf32>
    %18 = math.exp %17 : vector<1x8x16xf32>
    %cst_12 = arith.constant dense<0.000000e+00> : vector<1x8xf32>
    %19 = vector.multi_reduction <add>, %18, %cst_12 [2] : vector<1x8x16xf32> to vector<1x8xf32>
    %20 = vector.shape_cast %19 : vector<1x8xf32> to vector<1x8x1xf32>
    "tpu.trace_start"() <{level = 10 : i32, message = "bqk,bkd->bqd"}> : () -> ()
    %cst_13 = arith.constant dense<0.000000e+00> : vector<1x8x8xf32>
    %21 = tpu.matmul %18, %12, %cst_13 {dimension_numbers = #tpu.dot_dimension_numbers<[2], [1], [1], [2], [0, 0, 0, 1, 1, 2], [0], [0]>} : vector<1x8x16xf32>, vector<1x16x8xf32>, vector<1x8x8xf32> -> vector<1x8x8xf32>
    "tpu.trace_stop"() : () -> ()
    %22 = tpu.reciprocal %20 {approx = true} : vector<1x8x1xf32> -> vector<1x8x1xf32>
    %23 = vector.broadcast %22 : vector<1x8x1xf32> to vector<1x8x8xf32>
    %24 = arith.mulf %21, %23 : vector<1x8x8xf32>
    %25 = vector.shape_cast %24 : vector<1x8x8xf32> to vector<8x8xf32>
    %c0_14 = arith.constant 0 : index
    %c0_15 = arith.constant 0 : index
    %26 = vector.load %arg5[%c0_14, %c0_15] : memref<32x32xf32, #tpu.memory_space<vmem>>, vector<8x32xf32>
    %cst_16 = arith.constant dense<0.000000e+00> : vector<8x32xf32>
    %27 = tpu.matmul %25, %26, %cst_16 {dimension_numbers = #tpu.dot_dimension_numbers<[1], [0], [0], [1], [0, 0, 1, 1], [], []>} : vector<8x8xf32>, vector<8x32xf32>, vector<8x32xf32> -> vector<8x32xf32>
    %28 = vector.extract_strided_slice %8 {offsets = [0, 0, 8], sizes = [1, 8, 8], strides = [1, 1, 1]} : vector<1x8x32xf32> to vector<1x8x8xf32>
    %29 = vector.extract_strided_slice %9 {offsets = [0, 0, 8], sizes = [1, 16, 8], strides = [1, 1, 1]} : vector<1x16x64xf32> to vector<1x16x8xf32>
    %30 = vector.extract_strided_slice %9 {offsets = [0, 0, 40], sizes = [1, 16, 8], strides = [1, 1, 1]} : vector<1x16x64xf32> to vector<1x16x8xf32>
    "tpu.trace_start"() <{level = 10 : i32, message = "bqd,bkd->bqk"}> : () -> ()
    %cst_17 = arith.constant dense<0.000000e+00> : vector<1x8x16xf32>
    %31 = tpu.matmul %28, %29, %cst_17 {dimension_numbers = #tpu.dot_dimension_numbers<[2], [2], [1], [1], [0, 0, 0, 1, 1, 1], [0], [0]>} : vector<1x8x8xf32>, vector<1x16x8xf32>, vector<1x8x16xf32> -> vector<1x8x16xf32>
    "tpu.trace_stop"() : () -> ()
    %cst_18 = arith.constant dense<0xFF800000> : vector<1x8xf32>
    %32 = vector.multi_reduction <maximumf>, %31, %cst_18 [2] : vector<1x8x16xf32> to vector<1x8xf32>
    %33 = vector.shape_cast %32 : vector<1x8xf32> to vector<1x8x1xf32>
    %34 = vector.broadcast %33 : vector<1x8x1xf32> to vector<1x8x16xf32>
    %35 = arith.subf %31, %34 : vector<1x8x16xf32>
    %36 = math.exp %35 : vector<1x8x16xf32>
    %cst_19 = arith.constant dense<0.000000e+00> : vector<1x8xf32>
    %37 = vector.multi_reduction <add>, %36, %cst_19 [2] : vector<1x8x16xf32> to vector<1x8xf32>
    %38 = vector.shape_cast %37 : vector<1x8xf32> to vector<1x8x1xf32>
    "tpu.trace_start"() <{level = 10 : i32, message = "bqk,bkd->bqd"}> : () -> ()
    %cst_20 = arith.constant dense<0.000000e+00> : vector<1x8x8xf32>
    %39 = tpu.matmul %36, %30, %cst_20 {dimension_numbers = #tpu.dot_dimension_numbers<[2], [1], [1], [2], [0, 0, 0, 1, 1, 2], [0], [0]>} : vector<1x8x16xf32>, vector<1x16x8xf32>, vector<1x8x8xf32> -> vector<1x8x8xf32>
    "tpu.trace_stop"() : () -> ()
    %40 = tpu.reciprocal %38 {approx = true} : vector<1x8x1xf32> -> vector<1x8x1xf32>
    %41 = vector.broadcast %40 : vector<1x8x1xf32> to vector<1x8x8xf32>
    %42 = arith.mulf %39, %41 : vector<1x8x8xf32>
    %43 = vector.shape_cast %42 : vector<1x8x8xf32> to vector<8x8xf32>
    %c8 = arith.constant 8 : index
    %c0_21 = arith.constant 0 : index
    %44 = vector.load %arg5[%c8, %c0_21] : memref<32x32xf32, #tpu.memory_space<vmem>>, vector<8x32xf32>
    %cst_22 = arith.constant dense<0.000000e+00> : vector<8x32xf32>
    %45 = tpu.matmul %43, %44, %cst_22 {dimension_numbers = #tpu.dot_dimension_numbers<[1], [0], [0], [1], [0, 0, 1, 1], [], []>} : vector<8x8xf32>, vector<8x32xf32>, vector<8x32xf32> -> vector<8x32xf32>
    %46 = arith.addf %27, %45 : vector<8x32xf32>
    %47 = vector.extract_strided_slice %8 {offsets = [0, 0, 16], sizes = [1, 8, 8], strides = [1, 1, 1]} : vector<1x8x32xf32> to vector<1x8x8xf32>
    %48 = vector.extract_strided_slice %9 {offsets = [0, 0, 16], sizes = [1, 16, 8], strides = [1, 1, 1]} : vector<1x16x64xf32> to vector<1x16x8xf32>
    %49 = vector.extract_strided_slice %9 {offsets = [0, 0, 48], sizes = [1, 16, 8], strides = [1, 1, 1]} : vector<1x16x64xf32> to vector<1x16x8xf32>
    "tpu.trace_start"() <{level = 10 : i32, message = "bqd,bkd->bqk"}> : () -> ()
    %cst_23 = arith.constant dense<0.000000e+00> : vector<1x8x16xf32>
    %50 = tpu.matmul %47, %48, %cst_23 {dimension_numbers = #tpu.dot_dimension_numbers<[2], [2], [1], [1], [0, 0, 0, 1, 1, 1], [0], [0]>} : vector<1x8x8xf32>, vector<1x16x8xf32>, vector<1x8x16xf32> -> vector<1x8x16xf32>
    "tpu.trace_stop"() : () -> ()
    %cst_24 = arith.constant dense<0xFF800000> : vector<1x8xf32>
    %51 = vector.multi_reduction <maximumf>, %50, %cst_24 [2] : vector<1x8x16xf32> to vector<1x8xf32>
    %52 = vector.shape_cast %51 : vector<1x8xf32> to vector<1x8x1xf32>
    %53 = vector.broadcast %52 : vector<1x8x1xf32> to vector<1x8x16xf32>
    %54 = arith.subf %50, %53 : vector<1x8x16xf32>
    %55 = math.exp %54 : vector<1x8x16xf32>
    %cst_25 = arith.constant dense<0.000000e+00> : vector<1x8xf32>
    %56 = vector.multi_reduction <add>, %55, %cst_25 [2] : vector<1x8x16xf32> to vector<1x8xf32>
    %57 = vector.shape_cast %56 : vector<1x8xf32> to vector<1x8x1xf32>
    "tpu.trace_start"() <{level = 10 : i32, message = "bqk,bkd->bqd"}> : () -> ()
    %cst_26 = arith.constant dense<0.000000e+00> : vector<1x8x8xf32>
    %58 = tpu.matmul %55, %49, %cst_26 {dimension_numbers = #tpu.dot_dimension_numbers<[2], [1], [1], [2], [0, 0, 0, 1, 1, 2], [0], [0]>} : vector<1x8x16xf32>, vector<1x16x8xf32>, vector<1x8x8xf32> -> vector<1x8x8xf32>
    "tpu.trace_stop"() : () -> ()
    %59 = tpu.reciprocal %57 {approx = true} : vector<1x8x1xf32> -> vector<1x8x1xf32>
    %60 = vector.broadcast %59 : vector<1x8x1xf32> to vector<1x8x8xf32>
    %61 = arith.mulf %58, %60 : vector<1x8x8xf32>
    %62 = vector.shape_cast %61 : vector<1x8x8xf32> to vector<8x8xf32>
    %c16 = arith.constant 16 : index
    %c0_27 = arith.constant 0 : index
    %63 = vector.load %arg5[%c16, %c0_27] : memref<32x32xf32, #tpu.memory_space<vmem>>, vector<8x32xf32>
    %cst_28 = arith.constant dense<0.000000e+00> : vector<8x32xf32>
    %64 = tpu.matmul %62, %63, %cst_28 {dimension_numbers = #tpu.dot_dimension_numbers<[1], [0], [0], [1], [0, 0, 1, 1], [], []>} : vector<8x8xf32>, vector<8x32xf32>, vector<8x32xf32> -> vector<8x32xf32>
    %65 = arith.addf %46, %64 : vector<8x32xf32>
    %66 = vector.extract_strided_slice %8 {offsets = [0, 0, 24], sizes = [1, 8, 8], strides = [1, 1, 1]} : vector<1x8x32xf32> to vector<1x8x8xf32>
    %67 = vector.extract_strided_slice %9 {offsets = [0, 0, 24], sizes = [1, 16, 8], strides = [1, 1, 1]} : vector<1x16x64xf32> to vector<1x16x8xf32>
    %68 = vector.extract_strided_slice %9 {offsets = [0, 0, 56], sizes = [1, 16, 8], strides = [1, 1, 1]} : vector<1x16x64xf32> to vector<1x16x8xf32>
    "tpu.trace_start"() <{level = 10 : i32, message = "bqd,bkd->bqk"}> : () -> ()
    %cst_29 = arith.constant dense<0.000000e+00> : vector<1x8x16xf32>
    %69 = tpu.matmul %66, %67, %cst_29 {dimension_numbers = #tpu.dot_dimension_numbers<[2], [2], [1], [1], [0, 0, 0, 1, 1, 1], [0], [0]>} : vector<1x8x8xf32>, vector<1x16x8xf32>, vector<1x8x16xf32> -> vector<1x8x16xf32>
    "tpu.trace_stop"() : () -> ()
    %cst_30 = arith.constant dense<0xFF800000> : vector<1x8xf32>
    %70 = vector.multi_reduction <maximumf>, %69, %cst_30 [2] : vector<1x8x16xf32> to vector<1x8xf32>
    %71 = vector.shape_cast %70 : vector<1x8xf32> to vector<1x8x1xf32>
    %72 = vector.broadcast %71 : vector<1x8x1xf32> to vector<1x8x16xf32>
    %73 = arith.subf %69, %72 : vector<1x8x16xf32>
    %74 = math.exp %73 : vector<1x8x16xf32>
    %cst_31 = arith.constant dense<0.000000e+00> : vector<1x8xf32>
    %75 = vector.multi_reduction <add>, %74, %cst_31 [2] : vector<1x8x16xf32> to vector<1x8xf32>
    %76 = vector.shape_cast %75 : vector<1x8xf32> to vector<1x8x1xf32>
    "tpu.trace_start"() <{level = 10 : i32, message = "bqk,bkd->bqd"}> : () -> ()
    %cst_32 = arith.constant dense<0.000000e+00> : vector<1x8x8xf32>
    %77 = tpu.matmul %74, %68, %cst_32 {dimension_numbers = #tpu.dot_dimension_numbers<[2], [1], [1], [2], [0, 0, 0, 1, 1, 2], [0], [0]>} : vector<1x8x16xf32>, vector<1x16x8xf32>, vector<1x8x8xf32> -> vector<1x8x8xf32>
    "tpu.trace_stop"() : () -> ()
    %78 = tpu.reciprocal %76 {approx = true} : vector<1x8x1xf32> -> vector<1x8x1xf32>
    %79 = vector.broadcast %78 : vector<1x8x1xf32> to vector<1x8x8xf32>
    %80 = arith.mulf %77, %79 : vector<1x8x8xf32>
    %81 = vector.shape_cast %80 : vector<1x8x8xf32> to vector<8x8xf32>
    %c24 = arith.constant 24 : index
    %c0_33 = arith.constant 0 : index
    %82 = vector.load %arg5[%c24, %c0_33] : memref<32x32xf32, #tpu.memory_space<vmem>>, vector<8x32xf32>
    %cst_34 = arith.constant dense<0.000000e+00> : vector<8x32xf32>
    %83 = tpu.matmul %81, %82, %cst_34 {dimension_numbers = #tpu.dot_dimension_numbers<[1], [0], [0], [1], [0, 0, 1, 1], [], []>} : vector<8x8xf32>, vector<8x32xf32>, vector<8x32xf32> -> vector<8x32xf32>
    %84 = arith.addf %65, %83 : vector<8x32xf32>
    %c0_35 = arith.constant 0 : index
    %c0_36 = arith.constant 0 : index
    %85 = vector.load %arg6[%c0_35, %c0_36] : memref<1x32xf32, #tpu.memory_space<vmem>>, vector<1x32xf32>
    %86 = vector.broadcast %85 : vector<1x32xf32> to vector<8x32xf32>
    %87 = arith.addf %84, %86 : vector<8x32xf32>
    %88 = vector.shape_cast %87 : vector<8x32xf32> to vector<1x8x32xf32>
    %c0_37 = arith.constant 0 : index
    %c0_38 = arith.constant 0 : index
    %c0_39 = arith.constant 0 : index
    %89 = vector.load %arg7[%c0_37, %c0_38, %c0_39] : memref<1x8x32xf32, #tpu.memory_space<vmem>>, vector<1x8x32xf32>
    tpu.vector_store %arg7[%c0_37, %c0_38, %c0_39], %88 {strides = array<i32>} : memref<1x8x32xf32, #tpu.memory_space<vmem>>, vector<1x8x32xf32>,
    return
  }
  func.func @transform_0(%arg0: i32) -> (i32, i32, i32) {
    %c0_i32 = arith.constant 0 : i32
    %c0_i32_0 = arith.constant 0 : i32
    %c0_i32_1 = arith.constant 0 : i32
    return %arg0, %c0_i32, %c0_i32_0 : i32, i32, i32
  }
  func.func @transform_1(%arg0: i32) -> (i32, i32, i32) {
    %c0_i32 = arith.constant 0 : i32
    %c0_i32_0 = arith.constant 0 : i32
    %c0_i32_1 = arith.constant 0 : i32
    return %arg0, %c0_i32, %c0_i32_0 : i32, i32, i32
  }
  func.func @transform_2(%arg0: i32) -> (i32, i32) {
    %c0_i32 = arith.constant 0 : i32
    %c0_i32_0 = arith.constant 0 : i32
    %c0_i32_1 = arith.constant 0 : i32
    return %c0_i32, %c0_i32_0 : i32, i32
  }
  func.func @transform_3(%arg0: i32) -> (i32, i32) {
    %c0_i32 = arith.constant 0 : i32
    %c0_i32_0 = arith.constant 0 : i32
    %c0_i32_1 = arith.constant 0 : i32
    return %c0_i32, %c0_i32_0 : i32, i32
  }
  func.func @transform_4(%arg0: i32) -> (i32, i32) {
    %c0_i32 = arith.constant 0 : i32
    %c0_i32_0 = arith.constant 0 : i32
    %c0_i32_1 = arith.constant 0 : i32
    return %c0_i32, %c0_i32_0 : i32, i32
  }
  func.func @transform_5(%arg0: i32) -> (i32, i32) {
    %c0_i32 = arith.constant 0 : i32
    %c0_i32_0 = arith.constant 0 : i32
    %c0_i32_1 = arith.constant 0 : i32
    return %c0_i32, %c0_i32_0 : i32, i32
  }
  func.func @transform_6(%arg0: i32) -> (i32, i32, i32) {
    %c0_i32 = arith.constant 0 : i32
    %c0_i32_0 = arith.constant 0 : i32
    %c0_i32_1 = arith.constant 0 : i32
    return %arg0, %c0_i32, %c0_i32_0 : i32, i32, i32
  }
}

module attributes {stable_mosaic.version = 11 : i64} {
  func.func @cross_attn_kernel(%arg0: i32, %arg1: memref<1x8x32xf32, #tpu.memory_space<vmem>>, %arg2: memref<1x16x32xf32, #tpu.memory_space<vmem>>, %arg3: memref<32x32xf32, #tpu.memory_space<vmem>>, %arg4: memref<32x64xf32, #tpu.memory_space<vmem>>, %arg5: memref<32x32xf32, #tpu.memory_space<vmem>>, %arg6: memref<1x32xf32, #tpu.memory_space<vmem>>, %arg7: memref<1x8x32xf32, #tpu.memory_space<vmem>>) attributes {dimension_semantics = [#tpu.dimension_semantics<parallel>], iteration_bounds = array<i64: 2>, scalar_prefetch = 0 : i64, scratch_operands = 0 : i64, tpu.core_type = #tpu.core_type<tc>, window_params = [{transform_indices = @transform_0, window_bounds = array<i64: 1, 8, 32>}, {transform_indices = @transform_1, window_bounds = array<i64: 1, 16, 32>}, {pipeline_mode = #tpu.pipeline_mode<synchronous>, transform_indices = @transform_2, window_bounds = array<i64: 32, 32>}, {pipeline_mode = #tpu.pipeline_mode<synchronous>, transform_indices = @transform_3, window_bounds = array<i64: 32, 64>}, {pipeline_mode = #tpu.pipeline_mode<synchronous>, transform_indices = @transform_4, window_bounds = array<i64: 32, 32>}, {pipeline_mode = #tpu.pipeline_mode<synchronous>, transform_indices = @transform_5, window_bounds = array<i64: 1, 32>}, {transform_indices = @transform_6, window_bounds = array<i64: 1, 8, 32>}]} {
    %c0 = arith.constant 0 : index
    %c0_0 = arith.constant 0 : index
    %c0_1 = arith.constant 0 : index
    %0 = vector.load %arg1[%c0, %c0_0, %c0_1] : memref<1x8x32xf32, #tpu.memory_space<vmem>>, vector<1x8x32xf32>
    %1 = vector.shape_cast %0 : vector<1x8x32xf32> to vector<8x32xf32>
    %c0_2 = arith.constant 0 : index
    %c0_3 = arith.constant 0 : index
    %c0_4 = arith.constant 0 : index
    %2 = vector.load %arg2[%c0_2, %c0_3, %c0_4] : memref<1x16x32xf32, #tpu.memory_space<vmem>>, vector<1x16x32xf32>
    %3 = vector.shape_cast %2 : vector<1x16x32xf32> to vector<16x32xf32>
    %c0_5 = arith.constant 0 : index
    %c0_6 = arith.constant 0 : index
    %4 = vector.load %arg3[%c0_5, %c0_6] : memref<32x32xf32, #tpu.memory_space<vmem>>, vector<32x32xf32>
    %cst = arith.constant dense<0.000000e+00> : vector<8x32xf32>
    %5 = tpu.matmul %1, %4, %cst {dimension_numbers = #tpu.dot_dimension_numbers<[1], [0], [0], [1], [0, 0, 1, 1], [], []>} : vector<8x32xf32>, vector<32x32xf32>, vector<8x32xf32> -> vector<8x32xf32>
    %c0_7 = arith.constant 0 : index
    %c0_8 = arith.constant 0 : index
    %6 = vector.load %arg4[%c0_7, %c0_8] : memref<32x64xf32, #tpu.memory_space<vmem>>, vector<32x64xf32>
    %cst_9 = arith.constant dense<0.000000e+00> : vector<16x64xf32>
    %7 = tpu.matmul %3, %6, %cst_9 {dimension_numbers = #tpu.dot_dimension_numbers<[1], [0], [0], [1], [0, 0, 1, 1], [], []>} : vector<16x32xf32>, vector<32x64xf32>, vector<16x64xf32> -> vector<16x64xf32>
    %8 = vector.shape_cast %5 : vector<8x32xf32> to vector<1x8x32xf32>
    %9 = vector.shape_cast %7 : vector<16x64xf32> to vector<1x16x64xf32>
    %10 = vector.extract_strided_slice %8 {offsets = [0, 0, 0], sizes = [1, 8, 8], strides = [1, 1, 1]} : vector<1x8x32xf32> to vector<1x8x8xf32>
    %11 = vector.extract_strided_slice %9 {offsets = [0, 0, 0], sizes = [1, 16, 8], strides = [1, 1, 1]} : vector<1x16x64xf32> to vector<1x16x8xf32>
    %12 = vector.extract_strided_slice %9 {offsets = [0, 0, 32], sizes = [1, 16, 8], strides = [1, 1, 1]} : vector<1x16x64xf32> to vector<1x16x8xf32>
    "tpu.trace_start"() <{level = 10 : i32, message = "bqd,bkd->bqk"}> : () -> ()
    %cst_10 = arith.constant dense<0.000000e+00> : vector<1x8x16xf32>
    %13 = tpu.matmul %10, %11, %cst_10 {dimension_numbers = #tpu.dot_dimension_numbers<[2], [2], [1], [1], [0, 0, 0, 1, 1, 1], [0], [0]>} : vector<1x8x8xf32>, vector<1x16x8xf32>, vector<1x8x16xf32> -> vector<1x8x16xf32>
    "tpu.trace_stop"() : () -> ()
    %cst_11 = arith.constant dense<0xFF800000> : vector<1x8xf32>
    %14 = vector.multi_reduction <maximumf>, %13, %cst_11 [2] : vector<1x8x16xf32> to vector<1x8xf32>
    %15 = vector.shape_cast %14 : vector<1x8xf32> to vector<1x8x1xf32>
    %16 = vector.broadcast %15 : vector<1x8x1xf32> to vector<1x8x16xf32>
    %17 = arith.subf %13, %16 : vector<1x8x16xf32>
    %18 = math.exp %17 : vector<1x8x16xf32>
    %cst_12 = arith.constant dense<0.000000e+00> : vector<1x8xf32>
    %19 = vector.multi_reduction <add>, %18, %cst_12 [2] : vector<1x8x16xf32> to vector<1x8xf32>
    %20 = vector.shape_cast %19 : vector<1x8xf32> to vector<1x8x1xf32>
    "tpu.trace_start"() <{level = 10 : i32, message = "bqk,bkd->bqd"}> : () -> ()
    %cst_13 = arith.constant dense<0.000000e+00> : vector<1x8x8xf32>
    %21 = tpu.matmul %18, %12, %cst_13 {dimension_numbers = #tpu.dot_dimension_numbers<[2], [1], [1], [2], [0, 0, 0, 1, 1, 2], [0], [0]>} : vector<1x8x16xf32>, vector<1x16x8xf32>, vector<1x8x8xf32> -> vector<1x8x8xf32>
    "tpu.trace_stop"() : () -> ()
    %22 = tpu.reciprocal %20 {approx = true} : vector<1x8x1xf32> -> vector<1x8x1xf32>
    %23 = vector.broadcast %22 : vector<1x8x1xf32> to vector<1x8x8xf32>
    %24 = arith.mulf %21, %23 : vector<1x8x8xf32>
    %25 = vector.shape_cast %24 : vector<1x8x8xf32> to vector<8x8xf32>
    %c0_14 = arith.constant 0 : index
    %c0_15 = arith.constant 0 : index
    %26 = vector.load %arg5[%c0_14, %c0_15] : memref<32x32xf32, #tpu.memory_space<vmem>>, vector<8x32xf32>
    %cst_16 = arith.constant dense<0.000000e+00> : vector<8x32xf32>
    %27 = tpu.matmul %25, %26, %cst_16 {dimension_numbers = #tpu.dot_dimension_numbers<[1], [0], [0], [1], [0, 0, 1, 1], [], []>} : vector<8x8xf32>, vector<8x32xf32>, vector<8x32xf32> -> vector<8x32xf32>
    %28 = vector.extract_strided_slice %8 {offsets = [0, 0, 8], sizes = [1, 8, 8], strides = [1, 1, 1]} : vector<1x8x32xf32> to vector<1x8x8xf32>
    %29 = vector.extract_strided_slice %9 {offsets = [0, 0, 8], sizes = [1, 16, 8], strides = [1, 1, 1]} : vector<1x16x64xf32> to vector<1x16x8xf32>
    %30 = vector.extract_strided_slice %9 {offsets = [0, 0, 40], sizes = [1, 16, 8], strides = [1, 1, 1]} : vector<1x16x64xf32> to vector<1x16x8xf32>
    "tpu.trace_start"() <{level = 10 : i32, message = "bqd,bkd->bqk"}> : () -> ()
    %cst_17 = arith.constant dense<0.000000e+00> : vector<1x8x16xf32>
    %31 = tpu.matmul %28, %29, %cst_17 {dimension_numbers = #tpu.dot_dimension_numbers<[2], [2], [1], [1], [0, 0, 0, 1, 1, 1], [0], [0]>} : vector<1x8x8xf32>, vector<1x16x8xf32>, vector<1x8x16xf32> -> vector<1x8x16xf32>
    "tpu.trace_stop"() : () -> ()
    %cst_18 = arith.constant dense<0xFF800000> : vector<1x8xf32>
    %32 = vector.multi_reduction <maximumf>, %31, %cst_18 [2] : vector<1x8x16xf32> to vector<1x8xf32>
    %33 = vector.shape_cast %32 : vector<1x8xf32> to vector<1x8x1xf32>
    %34 = vector.broadcast %33 : vector<1x8x1xf32> to vector<1x8x16xf32>
    %35 = arith.subf %31, %34 : vector<1x8x16xf32>
    %36 = math.exp %35 : vector<1x8x16xf32>
    %cst_19 = arith.constant dense<0.000000e+00> : vector<1x8xf32>
    %37 = vector.multi_reduction <add>, %36, %cst_19 [2] : vector<1x8x16xf32> to vector<1x8xf32>
    %38 = vector.shape_cast %37 : vector<1x8xf32> to vector<1x8x1xf32>
    "tpu.trace_start"() <{level = 10 : i32, message = "bqk,bkd->bqd"}> : () -> ()
    %cst_20 = arith.constant dense<0.000000e+00> : vector<1x8x8xf32>
    %39 = tpu.matmul %36, %30, %cst_20 {dimension_numbers = #tpu.dot_dimension_numbers<[2], [1], [1], [2], [0, 0, 0, 1, 1, 2], [0], [0]>} : vector<1x8x16xf32>, vector<1x16x8xf32>, vector<1x8x8xf32> -> vector<1x8x8xf32>
    "tpu.trace_stop"() : () -> ()
    %40 = tpu.reciprocal %38 {approx = true} : vector<1x8x1xf32> -> vector<1x8x1xf32>
    %41 = vector.broadcast %40 : vector<1x8x1xf32> to vector<1x8x8xf32>
    %42 = arith.mulf %39, %41 : vector<1x8x8xf32>
    %43 = vector.shape_cast %42 : vector<1x8x8xf32> to vector<8x8xf32>
    %c8 = arith.constant 8 : index
    %c0_21 = arith.constant 0 : index
    %44 = vector.load %arg5[%c8, %c0_21] : memref<32x32xf32, #tpu.memory_space<vmem>>, vector<8x32xf32>
    %cst_22 = arith.constant dense<0.000000e+00> : vector<8x32xf32>
    %45 = tpu.matmul %43, %44, %cst_22 {dimension_numbers = #tpu.dot_dimension_numbers<[1], [0], [0], [1], [0, 0, 1, 1], [], []>} : vector<8x8xf32>, vector<8x32xf32>, vector<8x32xf32> -> vector<8x32xf32>
    %46 = arith.addf %27, %45 : vector<8x32xf32>
    %47 = vector.extract_strided_slice %8 {offsets = [0, 0, 16], sizes = [1, 8, 8], strides = [1, 1, 1]} : vector<1x8x32xf32> to vector<1x8x8xf32>
    %48 = vector.extract_strided_slice %9 {offsets = [0, 0, 16], sizes = [1, 16, 8], strides = [1, 1, 1]} : vector<1x16x64xf32> to vector<1x16x8xf32>
    %49 = vector.extract_strided_slice %9 {offsets = [0, 0, 48], sizes = [1, 16, 8], strides = [1, 1, 1]} : vector<1x16x64xf32> to vector<1x16x8xf32>
    "tpu.trace_start"() <{level = 10 : i32, message = "bqd,bkd->bqk"}> : () -> ()
    %cst_23 = arith.constant dense<0.000000e+00> : vector<1x8x16xf32>
    %50 = tpu.matmul %47, %48, %cst_23 {dimension_numbers = #tpu.dot_dimension_numbers<[2], [2], [1], [1], [0, 0, 0, 1, 1, 1], [0], [0]>} : vector<1x8x8xf32>, vector<1x16x8xf32>, vector<1x8x16xf32> -> vector<1x8x16xf32>
    "tpu.trace_stop"() : () -> ()
    %cst_24 = arith.constant dense<0xFF800000> : vector<1x8xf32>
    %51 = vector.multi_reduction <maximumf>, %50, %cst_24 [2] : vector<1x8x16xf32> to vector<1x8xf32>
    %52 = vector.shape_cast %51 : vector<1x8xf32> to vector<1x8x1xf32>
    %53 = vector.broadcast %52 : vector<1x8x1xf32> to vector<1x8x16xf32>
    %54 = arith.subf %50, %53 : vector<1x8x16xf32>
    %55 = math.exp %54 : vector<1x8x16xf32>
    %cst_25 = arith.constant dense<0.000000e+00> : vector<1x8xf32>
    %56 = vector.multi_reduction <add>, %55, %cst_25 [2] : vector<1x8x16xf32> to vector<1x8xf32>
    %57 = vector.shape_cast %56 : vector<1x8xf32> to vector<1x8x1xf32>
    "tpu.trace_start"() <{level = 10 : i32, message = "bqk,bkd->bqd"}> : () -> ()
    %cst_26 = arith.constant dense<0.000000e+00> : vector<1x8x8xf32>
    %58 = tpu.matmul %55, %49, %cst_26 {dimension_numbers = #tpu.dot_dimension_numbers<[2], [1], [1], [2], [0, 0, 0, 1, 1, 2], [0], [0]>} : vector<1x8x16xf32>, vector<1x16x8xf32>, vector<1x8x8xf32> -> vector<1x8x8xf32>
    "tpu.trace_stop"() : () -> ()
    %59 = tpu.reciprocal %57 {approx = true} : vector<1x8x1xf32> -> vector<1x8x1xf32>
    %60 = vector.broadcast %59 : vector<1x8x1xf32> to vector<1x8x8xf32>
    %61 = arith.mulf %58, %60 : vector<1x8x8xf32>
    %62 = vector.shape_cast %61 : vector<1x8x8xf32> to vector<8x8xf32>
    %c16 = arith.constant 16 : index
    %c0_27 = arith.constant 0 : index
    %63 = vector.load %arg5[%c16, %c0_27] : memref<32x32xf32, #tpu.memory_space<vmem>>, vector<8x32xf32>
    %cst_28 = arith.constant dense<0.000000e+00> : vector<8x32xf32>
    %64 = tpu.matmul %62, %63, %cst_28 {dimension_numbers = #tpu.dot_dimension_numbers<[1], [0], [0], [1], [0, 0, 1, 1], [], []>} : vector<8x8xf32>, vector<8x32xf32>, vector<8x32xf32> -> vector<8x32xf32>
    %65 = arith.addf %46, %64 : vector<8x32xf32>
    %66 = vector.extract_strided_slice %8 {offsets = [0, 0, 24], sizes = [1, 8, 8], strides = [1, 1, 1]} : vector<1x8x32xf32> to vector<1x8x8xf32>
    %67 = vector.extract_strided_slice %9 {offsets = [0, 0, 24], sizes = [1, 16, 8], strides = [1, 1, 1]} : vector<1x16x64xf32> to vector<1x16x8xf32>
    %68 = vector.extract_strided_slice %9 {offsets = [0, 0, 56], sizes = [1, 16, 8], strides = [1, 1, 1]} : vector<1x16x64xf32> to vector<1x16x8xf32>
    "tpu.trace_start"() <{level = 10 : i32, message = "bqd,bkd->bqk"}> : () -> ()
    %cst_29 = arith.constant dense<0.000000e+00> : vector<1x8x16xf32>
    %69 = tpu.matmul %66, %67, %cst_29 {dimension_numbers = #tpu.dot_dimension_numbers<[2], [2], [1], [1], [0, 0, 0, 1, 1, 1], [0], [0]>} : vector<1x8x8xf32>, vector<1x16x8xf32>, vector<1x8x16xf32> -> vector<1x8x16xf32>
    "tpu.trace_stop"() : () -> ()
    %cst_30 = arith.constant dense<0xFF800000> : vector<1x8xf32>
    %70 = vector.multi_reduction <maximumf>, %69, %cst_30 [2] : vector<1x8x16xf32> to vector<1x8xf32>
    %71 = vector.shape_cast %70 : vector<1x8xf32> to vector<1x8x1xf32>
    %72 = vector.broadcast %71 : vector<1x8x1xf32> to vector<1x8x16xf32>
    %73 = arith.subf %69, %72 : vector<1x8x16xf32>
    %74 = math.exp %73 : vector<1x8x16xf32>
    %cst_31 = arith.constant dense<0.000000e+00> : vector<1x8xf32>
    %75 = vector.multi_reduction <add>, %74, %cst_31 [2] : vector<1x8x16xf32> to vector<1x8xf32>
    %76 = vector.shape_cast %75 : vector<1x8xf32> to vector<1x8x1xf32>
    "tpu.trace_start"() <{level = 10 : i32, message = "bqk,bkd->bqd"}> : () -> ()
    %cst_32 = arith.constant dense<0.000000e+00> : vector<1x8x8xf32>
    %77 = tpu.matmul %74, %68, %cst_32 {dimension_numbers = #tpu.dot_dimension_numbers<[2], [1], [1], [2], [0, 0, 0, 1, 1, 2], [0], [0]>} : vector<1x8x16xf32>, vector<1x16x8xf32>, vector<1x8x8xf32> -> vector<1x8x8xf32>
    "tpu.trace_stop"() : () -> ()
    %78 = tpu.reciprocal %76 {approx = true} : vector<1x8x1xf32> -> vector<1x8x1xf32>
    %79 = vector.broadcast %78 : vector<1x8x1xf32> to vector<1x8x8xf32>
    %80 = arith.mulf %77, %79 : vector<1x8x8xf32>
    %81 = vector.shape_cast %80 : vector<1x8x8xf32> to vector<8x8xf32>
    %c24 = arith.constant 24 : index
    %c0_33 = arith.constant 0 : index
    %82 = vector.load %arg5[%c24, %c0_33] : memref<32x32xf32, #tpu.memory_space<vmem>>, vector<8x32xf32>
    %cst_34 = arith.constant dense<0.000000e+00> : vector<8x32xf32>
    %83 = tpu.matmul %81, %82, %cst_34 {dimension_numbers = #tpu.dot_dimension_numbers<[1], [0], [0], [1], [0, 0, 1, 1], [], []>} : vector<8x8xf32>, vector<8x32xf32>, vector<8x32xf32> -> vector<8x32xf32>
    %84 = arith.addf %65, %83 : vector<8x32xf32>
    %c0_35 = arith.constant 0 : index
    %c0_36 = arith.constant 0 : index
    %85 = vector.load %arg6[%c0_35, %c0_36] : memref<1x32xf32, #tpu.memory_space<vmem>>, vector<1x32xf32>
    %86 = vector.broadcast %85 : vector<1x32xf32> to vector<8x32xf32>
    %87 = arith.addf %84, %86 : vector<8x32xf32>
    %88 = vector.shape_cast %87 : vector<8x32xf32> to vector<1x8x32xf32>
    %c0_37 = arith.constant 0 : index
    %c0_38 = arith.constant 0 : index
    %c0_39 = arith.constant 0 : index
    %89 = vector.load %arg7[%c0_37, %c0_38, %c0_39] : memref<1x8x32xf32, #tpu.memory_space<vmem>>, vector<1x8x32xf32>
    tpu.vector_store %arg7[%c0_37, %c0_38, %c0_39], %88 {strides = array<i32>} : memref<1x8x32xf32, #tpu.memory_space<vmem>>, vector<1x8x32xf32>,
    return
  }
  func.func @transform_0(%arg0: i32) -> (i32, i32, i32) {
    %c0_i32 = arith.constant 0 : i32
    %c0_i32_0 = arith.constant 0 : i32
    %c0_i32_1 = arith.constant 0 : i32
    return %arg0, %c0_i32, %c0_i32_0 : i32, i32, i32
  }
  func.func @transform_1(%arg0: i32) -> (i32, i32, i32) {
    %c0_i32 = arith.constant 0 : i32
    %c0_i32_0 = arith.constant 0 : i32
    %c0_i32_1 = arith.constant 0 : i32
    return %arg0, %c0_i32, %c0_i32_0 : i32, i32, i32
  }
  func.func @transform_2(%arg0: i32) -> (i32, i32) {
    %c0_i32 = arith.constant 0 : i32
    %c0_i32_0 = arith.constant 0 : i32
    %c0_i32_1 = arith.constant 0 : i32
    return %c0_i32, %c0_i32_0 : i32, i32
  }
  func.func @transform_3(%arg0: i32) -> (i32, i32) {
    %c0_i32 = arith.constant 0 : i32
    %c0_i32_0 = arith.constant 0 : i32
    %c0_i32_1 = arith.constant 0 : i32
    return %c0_i32, %c0_i32_0 : i32, i32
  }
  func.func @transform_4(%arg0: i32) -> (i32, i32) {
    %c0_i32 = arith.constant 0 : i32
    %c0_i32_0 = arith.constant 0 : i32
    %c0_i32_1 = arith.constant 0 : i32
    return %c0_i32, %c0_i32_0 : i32, i32
  }
  func.func @transform_5(%arg0: i32) -> (i32, i32) {
    %c0_i32 = arith.constant 0 : i32
    %c0_i32_0 = arith.constant 0 : i32
    %c0_i32_1 = arith.constant 0 : i32
    return %c0_i32, %c0_i32_0 : i32, i32
  }
  func.func @transform_6(%arg0: i32) -> (i32, i32, i32) {
    %c0_i32 = arith.constant 0 : i32
    %c0_i32_0 = arith.constant 0 : i32
    %c0_i32_1 = arith.constant 0 : i32
    return %arg0, %c0_i32, %c0_i32_0 : i32, i32, i32
  }
}

</mosaic_0001>

<llo_original>
// kernel: tpu_custom_call.1
$region0: #{tpu_custom_call.1}
  #allocation0 [shape = 'u32[]', space=smem, size = 0x4, offset = 0x4, fixed_abs, tag = 'smem constant byte address 0x4 - core index']
  #allocation1 [shape = 'u32[144,128]{1,0:T(1,128)}', space=vmem, size = 0x12000, scoped, tag = 'internal scratch']
  %s0 = inlined_call_operand.hbm [shape: f32[2,8,32], index: 0, kind: input, shape index: {}]
  %s1 = inlined_call_operand.hbm [shape: f32[2,16,32], index: 1, kind: input, shape index: {}]
  %s2 = inlined_call_operand.hbm [shape: f32[32,32], index: 2, kind: input, shape index: {}]
  %s3 = inlined_call_operand.hbm [shape: f32[32,64], index: 3, kind: input, shape index: {}]
  %s4 = inlined_call_operand.hbm [shape: f32[32,32], index: 4, kind: input, shape index: {}]
  %s5 = inlined_call_operand.vmem [shape: f32[1,32], index: 5, kind: input, shape index: {}]
  %s6 = inlined_call_operand.hbm [shape: f32[2,8,32], index: 6, kind: output, shape index: {}]
  %s7 = sld [smem:[#allocation0]]
  $region77: #{tpu_custom_call.1} parent=0
    _
  %s9 = ssub.s32 1, %s7
  %s10 = scalar_select 0, %s9, %s7
  $region1: #{tpu_custom_call.1} parent=0
    #allocation2 [shape = 'u8[8192]{0}', space=vmem, size = 0x2000, scoped, tag = 'input window, operand 0']
    #allocation3 [shape = 's32[2]{0}', space=sflag, size = 0x8, scoped, tag = 'scoped memory for tpu_custom_call.1']
    #allocation4 [shape = 's32[2]{0}', space=sflag, size = 0x8, scoped, tag = 'scoped memory for tpu_custom_call.1']
    #allocation5 [shape = 'u8[16384]{0}', space=vmem, size = 0x4000, scoped, tag = 'input window, operand 1']
    #allocation6 [shape = 's32[2]{0}', space=sflag, size = 0x8, scoped, tag = 'scoped memory for tpu_custom_call.1']
    #allocation7 [shape = 'u8[16384]{0}', space=vmem, size = 0x4000, scoped, tag = 'input window, operand 2, single buffered']
    #allocation8 [shape = 'u8[16384]{0}', space=vmem, size = 0x4000, scoped, tag = 'input window, operand 3, single buffered']
    #allocation9 [shape = 's32[1]{0}', space=sflag, size = 0x4, scoped, tag = 'scoped memory for tpu_custom_call.1']
    #allocation10 [shape = 'u8[16384]{0}', space=vmem, size = 0x4000, scoped, tag = 'input window, operand 4, single buffered']
    #allocation11 [shape = 'u8[8192]{0}', space=vmem, size = 0x2000, scoped, tag = 'output window, operand 0']
    %11 = vsyncpa [#allocation3], 0
    %s12 = scalar_lea.sflag [#allocation3], 1
    %13 = vsyncpa %s12, 0
    %14 = vsyncpa [#allocation6], 0
    %s15 = scalar_lea.sflag [#allocation6], 1
    %16 = vsyncpa %s15, 0
    %17 = vsyncpa [#allocation9], 0
    %18 = vsyncpa [#allocation4], 0
    %s19 = scalar_lea.sflag [#allocation4], 1
    %20 = vsyncpa %s19, 0
    loop: start=0, step=1, limit=4
    $region2: #{tpu_custom_call.1} parent=1 // loop_pre_header
      _
    $region3: #{tpu_custom_call.1} parent=1 // loop_header
      %s22 = sphi 0, %s26
      %p23 = scmp.ge.s32.totalorder %s22, 4
      %s32 = sphi 0, %s34
      %s35 = sphi 0, %s32
      %s36 = sphi 0, %s35
      %s52 = sphi 0, %s36
      %s58 = sphi 0, %s60
      %s61 = sphi 0, %s58
      %s62 = sphi 0, %s61
      %s78 = sphi 0, %s62
      %s82 = sphi 0, %s82
      %s84 = sphi 0, %s82
      %s85 = sphi 0, %s84
      %s99 = sphi 0, %s85
      %s103 = sphi 0, %s103
      %s105 = sphi 0, %s103
      %s106 = sphi 0, %s105
      %s120 = sphi 0, %s106
      %s124 = sphi 0, %s124
      %s126 = sphi 0, %s124
      %s127 = sphi 0, %s126
      %s141 = sphi 0, %s127
      %s145 = sphi 0, %s145
      %s147 = sphi 0, %s145
      %s148 = sphi 0, %s147
      %s162 = sphi 0, %s148
      %s168 = sphi 0, %s170
      %s171 = sphi 0, %s168
      %s172 = sphi 0, %s171
      %s188 = sphi 0, %s172
    $region4: #{tpu_custom_call.1} parent=1 // loop_header_branch
      %25 = sbr.rel (%p23) target = $region8
    $region5: #{tpu_custom_call.1} parent=1 // loop_body
      %s27 = ssub.s32 %s22, 1
      %s28 = ssub.s32 %s22, 2
      %s29 = sadd.s32 %s22, 1
      %s30 = ssub.s32 %s22, %s29
      %p31 = scmp.eq.s32.totalorder %s30, 0
      %s33 = sadd.s32 %s32, 1
      %s34 = scalar_select %p31, %s32, %s33
      %p37 = pneg %p31
      %p38 = scmp.eq.s32.totalorder %s22, 1
      %p39 = por %p37, %p38
      %p40 = scmp.ne.s32.totalorder %s32, %s35
      %p41 = scmp.eq.s32.totalorder %s22, 0
      %p42 = por %p40, %p41
      %p43 = scmp.ne.s32.totalorder %s32, %s35
      %p44 = scmp.eq.s32.totalorder %s27, 1
      %p45 = por %p43, %p44
      %p46 = scmp.ne.s32.totalorder %s35, %s36
      %p47 = scmp.eq.s32.totalorder %s27, 0
      %p48 = por %p46, %p47
      %p49 = scmp.ne.s32.totalorder %s35, %s36
      %p50 = scmp.eq.s32.totalorder %s28, 1
      %p51 = por %p49, %p50
      %p53 = scmp.ne.s32.totalorder %s36, %s52
      %p54 = scmp.eq.s32.totalorder %s28, 0
      %p55 = por %p53, %p54
      %s56 = ssub.s32 %s22, %s29
      %p57 = scmp.eq.s32.totalorder %s56, 0
      %s59 = sadd.s32 %s58, 1
      %s60 = scalar_select %p57, %s58, %s59
      %p63 = pneg %p57
      %p64 = scmp.eq.s32.totalorder %s22, 1
      %p65 = por %p63, %p64
      %p66 = scmp.ne.s32.totalorder %s58, %s61
      %p67 = scmp.eq.s32.totalorder %s22, 0
      %p68 = por %p66, %p67
      %p69 = scmp.ne.s32.totalorder %s58, %s61
      %p70 = scmp.eq.s32.totalorder %s27, 1
      %p71 = por %p69, %p70
      %p72 = scmp.ne.s32.totalorder %s61, %s62
      %p73 = scmp.eq.s32.totalorder %s27, 0
      %p74 = por %p72, %p73
      %p75 = scmp.ne.s32.totalorder %s61, %s62
      %p76 = scmp.eq.s32.totalorder %s28, 1
      %p77 = por %p75, %p76
      %p79 = scmp.ne.s32.totalorder %s62, %s78
      %p80 = scmp.eq.s32.totalorder %s28, 0
      %p81 = por %p79, %p80
      %s83 = sadd.s32 %s82, 1
      %p86 = scmp.eq.s32.totalorder %s22, 1
      %p87 = scmp.ne.s32.totalorder %s82, %s84
      %p88 = scmp.eq.s32.totalorder %s22, 0
      %p89 = por %p87, %p88
      %p90 = scmp.ne.s32.totalorder %s82, %s84
      %p91 = scmp.eq.s32.totalorder %s27, 1
      %p92 = por %p90, %p91
      %p93 = scmp.ne.s32.totalorder %s84, %s85
      %p94 = scmp.eq.s32.totalorder %s27, 0
      %p95 = por %p93, %p94
      %p96 = scmp.ne.s32.totalorder %s84, %s85
      %p97 = scmp.eq.s32.totalorder %s28, 1
      %p98 = por %p96, %p97
      %p100 = scmp.ne.s32.totalorder %s85, %s99
      %p101 = scmp.eq.s32.totalorder %s28, 0
      %p102 = por %p100, %p101
      %s104 = sadd.s32 %s103, 1
      %p107 = scmp.eq.s32.totalorder %s22, 1
      %p108 = scmp.ne.s32.totalorder %s103, %s105
      %p109 = scmp.eq.s32.totalorder %s22, 0
      %p110 = por %p108, %p109
      %p111 = scmp.ne.s32.totalorder %s103, %s105
      %p112 = scmp.eq.s32.totalorder %s27, 1
      %p113 = por %p111, %p112
      %p114 = scmp.ne.s32.totalorder %s105, %s106
      %p115 = scmp.eq.s32.totalorder %s27, 0
      %p116 = por %p114, %p115
      %p117 = scmp.ne.s32.totalorder %s105, %s106
      %p118 = scmp.eq.s32.totalorder %s28, 1
      %p119 = por %p117, %p118
      %p121 = scmp.ne.s32.totalorder %s106, %s120
      %p122 = scmp.eq.s32.totalorder %s28, 0
      %p123 = por %p121, %p122
      %s125 = sadd.s32 %s124, 1
      %p128 = scmp.eq.s32.totalorder %s22, 1
      %p129 = scmp.ne.s32.totalorder %s124, %s126
      %p130 = scmp.eq.s32.totalorder %s22, 0
      %p131 = por %p129, %p130
      %p132 = scmp.ne.s32.totalorder %s124, %s126
      %p133 = scmp.eq.s32.totalorder %s27, 1
      %p134 = por %p132, %p133
      %p135 = scmp.ne.s32.totalorder %s126, %s127
      %p136 = scmp.eq.s32.totalorder %s27, 0
      %p137 = por %p135, %p136
      %p138 = scmp.ne.s32.totalorder %s126, %s127
      %p139 = scmp.eq.s32.totalorder %s28, 1
      %p140 = por %p138, %p139
      %p142 = scmp.ne.s32.totalorder %s127, %s141
      %p143 = scmp.eq.s32.totalorder %s28, 0
      %p144 = por %p142, %p143
      %s146 = sadd.s32 %s145, 1
      %p149 = scmp.eq.s32.totalorder %s22, 1
      %p150 = scmp.ne.s32.totalorder %s145, %s147
      %p151 = scmp.eq.s32.totalorder %s22, 0
      %p152 = por %p150, %p151
      %p153 = scmp.ne.s32.totalorder %s145, %s147
      %p154 = scmp.eq.s32.totalorder %s27, 1
      %p155 = por %p153, %p154
      %p156 = scmp.ne.s32.totalorder %s147, %s148
      %p157 = scmp.eq.s32.totalorder %s27, 0
      %p158 = por %p156, %p157
      %p159 = scmp.ne.s32.totalorder %s147, %s148
      %p160 = scmp.eq.s32.totalorder %s28, 1
      %p161 = por %p159, %p160
      %p163 = scmp.ne.s32.totalorder %s148, %s162
      %p164 = scmp.eq.s32.totalorder %s28, 0
      %p165 = por %p163, %p164
      %s166 = ssub.s32 %s22, %s29
      %p167 = scmp.eq.s32.totalorder %s166, 0
      %s169 = sadd.s32 %s168, 1
      %s170 = scalar_select %p167, %s168, %s169
      %p173 = pneg %p167
      %p174 = scmp.eq.s32.totalorder %s22, 1
      %p175 = por %p173, %p174
      %p176 = scmp.ne.s32.totalorder %s168, %s171
      %p177 = scmp.eq.s32.totalorder %s22, 0
      %p178 = por %p176, %p177
      %p179 = scmp.ne.s32.totalorder %s168, %s171
      %p180 = scmp.eq.s32.totalorder %s27, 1
      %p181 = por %p179, %p180
      %p182 = scmp.ne.s32.totalorder %s171, %s172
      %p183 = scmp.eq.s32.totalorder %s27, 0
      %p184 = por %p182, %p183
      %p185 = scmp.ne.s32.totalorder %s171, %s172
      %p186 = scmp.eq.s32.totalorder %s28, 1
      %p187 = por %p185, %p186
      %p189 = scmp.ne.s32.totalorder %s172, %s188
      %p190 = scmp.eq.s32.totalorder %s28, 0
      %p191 = por %p189, %p190
      %p192 = scmp.le.s32.totalorder 1, %s22
      %p193 = scmp.lt.s32.totalorder %s22, 3
      %p194 = pnand %p192, %p193
      %p195 = pneg %p194
      // Predicated region
      $region9: #{tpu_custom_call.1} parent=5 // pred_check
        _
      $region10: #{tpu_custom_call.1} parent=5 // pred_check_branch
        %197 = sbr.rel (%p194) target = $region12
      $region11: #{tpu_custom_call.1} parent=5 // pred_region
        %s198 = ssub.s32 %s22, 1
        // Predicated region
        $region13: #{tpu_custom_call.1} parent=11 // pred_check
          %p199 = pneg %p95
        $region14: #{tpu_custom_call.1} parent=11 // pred_check_branch
          %201 = sbr.rel (%p199) target = $region16
        $region15: #{tpu_custom_call.1} parent=11 // pred_region
          %s203 = ssub.s32 512, 512
          %204 = vsyncadd [#allocation6], %s203
          %s205 = sshll.u32 [#allocation7], 4
          %s206 = int_to_ptr.vmem [resolvable:$true] %s205
          %211 = dma.hbm_to_vmem [thread:$0]  %s2, 512, %s206, [#allocation6], 128, 128, 8
        $region16: #{tpu_custom_call.1} parent=11 // pred_fallthru
          _
        // Predicated region
        $region17: #{tpu_custom_call.1} parent=11 // pred_check
          %p212 = pneg %p116
        $region18: #{tpu_custom_call.1} parent=11 // pred_check_branch
          %214 = sbr.rel (%p212) target = $region20
        $region19: #{tpu_custom_call.1} parent=11 // pred_region
          %s216 = ssub.s32 512, 512
          %217 = vsyncadd [#allocation9], %s216
          %s218 = sshll.u32 [#allocation8], 4
          %s219 = int_to_ptr.vmem [resolvable:$true] %s218
          %224 = dma.hbm_to_vmem [thread:$0]  %s3, 512, %s219, [#allocation9], 128, 128, 8
        $region20: #{tpu_custom_call.1} parent=11 // pred_fallthru
          _
        // Predicated region
        $region21: #{tpu_custom_call.1} parent=11 // pred_check
          %p225 = pneg %p137
        $region22: #{tpu_custom_call.1} parent=11 // pred_check_branch
          %227 = sbr.rel (%p225) target = $region24
        $region23: #{tpu_custom_call.1} parent=11 // pred_region
          %s229 = ssub.s32 512, 512
          %230 = vsyncadd [#allocation9], %s229
          %s231 = sshll.u32 [#allocation10], 4
          %s232 = int_to_ptr.vmem [resolvable:$true] %s231
          %237 = dma.hbm_to_vmem [thread:$0]  %s4, 512, %s232, [#allocation9], 128, 128, 8
        $region24: #{tpu_custom_call.1} parent=11 // pred_fallthru
          _
        // Predicated region
        $region25: #{tpu_custom_call.1} parent=11 // pred_check
          %p238 = pneg %p158
        $region26: #{tpu_custom_call.1} parent=11 // pred_check_branch
          %240 = sbr.rel (%p238) target = $region28
        $region27: #{tpu_custom_call.1} parent=11 // pred_region
          _
        $region28: #{tpu_custom_call.1} parent=11 // pred_fallthru
          _
      $region12: #{tpu_custom_call.1} parent=5 // pred_fallthru
        _
      %p241 = scmp.lt.s32.totalorder %s22, 2
      // Predicated region
      $region29: #{tpu_custom_call.1} parent=5 // pred_check
        %p242 = pneg %p241
      $region30: #{tpu_custom_call.1} parent=5 // pred_check_branch
        %244 = sbr.rel (%p242) target = $region32
      $region31: #{tpu_custom_call.1} parent=5 // pred_region
        // Predicated region
        $region33: #{tpu_custom_call.1} parent=31 // pred_check
          %p245 = pneg %p42
        $region34: #{tpu_custom_call.1} parent=31 // pred_check_branch
          %247 = sbr.rel (%p245) target = $region36
        $region35: #{tpu_custom_call.1} parent=31 // pred_region
          %s248 = sand.u32 %s32, 1
          %s249 = scalar_lea.sflag [#allocation3], %s248
          %s250 = sand.u32 %s32, 1
          %s251 = smul.addr %s250, 8
          %s252 = scalar_lea.vmem [#allocation2], %s251
          %s254 = ssub.s32 128, 128
          %255 = vsyncadd %s249, %s254
          %s256 = smul.addr %s22, 128
          %s257 = scalar_lea.hbm %s0, %s256
          %s259 = sshll.u32 %s252, 4
          %s260 = int_to_ptr.vmem [resolvable:$true] %s259
          %262 = dma.hbm_to_vmem [thread:$0]  %s257, 128, %s260, %s249
        $region36: #{tpu_custom_call.1} parent=31 // pred_fallthru
          _
        // Predicated region
        $region37: #{tpu_custom_call.1} parent=31 // pred_check
          %p263 = pneg %p68
        $region38: #{tpu_custom_call.1} parent=31 // pred_check_branch
          %265 = sbr.rel (%p263) target = $region40
        $region39: #{tpu_custom_call.1} parent=31 // pred_region
          %s266 = sand.u32 %s22, 1
          %s267 = scalar_lea.sflag [#allocation6], %s266
          %s268 = sand.u32 %s58, 1
          %s269 = smul.addr %s268, 16
          %s270 = scalar_lea.vmem [#allocation5], %s269
          %s272 = ssub.s32 256, 256
          %273 = vsyncadd %s267, %s272
          %s274 = smul.addr %s22, 2
          %s275 = smul.addr %s274, 128
          %s276 = scalar_lea.hbm %s1, %s275
          %s277 = sshll.u32 %s270, 4
          %s278 = int_to_ptr.vmem [resolvable:$true] %s277
          %283 = dma.hbm_to_vmem [thread:$0]  %s276, 256, %s278, %s267, 128, 128, 8
        $region40: #{tpu_custom_call.1} parent=31 // pred_fallthru
          _
      $region32: #{tpu_custom_call.1} parent=5 // pred_fallthru
        _
      %p284 = scmp.le.s32.totalorder 1, %s22
      %p285 = scmp.lt.s32.totalorder %s22, 3
      %p286 = pnand %p284, %p285
      %p287 = pneg %p286
      // Predicated region
      $region41: #{tpu_custom_call.1} parent=5 // pred_check
        _
      $region42: #{tpu_custom_call.1} parent=5 // pred_check_branch
        %289 = sbr.rel (%p286) target = $region44
      $region43: #{tpu_custom_call.1} parent=5 // pred_region
        %s290 = ssub.s32 %s22, 1
        %s291 = sand.u32 %s35, 1
        %s292 = scalar_lea.sflag [#allocation3], %s291
        %s293 = sand.u32 %s35, 1
        %s294 = smul.addr %s293, 8
        %s295 = scalar_lea.vmem [#allocation2], %s294
        // Predicated region
        $region45: #{tpu_custom_call.1} parent=43 // pred_check
          %p296 = pneg %p48
        $region46: #{tpu_custom_call.1} parent=43 // pred_check_branch
          %298 = sbr.rel (%p296) target = $region48
        $region47: #{tpu_custom_call.1} parent=43 // pred_region
          %299 = dma.done %s292, 128
        $region48: #{tpu_custom_call.1} parent=43 // pred_fallthru
          _
        %s300 = sand.u32 %s27, 1
        %s301 = scalar_lea.sflag [#allocation6], %s300
        %s302 = sand.u32 %s61, 1
        %s303 = smul.addr %s302, 16
        %s304 = scalar_lea.vmem [#allocation5], %s303
        // Predicated region
        $region49: #{tpu_custom_call.1} parent=43 // pred_check
          %p305 = pneg %p74
        $region50: #{tpu_custom_call.1} parent=43 // pred_check_branch
          %307 = sbr.rel (%p305) target = $region52
        $region51: #{tpu_custom_call.1} parent=43 // pred_region
          %308 = dma.done %s301, 256
        $region52: #{tpu_custom_call.1} parent=43 // pred_fallthru
          _
        // Predicated region
        $region53: #{tpu_custom_call.1} parent=43 // pred_check
          %p309 = pneg %p95
        $region54: #{tpu_custom_call.1} parent=43 // pred_check_branch
          %311 = sbr.rel (%p309) target = $region56
        $region55: #{tpu_custom_call.1} parent=43 // pred_region
          %312 = dma.done [#allocation6], 512
        $region56: #{tpu_custom_call.1} parent=43 // pred_fallthru
          _
        // Predicated region
        $region57: #{tpu_custom_call.1} parent=43 // pred_check
          %p313 = pneg %p116
        $region58: #{tpu_custom_call.1} parent=43 // pred_check_branch
          %315 = sbr.rel (%p313) target = $region60
        $region59: #{tpu_custom_call.1} parent=43 // pred_region
          %316 = dma.done [#allocation9], 512
        $region60: #{tpu_custom_call.1} parent=43 // pred_fallthru
          _
        // Predicated region
        $region61: #{tpu_custom_call.1} parent=43 // pred_check
          %p317 = pneg %p137
        $region62: #{tpu_custom_call.1} parent=43 // pred_check_branch
          %319 = sbr.rel (%p317) target = $region64
        $region63: #{tpu_custom_call.1} parent=43 // pred_region
          %320 = dma.done [#allocation9], 512
        $region64: #{tpu_custom_call.1} parent=43 // pred_fallthru
          _
        %s321 = sand.u32 %s35, 1
        %s322 = scalar_lea.sflag [#allocation3], %s321
        %s323 = sand.u32 %s35, 1
        %s324 = smul.addr %s323, 8
        %s325 = scalar_lea.vmem [#allocation2], %s324
        %p326 = pneg %p48
        %p327 = pneg %p45
        %s328 = sand.u32 %s27, 1
        %s329 = scalar_lea.sflag [#allocation6], %s328
        %s330 = sand.u32 %s61, 1
        %s331 = smul.addr %s330, 16
        %s332 = scalar_lea.vmem [#allocation5], %s331
        %p333 = pneg %p74
        %p334 = pneg %p71
        %p335 = pneg %p95
        %p336 = pneg %p92
        %p337 = pneg %p116
        %p338 = pneg %p113
        %p339 = pneg %p137
        %p340 = pneg %p134
        %p341 = pneg %p158
        %p342 = pneg %p155
        %p343 = pneg %p184
        %p344 = pneg %p181
        %s345 = sand.u32 %s171, 1
        %s346 = scalar_lea.sflag [#allocation4], %s345
        %s347 = sand.u32 %s171, 1
        %s348 = smul.addr %s347, 8
        %s349 = scalar_lea.vmem [#allocation11], %s348
        %v350 = vld [vmem:[%s295] sm:$0xff]
        %v351 = vld [vmem:[%s304] sm:$0xff]
        %v352 = vld [vmem:[%s304 + $0x8] sm:$0xff]
        %v353 = vld [vmem:[#allocation7] sm:$0xff]
        %v354 = vld [vmem:[#allocation7 + $0x8] sm:$0xff]
        %v355 = vld [vmem:[#allocation7 + $0x10] sm:$0xff]
        %v356 = vld [vmem:[#allocation7 + $0x18] sm:$0xff]
        %vm357 = vcmask 261120
        %v359 = vsel %vm357, %v350, 0
        %361 = vmatprep.subr.mxu0 0.0
        %362 = vmatpush1.msra.mxu0 0.0
        %363 = vmatprep.subr.mxu0 0.0
        %364 = vmatpush1.msra.mxu0 0.0
        %365 = vmatprep.subr.mxu0 0.0
        %366 = vmatpush1.msra.mxu0 0.0
        %367 = vmatprep.subr.mxu0 0.0
        %368 = vmatpush1.msra.mxu0 0.0
        %369 = vmatprep.subr.mxu0 0.0
        %370 = vmatpush1.msra.mxu0 0.0
        %371 = vmatprep.subr.mxu0 0.0
        %372 = vmatpush1.msra.mxu0 0.0
        %373 = vmatprep.subr.mxu0 0.0
        %374 = vmatpush1.msra.mxu0 0.0
        %375 = vmatprep.subr.mxu0 0.0
        %376 = vmatpush1.msra.mxu0 0.0
        %377 = vmatprep.subr.mxu0 0.0
        %378 = vmatpush1.msra.mxu0 0.0
        %379 = vmatprep.subr.mxu0 0.0
        %380 = vmatpush1.msra.mxu0 0.0
        %381 = vmatprep.subr.mxu0 0.0
        %382 = vmatpush1.msra.mxu0 0.0
        %383 = vmatprep.subr.mxu0 0.0
        %384 = vmatpush1.msra.mxu0 0.0
        %385 = vmatprep.subr.mxu0 0.0
        %386 = vmatpush1.msra.mxu0 %v356
        %387 = vmatprep.subr.mxu0 0.0
        %388 = vmatpush1.msra.mxu0 %v355
        %389 = vmatprep.subr.mxu0 0.0
        %390 = vmatpush1.msra.mxu0 %v354
        %391 = vmatprep.subr.mxu0 0.0
        %392 = vmatpush1.msra.mxu0 %v353
        %393 = vmatprep.subr.mxu0 0.0
        %394 = vmatpush2.msra.mxu0 0.0
        %395 = vmatprep.subr.mxu0 0.0
        %396 = vmatpush2.msra.mxu0 0.0
        %397 = vmatprep.subr.mxu0 0.0
        %398 = vmatpush2.msra.mxu0 0.0
        %399 = vmatprep.subr.mxu0 0.0
        %400 = vmatpush2.msra.mxu0 0.0
        %401 = vmatprep.subr.mxu0 0.0
        %402 = vmatpush2.msra.mxu0 0.0
        %403 = vmatprep.subr.mxu0 0.0
        %404 = vmatpush2.msra.mxu0 0.0
        %405 = vmatprep.subr.mxu0 0.0
        %406 = vmatpush2.msra.mxu0 0.0
        %407 = vmatprep.subr.mxu0 0.0
        %408 = vmatpush2.msra.mxu0 0.0
        %409 = vmatprep.subr.mxu0 0.0
        %410 = vmatpush2.msra.mxu0 0.0
        %411 = vmatprep.subr.mxu0 0.0
        %412 = vmatpush2.msra.mxu0 0.0
        %413 = vmatprep.subr.mxu0 0.0
        %414 = vmatpush2.msra.mxu0 0.0
        %415 = vmatprep.subr.mxu0 0.0
        %416 = vmatpush2.msra.mxu0 0.0
        %417 = vmatprep.subr.mxu0 0.0
        %418 = vmatpush2.msra.mxu0 0.0
        %419 = vmatprep.subr.mxu0 0.0
        %420 = vmatpush2.msra.mxu0 0.0
        %421 = vmatprep.subr.mxu0 0.0
        %422 = vmatpush2.msra.mxu0 0.0
        %423 = vmatprep.subr.mxu0 0.0
        %424 = vmatpush2.msra.mxu0 0.0
        %425 = vmatprep.mubr.f32.mxu0 0.0
        %426 = vmatmul.mubr.f32.gmra.mxu0 %v359
        %v427 = vpop.f32.mrf.mxu0
        %v428 = vadd.f32 0.0, %v427
        %v429 = vpop.f32.mrf.mxu0
        %430 = vdwg.mxu0
        %v431 = vld [vmem:[#allocation8] sm:$0xff]
        %v432 = vld [vmem:[#allocation8 + $0x8] sm:$0xff]
        %v433 = vld [vmem:[#allocation8 + $0x10] sm:$0xff]
        %v434 = vld [vmem:[#allocation8 + $0x18] sm:$0xff]
        %v436 = vsel %vm357, %v351, 0
        %v439 = vsel %vm357, %v352, 0
        %441 = vmatprep.subr.mxu0 0.0
        %442 = vmatpush1.msra.mxu0 0.0
        %443 = vmatprep.subr.mxu0 0.0
        %444 = vmatpush1.msra.mxu0 0.0
        %445 = vmatprep.subr.mxu0 0.0
        %446 = vmatpush1.msra.mxu0 0.0
        %447 = vmatprep.subr.mxu0 0.0
        %448 = vmatpush1.msra.mxu0 0.0
        %449 = vmatprep.subr.mxu0 0.0
        %450 = vmatpush1.msra.mxu0 0.0
        %451 = vmatprep.subr.mxu0 0.0
        %452 = vmatpush1.msra.mxu0 0.0
        %453 = vmatprep.subr.mxu0 0.0
        %454 = vmatpush1.msra.mxu0 0.0
        %455 = vmatprep.subr.mxu0 0.0
        %456 = vmatpush1.msra.mxu0 0.0
        %457 = vmatprep.subr.mxu0 0.0
        %458 = vmatpush1.msra.mxu0 0.0
        %459 = vmatprep.subr.mxu0 0.0
        %460 = vmatpush1.msra.mxu0 0.0
        %461 = vmatprep.subr.mxu0 0.0
        %462 = vmatpush1.msra.mxu0 0.0
        %463 = vmatprep.subr.mxu0 0.0
        %464 = vmatpush1.msra.mxu0 0.0
        %465 = vmatprep.subr.mxu0 0.0
        %466 = vmatpush1.msra.mxu0 %v434
        %467 = vmatprep.subr.mxu0 0.0
        %468 = vmatpush1.msra.mxu0 %v433
        %469 = vmatprep.subr.mxu0 0.0
        %470 = vmatpush1.msra.mxu0 %v432
        %471 = vmatprep.subr.mxu0 0.0
        %472 = vmatpush1.msra.mxu0 %v431
        %473 = vmatprep.subr.mxu0 0.0
        %474 = vmatpush2.msra.mxu0 0.0
        %475 = vmatprep.subr.mxu0 0.0
        %476 = vmatpush2.msra.mxu0 0.0
        %477 = vmatprep.subr.mxu0 0.0
        %478 = vmatpush2.msra.mxu0 0.0
        %479 = vmatprep.subr.mxu0 0.0
        %480 = vmatpush2.msra.mxu0 0.0
        %481 = vmatprep.subr.mxu0 0.0
        %482 = vmatpush2.msra.mxu0 0.0
        %483 = vmatprep.subr.mxu0 0.0
        %484 = vmatpush2.msra.mxu0 0.0
        %485 = vmatprep.subr.mxu0 0.0
        %486 = vmatpush2.msra.mxu0 0.0
        %487 = vmatprep.subr.mxu0 0.0
        %488 = vmatpush2.msra.mxu0 0.0
        %489 = vmatprep.subr.mxu0 0.0
        %490 = vmatpush2.msra.mxu0 0.0
        %491 = vmatprep.subr.mxu0 0.0
        %492 = vmatpush2.msra.mxu0 0.0
        %493 = vmatprep.subr.mxu0 0.0
        %494 = vmatpush2.msra.mxu0 0.0
        %495 = vmatprep.subr.mxu0 0.0
        %496 = vmatpush2.msra.mxu0 0.0
        %497 = vmatprep.subr.mxu0 0.0
        %498 = vmatpush2.msra.mxu0 0.0
        %499 = vmatprep.subr.mxu0 0.0
        %500 = vmatpush2.msra.mxu0 0.0
        %501 = vmatprep.subr.mxu0 0.0
        %502 = vmatpush2.msra.mxu0 0.0
        %503 = vmatprep.subr.mxu0 0.0
        %504 = vmatpush2.msra.mxu0 0.0
        %505 = vmatprep.mubr.f32.mxu0 0.0
        %506 = vmatmul.mubr.f32.gmra.mxu0 %v436
        %v507 = vpop.f32.mrf.mxu0
        %v508 = vadd.f32 0.0, %v507
        %v509 = vpop.f32.mrf.mxu0
        %510 = vmatprep.mubr.f32.mxu0 0.0
        %511 = vmatmul.mubr.f32.gmra.mxu0 %v439
        %v512 = vpop.f32.mrf.mxu0
        %v513 = vadd.f32 0.0, %v512
        %v514 = vpop.f32.mrf.mxu0
        %515 = vdwg.mxu0
        %vm516 = vcmask 64512
        %v518 = vsel %vm516, %v428, 0
        %v521 = vsel %vm516, %v508, 0
        %v524 = vsel %vm516, %v513, 0
        %526 = vmatprep.subr.mxu0 0.0
        %527 = vmatpush1.xpose.msra.mxu0 0.0
        %528 = vmatprep.subr.mxu0 0.0
        %529 = vmatpush1.xpose.msra.mxu0 0.0
        %530 = vmatprep.subr.mxu0 0.0
        %531 = vmatpush1.xpose.msra.mxu0 0.0
        %532 = vmatprep.subr.mxu0 0.0
        %533 = vmatpush1.xpose.msra.mxu0 0.0
        %534 = vmatprep.subr.mxu0 0.0
        %535 = vmatpush1.xpose.msra.mxu0 0.0
        %536 = vmatprep.subr.mxu0 0.0
        %537 = vmatpush1.xpose.msra.mxu0 0.0
        %538 = vmatprep.subr.mxu0 0.0
        %539 = vmatpush1.xpose.msra.mxu0 0.0
        %540 = vmatprep.subr.mxu0 0.0
        %541 = vmatpush1.xpose.msra.mxu0 0.0
        %542 = vmatprep.subr.mxu0 0.0
        %543 = vmatpush1.xpose.msra.mxu0 0.0
        %544 = vmatprep.subr.mxu0 0.0
        %545 = vmatpush1.xpose.msra.mxu0 0.0
        %546 = vmatprep.subr.mxu0 0.0
        %547 = vmatpush1.xpose.msra.mxu0 0.0
        %548 = vmatprep.subr.mxu0 0.0
        %549 = vmatpush1.xpose.msra.mxu0 0.0
        %550 = vmatprep.subr.mxu0 0.0
        %551 = vmatpush1.xpose.msra.mxu0 0.0
        %552 = vmatprep.subr.mxu0 0.0
        %553 = vmatpush1.xpose.msra.mxu0 0.0
        %554 = vmatprep.subr.mxu0 0.0
        %555 = vmatpush1.xpose.msra.mxu0 %v524
        %556 = vmatprep.subr.mxu0 0.0
        %557 = vmatpush1.xpose.msra.mxu0 %v521
        %558 = vmatprep.subr.mxu0 0.0
        %559 = vmatpush2.xpose.msra.mxu0 0.0
        %560 = vmatprep.subr.mxu0 0.0
        %561 = vmatpush2.xpose.msra.mxu0 0.0
        %562 = vmatprep.subr.mxu0 0.0
        %563 = vmatpush2.xpose.msra.mxu0 0.0
        %564 = vmatprep.subr.mxu0 0.0
        %565 = vmatpush2.xpose.msra.mxu0 0.0
        %566 = vmatprep.subr.mxu0 0.0
        %567 = vmatpush2.xpose.msra.mxu0 0.0
        %568 = vmatprep.subr.mxu0 0.0
        %569 = vmatpush2.xpose.msra.mxu0 0.0
        %570 = vmatprep.subr.mxu0 0.0
        %571 = vmatpush2.xpose.msra.mxu0 0.0
        %572 = vmatprep.subr.mxu0 0.0
        %573 = vmatpush2.xpose.msra.mxu0 0.0
        %574 = vmatprep.subr.mxu0 0.0
        %575 = vmatpush2.xpose.msra.mxu0 0.0
        %576 = vmatprep.subr.mxu0 0.0
        %577 = vmatpush2.xpose.msra.mxu0 0.0
        %578 = vmatprep.subr.mxu0 0.0
        %579 = vmatpush2.xpose.msra.mxu0 0.0
        %580 = vmatprep.subr.mxu0 0.0
        %581 = vmatpush2.xpose.msra.mxu0 0.0
        %582 = vmatprep.subr.mxu0 0.0
        %583 = vmatpush2.xpose.msra.mxu0 0.0
        %584 = vmatprep.subr.mxu0 0.0
        %585 = vmatpush2.xpose.msra.mxu0 0.0
        %586 = vmatprep.subr.mxu0 0.0
        %587 = vmatpush2.xpose.msra.mxu0 0.0
        %588 = vmatprep.subr.mxu0 0.0
        %589 = vmatpush2.xpose.msra.mxu0 0.0
        %590 = vmatprep.mubr.f32.mxu0 0.0
        %591 = vmatmul.mubr.f32.gmra.mxu0 %v518
        %v592 = vpop.f32.mrf.mxu0
        %v593 = vadd.f32 0.0, %v592
        %v594 = vpop.f32.mrf.mxu0
        %595 = vdwg.mxu0
        %vm596 = vcmask 130048
        %v597 = vsel %vm596, %v593, -inf
        %598 = vmax.xlane.f32.xlu0 %v597
        %v599 = vpop.xlane.xlu0 %598
        %v600 = vsub.f32 %v593, %v599
        %v601 = vmul.f32 %v600, 1.442695
        %v602 = vpow.pop %v601
        %v603 = vsel %vm596, %v602, 0.0
        %604 = vadd.xlane.f32.xlu0 %v603
        %v605 = vpop.xlane.xlu0 %604
        %606 = vrot.lane.b32.xlu0 %v508, 96
        %v607 = vpop.permute.xlu0 %606
        %608 = vrot.lane.b32.xlu0 %v513, 96
        %v609 = vpop.permute.xlu0 %608
        %v613 = vsel %vm596, %v602, 0
        %615 = vmatprep.subr.mxu0 0.0
        %616 = vmatpush1.msra.mxu0 0.0
        %617 = vmatprep.subr.mxu0 0.0
        %618 = vmatpush1.msra.mxu0 0.0
        %619 = vmatprep.subr.mxu0 0.0
        %620 = vmatpush1.msra.mxu0 0.0
        %621 = vmatprep.subr.mxu0 0.0
        %622 = vmatpush1.msra.mxu0 0.0
        %623 = vmatprep.subr.mxu0 0.0
        %624 = vmatpush1.msra.mxu0 0.0
        %625 = vmatprep.subr.mxu0 0.0
        %626 = vmatpush1.msra.mxu0 0.0
        %627 = vmatprep.subr.mxu0 0.0
        %628 = vmatpush1.msra.mxu0 0.0
        %629 = vmatprep.subr.mxu0 0.0
        %630 = vmatpush1.msra.mxu0 0.0
        %631 = vmatprep.subr.mxu0 0.0
        %632 = vmatpush1.msra.mxu0 0.0
        %633 = vmatprep.subr.mxu0 0.0
        %634 = vmatpush1.msra.mxu0 0.0
        %635 = vmatprep.subr.mxu0 0.0
        %636 = vmatpush1.msra.mxu0 0.0
        %637 = vmatprep.subr.mxu0 0.0
        %638 = vmatpush1.msra.mxu0 0.0
        %639 = vmatprep.subr.mxu0 0.0
        %640 = vmatpush1.msra.mxu0 0.0
        %641 = vmatprep.subr.mxu0 0.0
        %642 = vmatpush1.msra.mxu0 0.0
        %643 = vmatprep.subr.mxu0 0.0
        %644 = vmatpush1.msra.mxu0 %v609
        %645 = vmatprep.subr.mxu0 0.0
        %646 = vmatpush1.msra.mxu0 %v607
        %647 = vmatprep.subr.mxu0 0.0
        %648 = vmatpush2.msra.mxu0 0.0
        %649 = vmatprep.subr.mxu0 0.0
        %650 = vmatpush2.msra.mxu0 0.0
        %651 = vmatprep.subr.mxu0 0.0
        %652 = vmatpush2.msra.mxu0 0.0
        %653 = vmatprep.subr.mxu0 0.0
        %654 = vmatpush2.msra.mxu0 0.0
        %655 = vmatprep.subr.mxu0 0.0
        %656 = vmatpush2.msra.mxu0 0.0
        %657 = vmatprep.subr.mxu0 0.0
        %658 = vmatpush2.msra.mxu0 0.0
        %659 = vmatprep.subr.mxu0 0.0
        %660 = vmatpush2.msra.mxu0 0.0
        %661 = vmatprep.subr.mxu0 0.0
        %662 = vmatpush2.msra.mxu0 0.0
        %663 = vmatprep.subr.mxu0 0.0
        %664 = vmatpush2.msra.mxu0 0.0
        %665 = vmatprep.subr.mxu0 0.0
        %666 = vmatpush2.msra.mxu0 0.0
        %667 = vmatprep.subr.mxu0 0.0
        %668 = vmatpush2.msra.mxu0 0.0
        %669 = vmatprep.subr.mxu0 0.0
        %670 = vmatpush2.msra.mxu0 0.0
        %671 = vmatprep.subr.mxu0 0.0
        %672 = vmatpush2.msra.mxu0 0.0
        %673 = vmatprep.subr.mxu0 0.0
        %674 = vmatpush2.msra.mxu0 0.0
        %675 = vmatprep.subr.mxu0 0.0
        %676 = vmatpush2.msra.mxu0 0.0
        %677 = vmatprep.subr.mxu0 0.0
        %678 = vmatpush2.msra.mxu0 0.0
        %679 = vmatprep.mubr.f32.mxu0 0.0
        %680 = vmatmul.mubr.f32.gmra.mxu0 %v613
        %v681 = vpop.f32.mrf.mxu0
        %v682 = vadd.f32 0.0, %v681
        %v683 = vpop.f32.mrf.mxu0
        %684 = vdwg.mxu0
        %v685 = vrcp.pop %v605
        %v686 = vmul.f32 %v682, %v685
        %v687 = vld [vmem:[#allocation10] sm:$0xff]
        %688 = vrot.lane.b32.xlu0 %v428, 120
        %v689 = vpop.permute.xlu0 %688
        %690 = vrot.lane.b32.xlu0 %v508, 120
        %v691 = vpop.permute.xlu0 %690
        %692 = vrot.lane.b32.xlu0 %v513, 120
        %v693 = vpop.permute.xlu0 %692
        %v694 = vsel %vm516, %v689, 0
        %v696 = vsel %vm516, %v691, 0
        %v698 = vsel %vm516, %v693, 0
        %700 = vmatprep.subr.mxu0 0.0
        %701 = vmatpush1.xpose.msra.mxu0 0.0
        %702 = vmatprep.subr.mxu0 0.0
        %703 = vmatpush1.xpose.msra.mxu0 0.0
        %704 = vmatprep.subr.mxu0 0.0
        %705 = vmatpush1.xpose.msra.mxu0 0.0
        %706 = vmatprep.subr.mxu0 0.0
        %707 = vmatpush1.xpose.msra.mxu0 0.0
        %708 = vmatprep.subr.mxu0 0.0
        %709 = vmatpush1.xpose.msra.mxu0 0.0
        %710 = vmatprep.subr.mxu0 0.0
        %711 = vmatpush1.xpose.msra.mxu0 0.0
        %712 = vmatprep.subr.mxu0 0.0
        %713 = vmatpush1.xpose.msra.mxu0 0.0
        %714 = vmatprep.subr.mxu0 0.0
        %715 = vmatpush1.xpose.msra.mxu0 0.0
        %716 = vmatprep.subr.mxu0 0.0
        %717 = vmatpush1.xpose.msra.mxu0 0.0
        %718 = vmatprep.subr.mxu0 0.0
        %719 = vmatpush1.xpose.msra.mxu0 0.0
        %720 = vmatprep.subr.mxu0 0.0
        %721 = vmatpush1.xpose.msra.mxu0 0.0
        %722 = vmatprep.subr.mxu0 0.0
        %723 = vmatpush1.xpose.msra.mxu0 0.0
        %724 = vmatprep.subr.mxu0 0.0
        %725 = vmatpush1.xpose.msra.mxu0 0.0
        %726 = vmatprep.subr.mxu0 0.0
        %727 = vmatpush1.xpose.msra.mxu0 0.0
        %728 = vmatprep.subr.mxu0 0.0
        %729 = vmatpush1.xpose.msra.mxu0 %v698
        %730 = vmatprep.subr.mxu0 0.0
        %731 = vmatpush1.xpose.msra.mxu0 %v696
        %732 = vmatprep.subr.mxu0 0.0
        %733 = vmatpush2.xpose.msra.mxu0 0.0
        %734 = vmatprep.subr.mxu0 0.0
        %735 = vmatpush2.xpose.msra.mxu0 0.0
        %736 = vmatprep.subr.mxu0 0.0
        %737 = vmatpush2.xpose.msra.mxu0 0.0
        %738 = vmatprep.subr.mxu0 0.0
        %739 = vmatpush2.xpose.msra.mxu0 0.0
        %740 = vmatprep.subr.mxu0 0.0
        %741 = vmatpush2.xpose.msra.mxu0 0.0
        %742 = vmatprep.subr.mxu0 0.0
        %743 = vmatpush2.xpose.msra.mxu0 0.0
        %744 = vmatprep.subr.mxu0 0.0
        %745 = vmatpush2.xpose.msra.mxu0 0.0
        %746 = vmatprep.subr.mxu0 0.0
        %747 = vmatpush2.xpose.msra.mxu0 0.0
        %748 = vmatprep.subr.mxu0 0.0
        %749 = vmatpush2.xpose.msra.mxu0 0.0
        %750 = vmatprep.subr.mxu0 0.0
        %751 = vmatpush2.xpose.msra.mxu0 0.0
        %752 = vmatprep.subr.mxu0 0.0
        %753 = vmatpush2.xpose.msra.mxu0 0.0
        %754 = vmatprep.subr.mxu0 0.0
        %755 = vmatpush2.xpose.msra.mxu0 0.0
        %756 = vmatprep.subr.mxu0 0.0
        %757 = vmatpush2.xpose.msra.mxu0 0.0
        %758 = vmatprep.subr.mxu0 0.0
        %759 = vmatpush2.xpose.msra.mxu0 0.0
        %760 = vmatprep.subr.mxu0 0.0
        %761 = vmatpush2.xpose.msra.mxu0 0.0
        %762 = vmatprep.subr.mxu0 0.0
        %763 = vmatpush2.xpose.msra.mxu0 0.0
        %764 = vmatprep.mubr.f32.mxu0 0.0
        %765 = vmatmul.mubr.f32.gmra.mxu0 %v694
        %v766 = vpop.f32.mrf.mxu0
        %v767 = vadd.f32 0.0, %v766
        %v768 = vpop.f32.mrf.mxu0
        %769 = vdwg.mxu0
        %v770 = vsel %vm596, %v767, -inf
        %771 = vmax.xlane.f32.xlu0 %v770
        %v772 = vpop.xlane.xlu0 %771
        %v773 = vsub.f32 %v767, %v772
        %v774 = vmul.f32 %v773, 1.442695
        %v775 = vpow.pop %v774
        %v776 = vsel %vm596, %v775, 0.0
        %777 = vadd.xlane.f32.xlu0 %v776
        %v778 = vpop.xlane.xlu0 %777
        %779 = vrot.lane.b32.xlu0 %v508, 88
        %v780 = vpop.permute.xlu0 %779
        %781 = vrot.lane.b32.xlu0 %v513, 88
        %v782 = vpop.permute.xlu0 %781
        %v786 = vsel %vm596, %v775, 0
        %788 = vmatprep.subr.mxu0 0.0
        %789 = vmatpush1.msra.mxu0 0.0
        %790 = vmatprep.subr.mxu0 0.0
        %791 = vmatpush1.msra.mxu0 0.0
        %792 = vmatprep.subr.mxu0 0.0
        %793 = vmatpush1.msra.mxu0 0.0
        %794 = vmatprep.subr.mxu0 0.0
        %795 = vmatpush1.msra.mxu0 0.0
        %796 = vmatprep.subr.mxu0 0.0
        %797 = vmatpush1.msra.mxu0 0.0
        %798 = vmatprep.subr.mxu0 0.0
        %799 = vmatpush1.msra.mxu0 0.0
        %800 = vmatprep.subr.mxu0 0.0
        %801 = vmatpush1.msra.mxu0 0.0
        %802 = vmatprep.subr.mxu0 0.0
        %803 = vmatpush1.msra.mxu0 0.0
        %804 = vmatprep.subr.mxu0 0.0
        %805 = vmatpush1.msra.mxu0 0.0
        %806 = vmatprep.subr.mxu0 0.0
        %807 = vmatpush1.msra.mxu0 0.0
        %808 = vmatprep.subr.mxu0 0.0
        %809 = vmatpush1.msra.mxu0 0.0
        %810 = vmatprep.subr.mxu0 0.0
        %811 = vmatpush1.msra.mxu0 0.0
        %812 = vmatprep.subr.mxu0 0.0
        %813 = vmatpush1.msra.mxu0 0.0
        %814 = vmatprep.subr.mxu0 0.0
        %815 = vmatpush1.msra.mxu0 0.0
        %816 = vmatprep.subr.mxu0 0.0
        %817 = vmatpush1.msra.mxu0 %v782
        %818 = vmatprep.subr.mxu0 0.0
        %819 = vmatpush1.msra.mxu0 %v780
        %820 = vmatprep.subr.mxu0 0.0
        %821 = vmatpush2.msra.mxu0 0.0
        %822 = vmatprep.subr.mxu0 0.0
        %823 = vmatpush2.msra.mxu0 0.0
        %824 = vmatprep.subr.mxu0 0.0
        %825 = vmatpush2.msra.mxu0 0.0
        %826 = vmatprep.subr.mxu0 0.0
        %827 = vmatpush2.msra.mxu0 0.0
        %828 = vmatprep.subr.mxu0 0.0
        %829 = vmatpush2.msra.mxu0 0.0
        %830 = vmatprep.subr.mxu0 0.0
        %831 = vmatpush2.msra.mxu0 0.0
        %832 = vmatprep.subr.mxu0 0.0
        %833 = vmatpush2.msra.mxu0 0.0
        %834 = vmatprep.subr.mxu0 0.0
        %835 = vmatpush2.msra.mxu0 0.0
        %836 = vmatprep.subr.mxu0 0.0
        %837 = vmatpush2.msra.mxu0 0.0
        %838 = vmatprep.subr.mxu0 0.0
        %839 = vmatpush2.msra.mxu0 0.0
        %840 = vmatprep.subr.mxu0 0.0
        %841 = vmatpush2.msra.mxu0 0.0
        %842 = vmatprep.subr.mxu0 0.0
        %843 = vmatpush2.msra.mxu0 0.0
        %844 = vmatprep.subr.mxu0 0.0
        %845 = vmatpush2.msra.mxu0 0.0
        %846 = vmatprep.subr.mxu0 0.0
        %847 = vmatpush2.msra.mxu0 0.0
        %848 = vmatprep.subr.mxu0 0.0
        %849 = vmatpush2.msra.mxu0 0.0
        %850 = vmatprep.subr.mxu0 0.0
        %851 = vmatpush2.msra.mxu0 0.0
        %852 = vmatprep.mubr.f32.mxu0 0.0
        %853 = vmatmul.mubr.f32.gmra.mxu0 %v786
        %v854 = vpop.f32.mrf.mxu0
        %v855 = vadd.f32 0.0, %v854
        %v856 = vpop.f32.mrf.mxu0
        %857 = vdwg.mxu0
        %v858 = vrcp.pop %v778
        %v859 = vmul.f32 %v855, %v858
        %v860 = vld [vmem:[#allocation10 + $0x8] sm:$0xff]
        %v862 = vsel %vm516, %v859, 0
        %864 = vmatprep.subr.mxu0 0.0
        %865 = vmatpush1.msra.mxu0 0.0
        %866 = vmatprep.subr.mxu0 0.0
        %867 = vmatpush1.msra.mxu0 0.0
        %868 = vmatprep.subr.mxu0 0.0
        %869 = vmatpush1.msra.mxu0 0.0
        %870 = vmatprep.subr.mxu0 0.0
        %871 = vmatpush1.msra.mxu0 0.0
        %872 = vmatprep.subr.mxu0 0.0
        %873 = vmatpush1.msra.mxu0 0.0
        %874 = vmatprep.subr.mxu0 0.0
        %875 = vmatpush1.msra.mxu0 0.0
        %876 = vmatprep.subr.mxu0 0.0
        %877 = vmatpush1.msra.mxu0 0.0
        %878 = vmatprep.subr.mxu0 0.0
        %879 = vmatpush1.msra.mxu0 0.0
        %880 = vmatprep.subr.mxu0 0.0
        %881 = vmatpush1.msra.mxu0 0.0
        %882 = vmatprep.subr.mxu0 0.0
        %883 = vmatpush1.msra.mxu0 0.0
        %884 = vmatprep.subr.mxu0 0.0
        %885 = vmatpush1.msra.mxu0 0.0
        %886 = vmatprep.subr.mxu0 0.0
        %887 = vmatpush1.msra.mxu0 0.0
        %888 = vmatprep.subr.mxu0 0.0
        %889 = vmatpush1.msra.mxu0 0.0
        %890 = vmatprep.subr.mxu0 0.0
        %891 = vmatpush1.msra.mxu0 0.0
        %892 = vmatprep.subr.mxu0 0.0
        %893 = vmatpush1.msra.mxu0 0.0
        %894 = vmatprep.subr.mxu0 0.0
        %895 = vmatpush1.msra.mxu0 %v860
        %896 = vmatprep.subr.mxu0 0.0
        %897 = vmatpush2.msra.mxu0 0.0
        %898 = vmatprep.subr.mxu0 0.0
        %899 = vmatpush2.msra.mxu0 0.0
        %900 = vmatprep.subr.mxu0 0.0
        %901 = vmatpush2.msra.mxu0 0.0
        %902 = vmatprep.subr.mxu0 0.0
        %903 = vmatpush2.msra.mxu0 0.0
        %904 = vmatprep.subr.mxu0 0.0
        %905 = vmatpush2.msra.mxu0 0.0
        %906 = vmatprep.subr.mxu0 0.0
        %907 = vmatpush2.msra.mxu0 0.0
        %908 = vmatprep.subr.mxu0 0.0
        %909 = vmatpush2.msra.mxu0 0.0
        %910 = vmatprep.subr.mxu0 0.0
        %911 = vmatpush2.msra.mxu0 0.0
        %912 = vmatprep.subr.mxu0 0.0
        %913 = vmatpush2.msra.mxu0 0.0
        %914 = vmatprep.subr.mxu0 0.0
        %915 = vmatpush2.msra.mxu0 0.0
        %916 = vmatprep.subr.mxu0 0.0
        %917 = vmatpush2.msra.mxu0 0.0
        %918 = vmatprep.subr.mxu0 0.0
        %919 = vmatpush2.msra.mxu0 0.0
        %920 = vmatprep.subr.mxu0 0.0
        %921 = vmatpush2.msra.mxu0 0.0
        %922 = vmatprep.subr.mxu0 0.0
        %923 = vmatpush2.msra.mxu0 0.0
        %924 = vmatprep.subr.mxu0 0.0
        %925 = vmatpush2.msra.mxu0 0.0
        %926 = vmatprep.subr.mxu0 0.0
        %927 = vmatpush2.msra.mxu0 0.0
        %928 = vmatprep.mubr.f32.mxu0 0.0
        %929 = vmatmul.mubr.f32.gmra.mxu0 %v862
        %v930 = vpop.f32.mrf.mxu0
        %v931 = vadd.f32 0.0, %v930
        %v932 = vpop.f32.mrf.mxu0
        %933 = vdwg.mxu0
        %v935 = vsel %vm516, %v686, 0
        %937 = vmatprep.subr.mxu0 0.0
        %938 = vmatpush1.msra.mxu0 0.0
        %939 = vmatprep.subr.mxu0 0.0
        %940 = vmatpush1.msra.mxu0 0.0
        %941 = vmatprep.subr.mxu0 0.0
        %942 = vmatpush1.msra.mxu0 0.0
        %943 = vmatprep.subr.mxu0 0.0
        %944 = vmatpush1.msra.mxu0 0.0
        %945 = vmatprep.subr.mxu0 0.0
        %946 = vmatpush1.msra.mxu0 0.0
        %947 = vmatprep.subr.mxu0 0.0
        %948 = vmatpush1.msra.mxu0 0.0
        %949 = vmatprep.subr.mxu0 0.0
        %950 = vmatpush1.msra.mxu0 0.0
        %951 = vmatprep.subr.mxu0 0.0
        %952 = vmatpush1.msra.mxu0 0.0
        %953 = vmatprep.subr.mxu0 0.0
        %954 = vmatpush1.msra.mxu0 0.0
        %955 = vmatprep.subr.mxu0 0.0
        %956 = vmatpush1.msra.mxu0 0.0
        %957 = vmatprep.subr.mxu0 0.0
        %958 = vmatpush1.msra.mxu0 0.0
        %959 = vmatprep.subr.mxu0 0.0
        %960 = vmatpush1.msra.mxu0 0.0
        %961 = vmatprep.subr.mxu0 0.0
        %962 = vmatpush1.msra.mxu0 0.0
        %963 = vmatprep.subr.mxu0 0.0
        %964 = vmatpush1.msra.mxu0 0.0
        %965 = vmatprep.subr.mxu0 0.0
        %966 = vmatpush1.msra.mxu0 0.0
        %967 = vmatprep.subr.mxu0 0.0
        %968 = vmatpush1.msra.mxu0 %v687
        %969 = vmatprep.subr.mxu0 0.0
        %970 = vmatpush2.msra.mxu0 0.0
        %971 = vmatprep.subr.mxu0 0.0
        %972 = vmatpush2.msra.mxu0 0.0
        %973 = vmatprep.subr.mxu0 0.0
        %974 = vmatpush2.msra.mxu0 0.0
        %975 = vmatprep.subr.mxu0 0.0
        %976 = vmatpush2.msra.mxu0 0.0
        %977 = vmatprep.subr.mxu0 0.0
        %978 = vmatpush2.msra.mxu0 0.0
        %979 = vmatprep.subr.mxu0 0.0
        %980 = vmatpush2.msra.mxu0 0.0
        %981 = vmatprep.subr.mxu0 0.0
        %982 = vmatpush2.msra.mxu0 0.0
        %983 = vmatprep.subr.mxu0 0.0
        %984 = vmatpush2.msra.mxu0 0.0
        %985 = vmatprep.subr.mxu0 0.0
        %986 = vmatpush2.msra.mxu0 0.0
        %987 = vmatprep.subr.mxu0 0.0
        %988 = vmatpush2.msra.mxu0 0.0
        %989 = vmatprep.subr.mxu0 0.0
        %990 = vmatpush2.msra.mxu0 0.0
        %991 = vmatprep.subr.mxu0 0.0
        %992 = vmatpush2.msra.mxu0 0.0
        %993 = vmatprep.subr.mxu0 0.0
        %994 = vmatpush2.msra.mxu0 0.0
        %995 = vmatprep.subr.mxu0 0.0
        %996 = vmatpush2.msra.mxu0 0.0
        %997 = vmatprep.subr.mxu0 0.0
        %998 = vmatpush2.msra.mxu0 0.0
        %999 = vmatprep.subr.mxu0 0.0
        %1000 = vmatpush2.msra.mxu0 0.0
        %1001 = vmatprep.mubr.f32.mxu0 0.0
        %1002 = vmatmul.mubr.f32.gmra.mxu0 %v935
        %v1003 = vpop.f32.mrf.mxu0
        %v1004 = vadd.f32 %v931, %v1003
        %v1005 = vpop.f32.mrf.mxu0
        %1006 = vdwg.mxu0
        %1007 = vrot.lane.b32.xlu0 %v428, 112
        %v1008 = vpop.permute.xlu0 %1007
        %1009 = vrot.lane.b32.xlu0 %v508, 112
        %v1010 = vpop.permute.xlu0 %1009
        %1011 = vrot.lane.b32.xlu0 %v513, 112
        %v1012 = vpop.permute.xlu0 %1011
        %v1013 = vsel %vm516, %v1008, 0
        %v1015 = vsel %vm516, %v1010, 0
        %v1017 = vsel %vm516, %v1012, 0
        %1019 = vmatprep.subr.mxu0 0.0
        %1020 = vmatpush1.xpose.msra.mxu0 0.0
        %1021 = vmatprep.subr.mxu0 0.0
        %1022 = vmatpush1.xpose.msra.mxu0 0.0
        %1023 = vmatprep.subr.mxu0 0.0
        %1024 = vmatpush1.xpose.msra.mxu0 0.0
        %1025 = vmatprep.subr.mxu0 0.0
        %1026 = vmatpush1.xpose.msra.mxu0 0.0
        %1027 = vmatprep.subr.mxu0 0.0
        %1028 = vmatpush1.xpose.msra.mxu0 0.0
        %1029 = vmatprep.subr.mxu0 0.0
        %1030 = vmatpush1.xpose.msra.mxu0 0.0
        %1031 = vmatprep.subr.mxu0 0.0
        %1032 = vmatpush1.xpose.msra.mxu0 0.0
        %1033 = vmatprep.subr.mxu0 0.0
        %1034 = vmatpush1.xpose.msra.mxu0 0.0
        %1035 = vmatprep.subr.mxu0 0.0
        %1036 = vmatpush1.xpose.msra.mxu0 0.0
        %1037 = vmatprep.subr.mxu0 0.0
        %1038 = vmatpush1.xpose.msra.mxu0 0.0
        %1039 = vmatprep.subr.mxu0 0.0
        %1040 = vmatpush1.xpose.msra.mxu0 0.0
        %1041 = vmatprep.subr.mxu0 0.0
        %1042 = vmatpush1.xpose.msra.mxu0 0.0
        %1043 = vmatprep.subr.mxu0 0.0
        %1044 = vmatpush1.xpose.msra.mxu0 0.0
        %1045 = vmatprep.subr.mxu0 0.0
        %1046 = vmatpush1.xpose.msra.mxu0 0.0
        %1047 = vmatprep.subr.mxu0 0.0
        %1048 = vmatpush1.xpose.msra.mxu0 %v1017
        %1049 = vmatprep.subr.mxu0 0.0
        %1050 = vmatpush1.xpose.msra.mxu0 %v1015
        %1051 = vmatprep.subr.mxu0 0.0
        %1052 = vmatpush2.xpose.msra.mxu0 0.0
        %1053 = vmatprep.subr.mxu0 0.0
        %1054 = vmatpush2.xpose.msra.mxu0 0.0
        %1055 = vmatprep.subr.mxu0 0.0
        %1056 = vmatpush2.xpose.msra.mxu0 0.0
        %1057 = vmatprep.subr.mxu0 0.0
        %1058 = vmatpush2.xpose.msra.mxu0 0.0
        %1059 = vmatprep.subr.mxu0 0.0
        %1060 = vmatpush2.xpose.msra.mxu0 0.0
        %1061 = vmatprep.subr.mxu0 0.0
        %1062 = vmatpush2.xpose.msra.mxu0 0.0
        %1063 = vmatprep.subr.mxu0 0.0
        %1064 = vmatpush2.xpose.msra.mxu0 0.0
        %1065 = vmatprep.subr.mxu0 0.0
        %1066 = vmatpush2.xpose.msra.mxu0 0.0
        %1067 = vmatprep.subr.mxu0 0.0
        %1068 = vmatpush2.xpose.msra.mxu0 0.0
        %1069 = vmatprep.subr.mxu0 0.0
        %1070 = vmatpush2.xpose.msra.mxu0 0.0
        %1071 = vmatprep.subr.mxu0 0.0
        %1072 = vmatpush2.xpose.msra.mxu0 0.0
        %1073 = vmatprep.subr.mxu0 0.0
        %1074 = vmatpush2.xpose.msra.mxu0 0.0
        %1075 = vmatprep.subr.mxu0 0.0
        %1076 = vmatpush2.xpose.msra.mxu0 0.0
        %1077 = vmatprep.subr.mxu0 0.0
        %1078 = vmatpush2.xpose.msra.mxu0 0.0
        %1079 = vmatprep.subr.mxu0 0.0
        %1080 = vmatpush2.xpose.msra.mxu0 0.0
        %1081 = vmatprep.subr.mxu0 0.0
        %1082 = vmatpush2.xpose.msra.mxu0 0.0
        %1083 = vmatprep.mubr.f32.mxu0 0.0
        %1084 = vmatmul.mubr.f32.gmra.mxu0 %v1013
        %v1085 = vpop.f32.mrf.mxu0
        %v1086 = vadd.f32 0.0, %v1085
        %v1087 = vpop.f32.mrf.mxu0
        %1088 = vdwg.mxu0
        %v1089 = vsel %vm596, %v1086, -inf
        %1090 = vmax.xlane.f32.xlu0 %v1089
        %v1091 = vpop.xlane.xlu0 %1090
        %v1092 = vsub.f32 %v1086, %v1091
        %v1093 = vmul.f32 %v1092, 1.442695
        %v1094 = vpow.pop %v1093
        %v1095 = vsel %vm596, %v1094, 0.0
        %1096 = vadd.xlane.f32.xlu0 %v1095
        %v1097 = vpop.xlane.xlu0 %1096
        %1098 = vrot.lane.b32.xlu0 %v508, 80
        %v1099 = vpop.permute.xlu0 %1098
        %1100 = vrot.lane.b32.xlu0 %v513, 80
        %v1101 = vpop.permute.xlu0 %1100
        %v1105 = vsel %vm596, %v1094, 0
        %1107 = vmatprep.subr.mxu0 0.0
        %1108 = vmatpush1.msra.mxu0 0.0
        %1109 = vmatprep.subr.mxu0 0.0
        %1110 = vmatpush1.msra.mxu0 0.0
        %1111 = vmatprep.subr.mxu0 0.0
        %1112 = vmatpush1.msra.mxu0 0.0
        %1113 = vmatprep.subr.mxu0 0.0
        %1114 = vmatpush1.msra.mxu0 0.0
        %1115 = vmatprep.subr.mxu0 0.0
        %1116 = vmatpush1.msra.mxu0 0.0
        %1117 = vmatprep.subr.mxu0 0.0
        %1118 = vmatpush1.msra.mxu0 0.0
        %1119 = vmatprep.subr.mxu0 0.0
        %1120 = vmatpush1.msra.mxu0 0.0
        %1121 = vmatprep.subr.mxu0 0.0
        %1122 = vmatpush1.msra.mxu0 0.0
        %1123 = vmatprep.subr.mxu0 0.0
        %1124 = vmatpush1.msra.mxu0 0.0
        %1125 = vmatprep.subr.mxu0 0.0
        %1126 = vmatpush1.msra.mxu0 0.0
        %1127 = vmatprep.subr.mxu0 0.0
        %1128 = vmatpush1.msra.mxu0 0.0
        %1129 = vmatprep.subr.mxu0 0.0
        %1130 = vmatpush1.msra.mxu0 0.0
        %1131 = vmatprep.subr.mxu0 0.0
        %1132 = vmatpush1.msra.mxu0 0.0
        %1133 = vmatprep.subr.mxu0 0.0
        %1134 = vmatpush1.msra.mxu0 0.0
        %1135 = vmatprep.subr.mxu0 0.0
        %1136 = vmatpush1.msra.mxu0 %v1101
        %1137 = vmatprep.subr.mxu0 0.0
        %1138 = vmatpush1.msra.mxu0 %v1099
        %1139 = vmatprep.subr.mxu0 0.0
        %1140 = vmatpush2.msra.mxu0 0.0
        %1141 = vmatprep.subr.mxu0 0.0
        %1142 = vmatpush2.msra.mxu0 0.0
        %1143 = vmatprep.subr.mxu0 0.0
        %1144 = vmatpush2.msra.mxu0 0.0
        %1145 = vmatprep.subr.mxu0 0.0
        %1146 = vmatpush2.msra.mxu0 0.0
        %1147 = vmatprep.subr.mxu0 0.0
        %1148 = vmatpush2.msra.mxu0 0.0
        %1149 = vmatprep.subr.mxu0 0.0
        %1150 = vmatpush2.msra.mxu0 0.0
        %1151 = vmatprep.subr.mxu0 0.0
        %1152 = vmatpush2.msra.mxu0 0.0
        %1153 = vmatprep.subr.mxu0 0.0
        %1154 = vmatpush2.msra.mxu0 0.0
        %1155 = vmatprep.subr.mxu0 0.0
        %1156 = vmatpush2.msra.mxu0 0.0
        %1157 = vmatprep.subr.mxu0 0.0
        %1158 = vmatpush2.msra.mxu0 0.0
        %1159 = vmatprep.subr.mxu0 0.0
        %1160 = vmatpush2.msra.mxu0 0.0
        %1161 = vmatprep.subr.mxu0 0.0
        %1162 = vmatpush2.msra.mxu0 0.0
        %1163 = vmatprep.subr.mxu0 0.0
        %1164 = vmatpush2.msra.mxu0 0.0
        %1165 = vmatprep.subr.mxu0 0.0
        %1166 = vmatpush2.msra.mxu0 0.0
        %1167 = vmatprep.subr.mxu0 0.0
        %1168 = vmatpush2.msra.mxu0 0.0
        %1169 = vmatprep.subr.mxu0 0.0
        %1170 = vmatpush2.msra.mxu0 0.0
        %1171 = vmatprep.mubr.f32.mxu0 0.0
        %1172 = vmatmul.mubr.f32.gmra.mxu0 %v1105
        %v1173 = vpop.f32.mrf.mxu0
        %v1174 = vadd.f32 0.0, %v1173
        %v1175 = vpop.f32.mrf.mxu0
        %1176 = vdwg.mxu0
        %v1177 = vrcp.pop %v1097
        %v1178 = vmul.f32 %v1174, %v1177
        %v1179 = vld [vmem:[#allocation10 + $0x10] sm:$0xff]
        %v1181 = vsel %vm516, %v1178, 0
        %1183 = vmatprep.subr.mxu0 0.0
        %1184 = vmatpush1.msra.mxu0 0.0
        %1185 = vmatprep.subr.mxu0 0.0
        %1186 = vmatpush1.msra.mxu0 0.0
        %1187 = vmatprep.subr.mxu0 0.0
        %1188 = vmatpush1.msra.mxu0 0.0
        %1189 = vmatprep.subr.mxu0 0.0
        %1190 = vmatpush1.msra.mxu0 0.0
        %1191 = vmatprep.subr.mxu0 0.0
        %1192 = vmatpush1.msra.mxu0 0.0
        %1193 = vmatprep.subr.mxu0 0.0
        %1194 = vmatpush1.msra.mxu0 0.0
        %1195 = vmatprep.subr.mxu0 0.0
        %1196 = vmatpush1.msra.mxu0 0.0
        %1197 = vmatprep.subr.mxu0 0.0
        %1198 = vmatpush1.msra.mxu0 0.0
        %1199 = vmatprep.subr.mxu0 0.0
        %1200 = vmatpush1.msra.mxu0 0.0
        %1201 = vmatprep.subr.mxu0 0.0
        %1202 = vmatpush1.msra.mxu0 0.0
        %1203 = vmatprep.subr.mxu0 0.0
        %1204 = vmatpush1.msra.mxu0 0.0
        %1205 = vmatprep.subr.mxu0 0.0
        %1206 = vmatpush1.msra.mxu0 0.0
        %1207 = vmatprep.subr.mxu0 0.0
        %1208 = vmatpush1.msra.mxu0 0.0
        %1209 = vmatprep.subr.mxu0 0.0
        %1210 = vmatpush1.msra.mxu0 0.0
        %1211 = vmatprep.subr.mxu0 0.0
        %1212 = vmatpush1.msra.mxu0 0.0
        %1213 = vmatprep.subr.mxu0 0.0
        %1214 = vmatpush1.msra.mxu0 %v1179
        %1215 = vmatprep.subr.mxu0 0.0
        %1216 = vmatpush2.msra.mxu0 0.0
        %1217 = vmatprep.subr.mxu0 0.0
        %1218 = vmatpush2.msra.mxu0 0.0
        %1219 = vmatprep.subr.mxu0 0.0
        %1220 = vmatpush2.msra.mxu0 0.0
        %1221 = vmatprep.subr.mxu0 0.0
        %1222 = vmatpush2.msra.mxu0 0.0
        %1223 = vmatprep.subr.mxu0 0.0
        %1224 = vmatpush2.msra.mxu0 0.0
        %1225 = vmatprep.subr.mxu0 0.0
        %1226 = vmatpush2.msra.mxu0 0.0
        %1227 = vmatprep.subr.mxu0 0.0
        %1228 = vmatpush2.msra.mxu0 0.0
        %1229 = vmatprep.subr.mxu0 0.0
        %1230 = vmatpush2.msra.mxu0 0.0
        %1231 = vmatprep.subr.mxu0 0.0
        %1232 = vmatpush2.msra.mxu0 0.0
        %1233 = vmatprep.subr.mxu0 0.0
        %1234 = vmatpush2.msra.mxu0 0.0
        %1235 = vmatprep.subr.mxu0 0.0
        %1236 = vmatpush2.msra.mxu0 0.0
        %1237 = vmatprep.subr.mxu0 0.0
        %1238 = vmatpush2.msra.mxu0 0.0
        %1239 = vmatprep.subr.mxu0 0.0
        %1240 = vmatpush2.msra.mxu0 0.0
        %1241 = vmatprep.subr.mxu0 0.0
        %1242 = vmatpush2.msra.mxu0 0.0
        %1243 = vmatprep.subr.mxu0 0.0
        %1244 = vmatpush2.msra.mxu0 0.0
        %1245 = vmatprep.subr.mxu0 0.0
        %1246 = vmatpush2.msra.mxu0 0.0
        %1247 = vmatprep.mubr.f32.mxu0 0.0
        %1248 = vmatmul.mubr.f32.gmra.mxu0 %v1181
        %v1249 = vpop.f32.mrf.mxu0
        %v1250 = vadd.f32 0.0, %v1249
        %v1251 = vpop.f32.mrf.mxu0
        %1252 = vdwg.mxu0
        %v1253 = vadd.f32 %v1004, %v1250
        %1254 = vrot.lane.b32.xlu0 %v428, 104
        %v1255 = vpop.permute.xlu0 %1254
        %1256 = vrot.lane.b32.xlu0 %v508, 104
        %v1257 = vpop.permute.xlu0 %1256
        %1258 = vrot.lane.b32.xlu0 %v513, 104
        %v1259 = vpop.permute.xlu0 %1258
        %v1260 = vsel %vm516, %v1255, 0
        %v1262 = vsel %vm516, %v1257, 0
        %v1264 = vsel %vm516, %v1259, 0
        %1266 = vmatprep.subr.mxu0 0.0
        %1267 = vmatpush1.xpose.msra.mxu0 0.0
        %1268 = vmatprep.subr.mxu0 0.0
        %1269 = vmatpush1.xpose.msra.mxu0 0.0
        %1270 = vmatprep.subr.mxu0 0.0
        %1271 = vmatpush1.xpose.msra.mxu0 0.0
        %1272 = vmatprep.subr.mxu0 0.0
        %1273 = vmatpush1.xpose.msra.mxu0 0.0
        %1274 = vmatprep.subr.mxu0 0.0
        %1275 = vmatpush1.xpose.msra.mxu0 0.0
        %1276 = vmatprep.subr.mxu0 0.0
        %1277 = vmatpush1.xpose.msra.mxu0 0.0
        %1278 = vmatprep.subr.mxu0 0.0
        %1279 = vmatpush1.xpose.msra.mxu0 0.0
        %1280 = vmatprep.subr.mxu0 0.0
        %1281 = vmatpush1.xpose.msra.mxu0 0.0
        %1282 = vmatprep.subr.mxu0 0.0
        %1283 = vmatpush1.xpose.msra.mxu0 0.0
        %1284 = vmatprep.subr.mxu0 0.0
        %1285 = vmatpush1.xpose.msra.mxu0 0.0
        %1286 = vmatprep.subr.mxu0 0.0
        %1287 = vmatpush1.xpose.msra.mxu0 0.0
        %1288 = vmatprep.subr.mxu0 0.0
        %1289 = vmatpush1.xpose.msra.mxu0 0.0
        %1290 = vmatprep.subr.mxu0 0.0
        %1291 = vmatpush1.xpose.msra.mxu0 0.0
        %1292 = vmatprep.subr.mxu0 0.0
        %1293 = vmatpush1.xpose.msra.mxu0 0.0
        %1294 = vmatprep.subr.mxu0 0.0
        %1295 = vmatpush1.xpose.msra.mxu0 %v1264
        %1296 = vmatprep.subr.mxu0 0.0
        %1297 = vmatpush1.xpose.msra.mxu0 %v1262
        %1298 = vmatprep.subr.mxu0 0.0
        %1299 = vmatpush2.xpose.msra.mxu0 0.0
        %1300 = vmatprep.subr.mxu0 0.0
        %1301 = vmatpush2.xpose.msra.mxu0 0.0
        %1302 = vmatprep.subr.mxu0 0.0
        %1303 = vmatpush2.xpose.msra.mxu0 0.0
        %1304 = vmatprep.subr.mxu0 0.0
        %1305 = vmatpush2.xpose.msra.mxu0 0.0
        %1306 = vmatprep.subr.mxu0 0.0
        %1307 = vmatpush2.xpose.msra.mxu0 0.0
        %1308 = vmatprep.subr.mxu0 0.0
        %1309 = vmatpush2.xpose.msra.mxu0 0.0
        %1310 = vmatprep.subr.mxu0 0.0
        %1311 = vmatpush2.xpose.msra.mxu0 0.0
        %1312 = vmatprep.subr.mxu0 0.0
        %1313 = vmatpush2.xpose.msra.mxu0 0.0
        %1314 = vmatprep.subr.mxu0 0.0
        %1315 = vmatpush2.xpose.msra.mxu0 0.0
        %1316 = vmatprep.subr.mxu0 0.0
        %1317 = vmatpush2.xpose.msra.mxu0 0.0
        %1318 = vmatprep.subr.mxu0 0.0
        %1319 = vmatpush2.xpose.msra.mxu0 0.0
        %1320 = vmatprep.subr.mxu0 0.0
        %1321 = vmatpush2.xpose.msra.mxu0 0.0
        %1322 = vmatprep.subr.mxu0 0.0
        %1323 = vmatpush2.xpose.msra.mxu0 0.0
        %1324 = vmatprep.subr.mxu0 0.0
        %1325 = vmatpush2.xpose.msra.mxu0 0.0
        %1326 = vmatprep.subr.mxu0 0.0
        %1327 = vmatpush2.xpose.msra.mxu0 0.0
        %1328 = vmatprep.subr.mxu0 0.0
        %1329 = vmatpush2.xpose.msra.mxu0 0.0
        %1330 = vmatprep.mubr.f32.mxu0 0.0
        %1331 = vmatmul.mubr.f32.gmra.mxu0 %v1260
        %v1332 = vpop.f32.mrf.mxu0
        %v1333 = vadd.f32 0.0, %v1332
        %v1334 = vpop.f32.mrf.mxu0
        %1335 = vdwg.mxu0
        %v1336 = vsel %vm596, %v1333, -inf
        %1337 = vmax.xlane.f32.xlu0 %v1336
        %v1338 = vpop.xlane.xlu0 %1337
        %v1339 = vsub.f32 %v1333, %v1338
        %v1340 = vmul.f32 %v1339, 1.442695
        %v1341 = vpow.pop %v1340
        %v1342 = vsel %vm596, %v1341, 0.0
        %1343 = vadd.xlane.f32.xlu0 %v1342
        %v1344 = vpop.xlane.xlu0 %1343
        %1345 = vrot.lane.b32.xlu0 %v508, 72
        %v1346 = vpop.permute.xlu0 %1345
        %1347 = vrot.lane.b32.xlu0 %v513, 72
        %v1348 = vpop.permute.xlu0 %1347
        %v1352 = vsel %vm596, %v1341, 0
        %1354 = vmatprep.subr.mxu0 0.0
        %1355 = vmatpush1.msra.mxu0 0.0
        %1356 = vmatprep.subr.mxu0 0.0
        %1357 = vmatpush1.msra.mxu0 0.0
        %1358 = vmatprep.subr.mxu0 0.0
        %1359 = vmatpush1.msra.mxu0 0.0
        %1360 = vmatprep.subr.mxu0 0.0
        %1361 = vmatpush1.msra.mxu0 0.0
        %1362 = vmatprep.subr.mxu0 0.0
        %1363 = vmatpush1.msra.mxu0 0.0
        %1364 = vmatprep.subr.mxu0 0.0
        %1365 = vmatpush1.msra.mxu0 0.0
        %1366 = vmatprep.subr.mxu0 0.0
        %1367 = vmatpush1.msra.mxu0 0.0
        %1368 = vmatprep.subr.mxu0 0.0
        %1369 = vmatpush1.msra.mxu0 0.0
        %1370 = vmatprep.subr.mxu0 0.0
        %1371 = vmatpush1.msra.mxu0 0.0
        %1372 = vmatprep.subr.mxu0 0.0
        %1373 = vmatpush1.msra.mxu0 0.0
        %1374 = vmatprep.subr.mxu0 0.0
        %1375 = vmatpush1.msra.mxu0 0.0
        %1376 = vmatprep.subr.mxu0 0.0
        %1377 = vmatpush1.msra.mxu0 0.0
        %1378 = vmatprep.subr.mxu0 0.0
        %1379 = vmatpush1.msra.mxu0 0.0
        %1380 = vmatprep.subr.mxu0 0.0
        %1381 = vmatpush1.msra.mxu0 0.0
        %1382 = vmatprep.subr.mxu0 0.0
        %1383 = vmatpush1.msra.mxu0 %v1348
        %1384 = vmatprep.subr.mxu0 0.0
        %1385 = vmatpush1.msra.mxu0 %v1346
        %1386 = vmatprep.subr.mxu0 0.0
        %1387 = vmatpush2.msra.mxu0 0.0
        %1388 = vmatprep.subr.mxu0 0.0
        %1389 = vmatpush2.msra.mxu0 0.0
        %1390 = vmatprep.subr.mxu0 0.0
        %1391 = vmatpush2.msra.mxu0 0.0
        %1392 = vmatprep.subr.mxu0 0.0
        %1393 = vmatpush2.msra.mxu0 0.0
        %1394 = vmatprep.subr.mxu0 0.0
        %1395 = vmatpush2.msra.mxu0 0.0
        %1396 = vmatprep.subr.mxu0 0.0
        %1397 = vmatpush2.msra.mxu0 0.0
        %1398 = vmatprep.subr.mxu0 0.0
        %1399 = vmatpush2.msra.mxu0 0.0
        %1400 = vmatprep.subr.mxu0 0.0
        %1401 = vmatpush2.msra.mxu0 0.0
        %1402 = vmatprep.subr.mxu0 0.0
        %1403 = vmatpush2.msra.mxu0 0.0
        %1404 = vmatprep.subr.mxu0 0.0
        %1405 = vmatpush2.msra.mxu0 0.0
        %1406 = vmatprep.subr.mxu0 0.0
        %1407 = vmatpush2.msra.mxu0 0.0
        %1408 = vmatprep.subr.mxu0 0.0
        %1409 = vmatpush2.msra.mxu0 0.0
        %1410 = vmatprep.subr.mxu0 0.0
        %1411 = vmatpush2.msra.mxu0 0.0
        %1412 = vmatprep.subr.mxu0 0.0
        %1413 = vmatpush2.msra.mxu0 0.0
        %1414 = vmatprep.subr.mxu0 0.0
        %1415 = vmatpush2.msra.mxu0 0.0
        %1416 = vmatprep.subr.mxu0 0.0
        %1417 = vmatpush2.msra.mxu0 0.0
        %1418 = vmatprep.mubr.f32.mxu0 0.0
        %1419 = vmatmul.mubr.f32.gmra.mxu0 %v1352
        %v1420 = vpop.f32.mrf.mxu0
        %v1421 = vadd.f32 0.0, %v1420
        %v1422 = vpop.f32.mrf.mxu0
        %1423 = vdwg.mxu0
        %v1424 = vrcp.pop %v1344
        %v1425 = vmul.f32 %v1421, %v1424
        %v1426 = vld [vmem:[#allocation10 + $0x18] sm:$0xff]
        %v1428 = vsel %vm516, %v1425, 0
        %1430 = vmatprep.subr.mxu0 0.0
        %1431 = vmatpush1.msra.mxu0 0.0
        %1432 = vmatprep.subr.mxu0 0.0
        %1433 = vmatpush1.msra.mxu0 0.0
        %1434 = vmatprep.subr.mxu0 0.0
        %1435 = vmatpush1.msra.mxu0 0.0
        %1436 = vmatprep.subr.mxu0 0.0
        %1437 = vmatpush1.msra.mxu0 0.0
        %1438 = vmatprep.subr.mxu0 0.0
        %1439 = vmatpush1.msra.mxu0 0.0
        %1440 = vmatprep.subr.mxu0 0.0
        %1441 = vmatpush1.msra.mxu0 0.0
        %1442 = vmatprep.subr.mxu0 0.0
        %1443 = vmatpush1.msra.mxu0 0.0
        %1444 = vmatprep.subr.mxu0 0.0
        %1445 = vmatpush1.msra.mxu0 0.0
        %1446 = vmatprep.subr.mxu0 0.0
        %1447 = vmatpush1.msra.mxu0 0.0
        %1448 = vmatprep.subr.mxu0 0.0
        %1449 = vmatpush1.msra.mxu0 0.0
        %1450 = vmatprep.subr.mxu0 0.0
        %1451 = vmatpush1.msra.mxu0 0.0
        %1452 = vmatprep.subr.mxu0 0.0
        %1453 = vmatpush1.msra.mxu0 0.0
        %1454 = vmatprep.subr.mxu0 0.0
        %1455 = vmatpush1.msra.mxu0 0.0
        %1456 = vmatprep.subr.mxu0 0.0
        %1457 = vmatpush1.msra.mxu0 0.0
        %1458 = vmatprep.subr.mxu0 0.0
        %1459 = vmatpush1.msra.mxu0 0.0
        %1460 = vmatprep.subr.mxu0 0.0
        %1461 = vmatpush1.msra.mxu0 %v1426
        %1462 = vmatprep.subr.mxu0 0.0
        %1463 = vmatpush2.msra.mxu0 0.0
        %1464 = vmatprep.subr.mxu0 0.0
        %1465 = vmatpush2.msra.mxu0 0.0
        %1466 = vmatprep.subr.mxu0 0.0
        %1467 = vmatpush2.msra.mxu0 0.0
        %1468 = vmatprep.subr.mxu0 0.0
        %1469 = vmatpush2.msra.mxu0 0.0
        %1470 = vmatprep.subr.mxu0 0.0
        %1471 = vmatpush2.msra.mxu0 0.0
        %1472 = vmatprep.subr.mxu0 0.0
        %1473 = vmatpush2.msra.mxu0 0.0
        %1474 = vmatprep.subr.mxu0 0.0
        %1475 = vmatpush2.msra.mxu0 0.0
        %1476 = vmatprep.subr.mxu0 0.0
        %1477 = vmatpush2.msra.mxu0 0.0
        %1478 = vmatprep.subr.mxu0 0.0
        %1479 = vmatpush2.msra.mxu0 0.0
        %1480 = vmatprep.subr.mxu0 0.0
        %1481 = vmatpush2.msra.mxu0 0.0
        %1482 = vmatprep.subr.mxu0 0.0
        %1483 = vmatpush2.msra.mxu0 0.0
        %1484 = vmatprep.subr.mxu0 0.0
        %1485 = vmatpush2.msra.mxu0 0.0
        %1486 = vmatprep.subr.mxu0 0.0
        %1487 = vmatpush2.msra.mxu0 0.0
        %1488 = vmatprep.subr.mxu0 0.0
        %1489 = vmatpush2.msra.mxu0 0.0
        %1490 = vmatprep.subr.mxu0 0.0
        %1491 = vmatpush2.msra.mxu0 0.0
        %1492 = vmatprep.subr.mxu0 0.0
        %1493 = vmatpush2.msra.mxu0 0.0
        %1494 = vmatprep.mubr.f32.mxu0 0.0
        %1495 = vmatmul.mubr.f32.gmra.mxu0 %v1428
        %v1496 = vpop.f32.mrf.mxu0
        %v1497 = vadd.f32 0.0, %v1496
        %v1498 = vpop.f32.mrf.mxu0
        %1499 = vdwg.mxu0
        %v1500 = vadd.f32 %v1253, %v1497
        %v1501 = vld [vmem:[%s5] sm:$0x1]
        %v1503 = vlaneseq
        %v1504 = vshrl.u32 %v1503, 7
        %v1505 = vsub.s32 0, %v1504
        %v1506 = vrot.slane %v1501, %v1505
        %v1508 = vadd.f32 %v1500, %v1506
        %1509 = vst.msk [vmem:[%s349] sm:$0xff] %vm357, %v1508
        %s1510 = sand.u32 %s171, 1
        %s1511 = scalar_lea.sflag [#allocation4], %s1510
        %s1512 = sand.u32 %s171, 1
        %s1513 = smul.addr %s1512, 8
        %s1514 = scalar_lea.vmem [#allocation11], %s1513
        // Predicated region
        $region65: #{tpu_custom_call.1} parent=43 // pred_check
          %p1515 = pneg %p181
        $region66: #{tpu_custom_call.1} parent=43 // pred_check_branch
          %1517 = sbr.rel (%p1515) target = $region68
        $region67: #{tpu_custom_call.1} parent=43 // pred_region
          %s1519 = ssub.s32 128, 128
          %1520 = vsyncadd %s1511, %s1519
          %s1521 = smul.addr %s27, 128
          %s1522 = scalar_lea.hbm %s6, %s1521
          %s1524 = sshll.u32 %s1514, 4
          %s1525 = int_to_ptr.vmem [resolvable:$true] %s1524
          %1527 = dma.vmem_to_hbm [thread:$0]  %s1525, 128, %s1522, %s1511
        $region68: #{tpu_custom_call.1} parent=43 // pred_fallthru
          _
      $region44: #{tpu_custom_call.1} parent=5 // pred_fallthru
        _
      %p1528 = scmp.le.s32.totalorder 2, %s22
      // Predicated region
      $region69: #{tpu_custom_call.1} parent=5 // pred_check
        %p1529 = pneg %p1528
      $region70: #{tpu_custom_call.1} parent=5 // pred_check_branch
        %1531 = sbr.rel (%p1529) target = $region72
      $region71: #{tpu_custom_call.1} parent=5 // pred_region
        %s1532 = ssub.s32 %s22, 2
        // Predicated region
        $region73: #{tpu_custom_call.1} parent=71 // pred_check
          %p1533 = pneg %p187
        $region74: #{tpu_custom_call.1} parent=71 // pred_check_branch
          %1535 = sbr.rel (%p1533) target = $region76
        $region75: #{tpu_custom_call.1} parent=71 // pred_region
          %s1536 = sand.u32 %s172, 1
          %s1537 = scalar_lea.sflag [#allocation4], %s1536
          %s1538 = sand.u32 %s172, 1
          %s1539 = smul.addr %s1538, 8
          %s1540 = scalar_lea.vmem [#allocation11], %s1539
          %1541 = dma.done %s1537, 128
        $region76: #{tpu_custom_call.1} parent=71 // pred_fallthru
          _
      $region72: #{tpu_custom_call.1} parent=5 // pred_fallthru
        _
    $region6: #{tpu_custom_call.1} parent=1 // loop_footer
      %s26 = sadd.s32 1, %s22
    $region7: #{tpu_custom_call.1} parent=1 // loop_footer_branch
      %21 = sbr.rel target = $region3
    $region8: #{tpu_custom_call.1} parent=1 // loop_exit
      _
    %1542 = vsyncpa [#allocation3], 1
    %s1543 = scalar_lea.sflag [#allocation3], 1
    %1544 = vsyncpa %s1543, 1
    %1545 = vsyncpa [#allocation6], 1
    %s1546 = scalar_lea.sflag [#allocation6], 1
    %1547 = vsyncpa %s1546, 1
    %1548 = vsyncpa [#allocation9], 1
    %1549 = vsyncpa [#allocation4], 1
    %s1550 = scalar_lea.sflag [#allocation4], 1
    %1551 = vsyncpa %s1550, 1

// kernel: tpu_custom_call.1
$region0: #{tpu_custom_call.1}
  #allocation0 [shape = 'u32[]', space=smem, size = 0x4, offset = 0x4, fixed_abs, tag = 'smem constant byte address 0x4 - core index']
  #allocation1 [shape = 'u32[144,128]{1,0:T(1,128)}', space=vmem, size = 0x12000, scoped, tag = 'internal scratch']
  %s0 = inlined_call_operand.hbm [shape: f32[2,8,32], index: 0, kind: input, shape index: {}]
  %s1 = inlined_call_operand.hbm [shape: f32[2,16,32], index: 1, kind: input, shape index: {}]
  %s2 = inlined_call_operand.hbm [shape: f32[32,32], index: 2, kind: input, shape index: {}]
  %s3 = inlined_call_operand.hbm [shape: f32[32,64], index: 3, kind: input, shape index: {}]
  %s4 = inlined_call_operand.hbm [shape: f32[32,32], index: 4, kind: input, shape index: {}]
  %s5 = inlined_call_operand.vmem [shape: f32[1,32], index: 5, kind: input, shape index: {}]
  %s6 = inlined_call_operand.hbm [shape: f32[2,8,32], index: 6, kind: output, shape index: {}]
  %s7 = sld [smem:[#allocation0]]
  $region77: #{tpu_custom_call.1} parent=0
    _
  %s9 = ssub.s32 1, %s7
  %s10 = scalar_select 0, %s9, %s7
  $region1: #{tpu_custom_call.1} parent=0
    #allocation2 [shape = 'u8[8192]{0}', space=vmem, size = 0x2000, scoped, tag = 'input window, operand 0']
    #allocation3 [shape = 's32[2]{0}', space=sflag, size = 0x8, scoped, tag = 'scoped memory for tpu_custom_call.1']
    #allocation4 [shape = 's32[2]{0}', space=sflag, size = 0x8, scoped, tag = 'scoped memory for tpu_custom_call.1']
    #allocation5 [shape = 'u8[16384]{0}', space=vmem, size = 0x4000, scoped, tag = 'input window, operand 1']
    #allocation6 [shape = 's32[2]{0}', space=sflag, size = 0x8, scoped, tag = 'scoped memory for tpu_custom_call.1']
    #allocation7 [shape = 'u8[16384]{0}', space=vmem, size = 0x4000, scoped, tag = 'input window, operand 2, single buffered']
    #allocation8 [shape = 'u8[16384]{0}', space=vmem, size = 0x4000, scoped, tag = 'input window, operand 3, single buffered']
    #allocation9 [shape = 's32[1]{0}', space=sflag, size = 0x4, scoped, tag = 'scoped memory for tpu_custom_call.1']
    #allocation10 [shape = 'u8[16384]{0}', space=vmem, size = 0x4000, scoped, tag = 'input window, operand 4, single buffered']
    #allocation11 [shape = 'u8[8192]{0}', space=vmem, size = 0x2000, scoped, tag = 'output window, operand 0']
    %11 = vsyncpa [#allocation3], 0
    %s12 = scalar_lea.sflag [#allocation3], 1
    %13 = vsyncpa %s12, 0
    %14 = vsyncpa [#allocation6], 0
    %s15 = scalar_lea.sflag [#allocation6], 1
    %16 = vsyncpa %s15, 0
    %17 = vsyncpa [#allocation9], 0
    %18 = vsyncpa [#allocation4], 0
    %s19 = scalar_lea.sflag [#allocation4], 1
    %20 = vsyncpa %s19, 0
    loop: start=0, step=1, limit=4
    $region2: #{tpu_custom_call.1} parent=1 // loop_pre_header
      _
    $region3: #{tpu_custom_call.1} parent=1 // loop_header
      %s22 = sphi 0, %s26
      %p23 = scmp.ge.s32.totalorder %s22, 4
      %s32 = sphi 0, %s34
      %s35 = sphi 0, %s32
      %s36 = sphi 0, %s35
      %s52 = sphi 0, %s36
      %s58 = sphi 0, %s60
      %s61 = sphi 0, %s58
      %s62 = sphi 0, %s61
      %s78 = sphi 0, %s62
      %s82 = sphi 0, %s82
      %s84 = sphi 0, %s82
      %s85 = sphi 0, %s84
      %s99 = sphi 0, %s85
      %s103 = sphi 0, %s103
      %s105 = sphi 0, %s103
      %s106 = sphi 0, %s105
      %s120 = sphi 0, %s106
      %s124 = sphi 0, %s124
      %s126 = sphi 0, %s124
      %s127 = sphi 0, %s126
      %s141 = sphi 0, %s127
      %s145 = sphi 0, %s145
      %s147 = sphi 0, %s145
      %s148 = sphi 0, %s147
      %s162 = sphi 0, %s148
      %s168 = sphi 0, %s170
      %s171 = sphi 0, %s168
      %s172 = sphi 0, %s171
      %s188 = sphi 0, %s172
    $region4: #{tpu_custom_call.1} parent=1 // loop_header_branch
      %25 = sbr.rel (%p23) target = $region8
    $region5: #{tpu_custom_call.1} parent=1 // loop_body
      %s27 = ssub.s32 %s22, 1
      %s28 = ssub.s32 %s22, 2
      %s29 = sadd.s32 %s22, 1
      %s30 = ssub.s32 %s22, %s29
      %p31 = scmp.eq.s32.totalorder %s30, 0
      %s33 = sadd.s32 %s32, 1
      %s34 = scalar_select %p31, %s32, %s33
      %p37 = pneg %p31
      %p38 = scmp.eq.s32.totalorder %s22, 1
      %p39 = por %p37, %p38
      %p40 = scmp.ne.s32.totalorder %s32, %s35
      %p41 = scmp.eq.s32.totalorder %s22, 0
      %p42 = por %p40, %p41
      %p43 = scmp.ne.s32.totalorder %s32, %s35
      %p44 = scmp.eq.s32.totalorder %s27, 1
      %p45 = por %p43, %p44
      %p46 = scmp.ne.s32.totalorder %s35, %s36
      %p47 = scmp.eq.s32.totalorder %s27, 0
      %p48 = por %p46, %p47
      %p49 = scmp.ne.s32.totalorder %s35, %s36
      %p50 = scmp.eq.s32.totalorder %s28, 1
      %p51 = por %p49, %p50
      %p53 = scmp.ne.s32.totalorder %s36, %s52
      %p54 = scmp.eq.s32.totalorder %s28, 0
      %p55 = por %p53, %p54
      %s56 = ssub.s32 %s22, %s29
      %p57 = scmp.eq.s32.totalorder %s56, 0
      %s59 = sadd.s32 %s58, 1
      %s60 = scalar_select %p57, %s58, %s59
      %p63 = pneg %p57
      %p64 = scmp.eq.s32.totalorder %s22, 1
      %p65 = por %p63, %p64
      %p66 = scmp.ne.s32.totalorder %s58, %s61
      %p67 = scmp.eq.s32.totalorder %s22, 0
      %p68 = por %p66, %p67
      %p69 = scmp.ne.s32.totalorder %s58, %s61
      %p70 = scmp.eq.s32.totalorder %s27, 1
      %p71 = por %p69, %p70
      %p72 = scmp.ne.s32.totalorder %s61, %s62
      %p73 = scmp.eq.s32.totalorder %s27, 0
      %p74 = por %p72, %p73
      %p75 = scmp.ne.s32.totalorder %s61, %s62
      %p76 = scmp.eq.s32.totalorder %s28, 1
      %p77 = por %p75, %p76
      %p79 = scmp.ne.s32.totalorder %s62, %s78
      %p80 = scmp.eq.s32.totalorder %s28, 0
      %p81 = por %p79, %p80
      %s83 = sadd.s32 %s82, 1
      %p86 = scmp.eq.s32.totalorder %s22, 1
      %p87 = scmp.ne.s32.totalorder %s82, %s84
      %p88 = scmp.eq.s32.totalorder %s22, 0
      %p89 = por %p87, %p88
      %p90 = scmp.ne.s32.totalorder %s82, %s84
      %p91 = scmp.eq.s32.totalorder %s27, 1
      %p92 = por %p90, %p91
      %p93 = scmp.ne.s32.totalorder %s84, %s85
      %p94 = scmp.eq.s32.totalorder %s27, 0
      %p95 = por %p93, %p94
      %p96 = scmp.ne.s32.totalorder %s84, %s85
      %p97 = scmp.eq.s32.totalorder %s28, 1
      %p98 = por %p96, %p97
      %p100 = scmp.ne.s32.totalorder %s85, %s99
      %p101 = scmp.eq.s32.totalorder %s28, 0
      %p102 = por %p100, %p101
      %s104 = sadd.s32 %s103, 1
      %p107 = scmp.eq.s32.totalorder %s22, 1
      %p108 = scmp.ne.s32.totalorder %s103, %s105
      %p109 = scmp.eq.s32.totalorder %s22, 0
      %p110 = por %p108, %p109
      %p111 = scmp.ne.s32.totalorder %s103, %s105
      %p112 = scmp.eq.s32.totalorder %s27, 1
      %p113 = por %p111, %p112
      %p114 = scmp.ne.s32.totalorder %s105, %s106
      %p115 = scmp.eq.s32.totalorder %s27, 0
      %p116 = por %p114, %p115
      %p117 = scmp.ne.s32.totalorder %s105, %s106
      %p118 = scmp.eq.s32.totalorder %s28, 1
      %p119 = por %p117, %p118
      %p121 = scmp.ne.s32.totalorder %s106, %s120
      %p122 = scmp.eq.s32.totalorder %s28, 0
      %p123 = por %p121, %p122
      %s125 = sadd.s32 %s124, 1
      %p128 = scmp.eq.s32.totalorder %s22, 1
      %p129 = scmp.ne.s32.totalorder %s124, %s126
      %p130 = scmp.eq.s32.totalorder %s22, 0
      %p131 = por %p129, %p130
      %p132 = scmp.ne.s32.totalorder %s124, %s126
      %p133 = scmp.eq.s32.totalorder %s27, 1
      %p134 = por %p132, %p133
      %p135 = scmp.ne.s32.totalorder %s126, %s127
      %p136 = scmp.eq.s32.totalorder %s27, 0
      %p137 = por %p135, %p136
      %p138 = scmp.ne.s32.totalorder %s126, %s127
      %p139 = scmp.eq.s32.totalorder %s28, 1
      %p140 = por %p138, %p139
      %p142 = scmp.ne.s32.totalorder %s127, %s141
      %p143 = scmp.eq.s32.totalorder %s28, 0
      %p144 = por %p142, %p143
      %s146 = sadd.s32 %s145, 1
      %p149 = scmp.eq.s32.totalorder %s22, 1
      %p150 = scmp.ne.s32.totalorder %s145, %s147
      %p151 = scmp.eq.s32.totalorder %s22, 0
      %p152 = por %p150, %p151
      %p153 = scmp.ne.s32.totalorder %s145, %s147
      %p154 = scmp.eq.s32.totalorder %s27, 1
      %p155 = por %p153, %p154
      %p156 = scmp.ne.s32.totalorder %s147, %s148
      %p157 = scmp.eq.s32.totalorder %s27, 0
      %p158 = por %p156, %p157
      %p159 = scmp.ne.s32.totalorder %s147, %s148
      %p160 = scmp.eq.s32.totalorder %s28, 1
      %p161 = por %p159, %p160
      %p163 = scmp.ne.s32.totalorder %s148, %s162
      %p164 = scmp.eq.s32.totalorder %s28, 0
      %p165 = por %p163, %p164
      %s166 = ssub.s32 %s22, %s29
      %p167 = scmp.eq.s32.totalorder %s166, 0
      %s169 = sadd.s32 %s168, 1
      %s170 = scalar_select %p167, %s168, %s169
      %p173 = pneg %p167
      %p174 = scmp.eq.s32.totalorder %s22, 1
      %p175 = por %p173, %p174
      %p176 = scmp.ne.s32.totalorder %s168, %s171
      %p177 = scmp.eq.s32.totalorder %s22, 0
      %p178 = por %p176, %p177
      %p179 = scmp.ne.s32.totalorder %s168, %s171
      %p180 = scmp.eq.s32.totalorder %s27, 1
      %p181 = por %p179, %p180
      %p182 = scmp.ne.s32.totalorder %s171, %s172
      %p183 = scmp.eq.s32.totalorder %s27, 0
      %p184 = por %p182, %p183
      %p185 = scmp.ne.s32.totalorder %s171, %s172
      %p186 = scmp.eq.s32.totalorder %s28, 1
      %p187 = por %p185, %p186
      %p189 = scmp.ne.s32.totalorder %s172, %s188
      %p190 = scmp.eq.s32.totalorder %s28, 0
      %p191 = por %p189, %p190
      %p192 = scmp.le.s32.totalorder 1, %s22
      %p193 = scmp.lt.s32.totalorder %s22, 3
      %p194 = pnand %p192, %p193
      %p195 = pneg %p194
      // Predicated region
      $region9: #{tpu_custom_call.1} parent=5 // pred_check
        _
      $region10: #{tpu_custom_call.1} parent=5 // pred_check_branch
        %197 = sbr.rel (%p194) target = $region12
      $region11: #{tpu_custom_call.1} parent=5 // pred_region
        %s198 = ssub.s32 %s22, 1
        // Predicated region
        $region13: #{tpu_custom_call.1} parent=11 // pred_check
          %p199 = pneg %p95
        $region14: #{tpu_custom_call.1} parent=11 // pred_check_branch
          %201 = sbr.rel (%p199) target = $region16
        $region15: #{tpu_custom_call.1} parent=11 // pred_region
          %s203 = ssub.s32 512, 512
          %204 = vsyncadd [#allocation6], %s203
          %s205 = sshll.u32 [#allocation7], 4
          %s206 = int_to_ptr.vmem [resolvable:$true] %s205
          %211 = dma.hbm_to_vmem [thread:$0]  %s2, 512, %s206, [#allocation6], 128, 128, 8
        $region16: #{tpu_custom_call.1} parent=11 // pred_fallthru
          _
        // Predicated region
        $region17: #{tpu_custom_call.1} parent=11 // pred_check
          %p212 = pneg %p116
        $region18: #{tpu_custom_call.1} parent=11 // pred_check_branch
          %214 = sbr.rel (%p212) target = $region20
        $region19: #{tpu_custom_call.1} parent=11 // pred_region
          %s216 = ssub.s32 512, 512
          %217 = vsyncadd [#allocation9], %s216
          %s218 = sshll.u32 [#allocation8], 4
          %s219 = int_to_ptr.vmem [resolvable:$true] %s218
          %224 = dma.hbm_to_vmem [thread:$0]  %s3, 512, %s219, [#allocation9], 128, 128, 8
        $region20: #{tpu_custom_call.1} parent=11 // pred_fallthru
          _
        // Predicated region
        $region21: #{tpu_custom_call.1} parent=11 // pred_check
          %p225 = pneg %p137
        $region22: #{tpu_custom_call.1} parent=11 // pred_check_branch
          %227 = sbr.rel (%p225) target = $region24
        $region23: #{tpu_custom_call.1} parent=11 // pred_region
          %s229 = ssub.s32 512, 512
          %230 = vsyncadd [#allocation9], %s229
          %s231 = sshll.u32 [#allocation10], 4
          %s232 = int_to_ptr.vmem [resolvable:$true] %s231
          %237 = dma.hbm_to_vmem [thread:$0]  %s4, 512, %s232, [#allocation9], 128, 128, 8
        $region24: #{tpu_custom_call.1} parent=11 // pred_fallthru
          _
        // Predicated region
        $region25: #{tpu_custom_call.1} parent=11 // pred_check
          %p238 = pneg %p158
        $region26: #{tpu_custom_call.1} parent=11 // pred_check_branch
          %240 = sbr.rel (%p238) target = $region28
        $region27: #{tpu_custom_call.1} parent=11 // pred_region
          _
        $region28: #{tpu_custom_call.1} parent=11 // pred_fallthru
          _
      $region12: #{tpu_custom_call.1} parent=5 // pred_fallthru
        _
      %p241 = scmp.lt.s32.totalorder %s22, 2
      // Predicated region
      $region29: #{tpu_custom_call.1} parent=5 // pred_check
        %p242 = pneg %p241
      $region30: #{tpu_custom_call.1} parent=5 // pred_check_branch
        %244 = sbr.rel (%p242) target = $region32
      $region31: #{tpu_custom_call.1} parent=5 // pred_region
        // Predicated region
        $region33: #{tpu_custom_call.1} parent=31 // pred_check
          %p245 = pneg %p42
        $region34: #{tpu_custom_call.1} parent=31 // pred_check_branch
          %247 = sbr.rel (%p245) target = $region36
        $region35: #{tpu_custom_call.1} parent=31 // pred_region
          %s248 = sand.u32 %s32, 1
          %s249 = scalar_lea.sflag [#allocation3], %s248
          %s250 = sand.u32 %s32, 1
          %s251 = smul.addr %s250, 8
          %s252 = scalar_lea.vmem [#allocation2], %s251
          %s254 = ssub.s32 128, 128
          %255 = vsyncadd %s249, %s254
          %s256 = smul.addr %s22, 128
          %s257 = scalar_lea.hbm %s0, %s256
          %s259 = sshll.u32 %s252, 4
          %s260 = int_to_ptr.vmem [resolvable:$true] %s259
          %262 = dma.hbm_to_vmem [thread:$0]  %s257, 128, %s260, %s249
        $region36: #{tpu_custom_call.1} parent=31 // pred_fallthru
          _
        // Predicated region
        $region37: #{tpu_custom_call.1} parent=31 // pred_check
          %p263 = pneg %p68
        $region38: #{tpu_custom_call.1} parent=31 // pred_check_branch
          %265 = sbr.rel (%p263) target = $region40
        $region39: #{tpu_custom_call.1} parent=31 // pred_region
          %s266 = sand.u32 %s22, 1
          %s267 = scalar_lea.sflag [#allocation6], %s266
          %s268 = sand.u32 %s58, 1
          %s269 = smul.addr %s268, 16
          %s270 = scalar_lea.vmem [#allocation5], %s269
          %s272 = ssub.s32 256, 256
          %273 = vsyncadd %s267, %s272
          %s274 = smul.addr %s22, 2
          %s275 = smul.addr %s274, 128
          %s276 = scalar_lea.hbm %s1, %s275
          %s277 = sshll.u32 %s270, 4
          %s278 = int_to_ptr.vmem [resolvable:$true] %s277
          %283 = dma.hbm_to_vmem [thread:$0]  %s276, 256, %s278, %s267, 128, 128, 8
        $region40: #{tpu_custom_call.1} parent=31 // pred_fallthru
          _
      $region32: #{tpu_custom_call.1} parent=5 // pred_fallthru
        _
      %p284 = scmp.le.s32.totalorder 1, %s22
      %p285 = scmp.lt.s32.totalorder %s22, 3
      %p286 = pnand %p284, %p285
      %p287 = pneg %p286
      // Predicated region
      $region41: #{tpu_custom_call.1} parent=5 // pred_check
        _
      $region42: #{tpu_custom_call.1} parent=5 // pred_check_branch
        %289 = sbr.rel (%p286) target = $region44
      $region43: #{tpu_custom_call.1} parent=5 // pred_region
        %s290 = ssub.s32 %s22, 1
        %s291 = sand.u32 %s35, 1
        %s292 = scalar_lea.sflag [#allocation3], %s291
        %s293 = sand.u32 %s35, 1
        %s294 = smul.addr %s293, 8
        %s295 = scalar_lea.vmem [#allocation2], %s294
        // Predicated region
        $region45: #{tpu_custom_call.1} parent=43 // pred_check
          %p296 = pneg %p48
        $region46: #{tpu_custom_call.1} parent=43 // pred_check_branch
          %298 = sbr.rel (%p296) target = $region48
        $region47: #{tpu_custom_call.1} parent=43 // pred_region
          %299 = dma.done %s292, 128
        $region48: #{tpu_custom_call.1} parent=43 // pred_fallthru
          _
        %s300 = sand.u32 %s27, 1
        %s301 = scalar_lea.sflag [#allocation6], %s300
        %s302 = sand.u32 %s61, 1
        %s303 = smul.addr %s302, 16
        %s304 = scalar_lea.vmem [#allocation5], %s303
        // Predicated region
        $region49: #{tpu_custom_call.1} parent=43 // pred_check
          %p305 = pneg %p74
        $region50: #{tpu_custom_call.1} parent=43 // pred_check_branch
          %307 = sbr.rel (%p305) target = $region52
        $region51: #{tpu_custom_call.1} parent=43 // pred_region
          %308 = dma.done %s301, 256
        $region52: #{tpu_custom_call.1} parent=43 // pred_fallthru
          _
        // Predicated region
        $region53: #{tpu_custom_call.1} parent=43 // pred_check
          %p309 = pneg %p95
        $region54: #{tpu_custom_call.1} parent=43 // pred_check_branch
          %311 = sbr.rel (%p309) target = $region56
        $region55: #{tpu_custom_call.1} parent=43 // pred_region
          %312 = dma.done [#allocation6], 512
        $region56: #{tpu_custom_call.1} parent=43 // pred_fallthru
          _
        // Predicated region
        $region57: #{tpu_custom_call.1} parent=43 // pred_check
          %p313 = pneg %p116
        $region58: #{tpu_custom_call.1} parent=43 // pred_check_branch
          %315 = sbr.rel (%p313) target = $region60
        $region59: #{tpu_custom_call.1} parent=43 // pred_region
          %316 = dma.done [#allocation9], 512
        $region60: #{tpu_custom_call.1} parent=43 // pred_fallthru
          _
        // Predicated region
        $region61: #{tpu_custom_call.1} parent=43 // pred_check
          %p317 = pneg %p137
        $region62: #{tpu_custom_call.1} parent=43 // pred_check_branch
          %319 = sbr.rel (%p317) target = $region64
        $region63: #{tpu_custom_call.1} parent=43 // pred_region
          %320 = dma.done [#allocation9], 512
        $region64: #{tpu_custom_call.1} parent=43 // pred_fallthru
          _
        %s321 = sand.u32 %s35, 1
        %s322 = scalar_lea.sflag [#allocation3], %s321
        %s323 = sand.u32 %s35, 1
        %s324 = smul.addr %s323, 8
        %s325 = scalar_lea.vmem [#allocation2], %s324
        %p326 = pneg %p48
        %p327 = pneg %p45
        %s328 = sand.u32 %s27, 1
        %s329 = scalar_lea.sflag [#allocation6], %s328
        %s330 = sand.u32 %s61, 1
        %s331 = smul.addr %s330, 16
        %s332 = scalar_lea.vmem [#allocation5], %s331
        %p333 = pneg %p74
        %p334 = pneg %p71
        %p335 = pneg %p95
        %p336 = pneg %p92
        %p337 = pneg %p116
        %p338 = pneg %p113
        %p339 = pneg %p137
        %p340 = pneg %p134
        %p341 = pneg %p158
        %p342 = pneg %p155
        %p343 = pneg %p184
        %p344 = pneg %p181
        %s345 = sand.u32 %s171, 1
        %s346 = scalar_lea.sflag [#allocation4], %s345
        %s347 = sand.u32 %s171, 1
        %s348 = smul.addr %s347, 8
        %s349 = scalar_lea.vmem [#allocation11], %s348
        %v350 = vld [vmem:[%s295] sm:$0xff]
        %v351 = vld [vmem:[%s304] sm:$0xff]
        %v352 = vld [vmem:[%s304 + $0x8] sm:$0xff]
        %v353 = vld [vmem:[#allocation7] sm:$0xff]
        %v354 = vld [vmem:[#allocation7 + $0x8] sm:$0xff]
        %v355 = vld [vmem:[#allocation7 + $0x10] sm:$0xff]
        %v356 = vld [vmem:[#allocation7 + $0x18] sm:$0xff]
        %vm357 = vcmask 261120
        %v359 = vsel %vm357, %v350, 0
        %361 = vmatprep.subr.mxu0 0.0
        %362 = vmatpush1.msra.mxu0 0.0
        %363 = vmatprep.subr.mxu0 0.0
        %364 = vmatpush1.msra.mxu0 0.0
        %365 = vmatprep.subr.mxu0 0.0
        %366 = vmatpush1.msra.mxu0 0.0
        %367 = vmatprep.subr.mxu0 0.0
        %368 = vmatpush1.msra.mxu0 0.0
        %369 = vmatprep.subr.mxu0 0.0
        %370 = vmatpush1.msra.mxu0 0.0
        %371 = vmatprep.subr.mxu0 0.0
        %372 = vmatpush1.msra.mxu0 0.0
        %373 = vmatprep.subr.mxu0 0.0
        %374 = vmatpush1.msra.mxu0 0.0
        %375 = vmatprep.subr.mxu0 0.0
        %376 = vmatpush1.msra.mxu0 0.0
        %377 = vmatprep.subr.mxu0 0.0
        %378 = vmatpush1.msra.mxu0 0.0
        %379 = vmatprep.subr.mxu0 0.0
        %380 = vmatpush1.msra.mxu0 0.0
        %381 = vmatprep.subr.mxu0 0.0
        %382 = vmatpush1.msra.mxu0 0.0
        %383 = vmatprep.subr.mxu0 0.0
        %384 = vmatpush1.msra.mxu0 0.0
        %385 = vmatprep.subr.mxu0 0.0
        %386 = vmatpush1.msra.mxu0 %v356
        %387 = vmatprep.subr.mxu0 0.0
        %388 = vmatpush1.msra.mxu0 %v355
        %389 = vmatprep.subr.mxu0 0.0
        %390 = vmatpush1.msra.mxu0 %v354
        %391 = vmatprep.subr.mxu0 0.0
        %392 = vmatpush1.msra.mxu0 %v353
        %393 = vmatprep.subr.mxu0 0.0
        %394 = vmatpush2.msra.mxu0 0.0
        %395 = vmatprep.subr.mxu0 0.0
        %396 = vmatpush2.msra.mxu0 0.0
        %397 = vmatprep.subr.mxu0 0.0
        %398 = vmatpush2.msra.mxu0 0.0
        %399 = vmatprep.subr.mxu0 0.0
        %400 = vmatpush2.msra.mxu0 0.0
        %401 = vmatprep.subr.mxu0 0.0
        %402 = vmatpush2.msra.mxu0 0.0
        %403 = vmatprep.subr.mxu0 0.0
        %404 = vmatpush2.msra.mxu0 0.0
        %405 = vmatprep.subr.mxu0 0.0
        %406 = vmatpush2.msra.mxu0 0.0
        %407 = vmatprep.subr.mxu0 0.0
        %408 = vmatpush2.msra.mxu0 0.0
        %409 = vmatprep.subr.mxu0 0.0
        %410 = vmatpush2.msra.mxu0 0.0
        %411 = vmatprep.subr.mxu0 0.0
        %412 = vmatpush2.msra.mxu0 0.0
        %413 = vmatprep.subr.mxu0 0.0
        %414 = vmatpush2.msra.mxu0 0.0
        %415 = vmatprep.subr.mxu0 0.0
        %416 = vmatpush2.msra.mxu0 0.0
        %417 = vmatprep.subr.mxu0 0.0
        %418 = vmatpush2.msra.mxu0 0.0
        %419 = vmatprep.subr.mxu0 0.0
        %420 = vmatpush2.msra.mxu0 0.0
        %421 = vmatprep.subr.mxu0 0.0
        %422 = vmatpush2.msra.mxu0 0.0
        %423 = vmatprep.subr.mxu0 0.0
        %424 = vmatpush2.msra.mxu0 0.0
        %425 = vmatprep.mubr.f32.mxu0 0.0
        %426 = vmatmul.mubr.f32.gmra.mxu0 %v359
        %v427 = vpop.f32.mrf.mxu0
        %v428 = vadd.f32 0.0, %v427
        %v429 = vpop.f32.mrf.mxu0
        %430 = vdwg.mxu0
        %v431 = vld [vmem:[#allocation8] sm:$0xff]
        %v432 = vld [vmem:[#allocation8 + $0x8] sm:$0xff]
        %v433 = vld [vmem:[#allocation8 + $0x10] sm:$0xff]
        %v434 = vld [vmem:[#allocation8 + $0x18] sm:$0xff]
        %v436 = vsel %vm357, %v351, 0
        %v439 = vsel %vm357, %v352, 0
        %441 = vmatprep.subr.mxu0 0.0
        %442 = vmatpush1.msra.mxu0 0.0
        %443 = vmatprep.subr.mxu0 0.0
        %444 = vmatpush1.msra.mxu0 0.0
        %445 = vmatprep.subr.mxu0 0.0
        %446 = vmatpush1.msra.mxu0 0.0
        %447 = vmatprep.subr.mxu0 0.0
        %448 = vmatpush1.msra.mxu0 0.0
        %449 = vmatprep.subr.mxu0 0.0
        %450 = vmatpush1.msra.mxu0 0.0
        %451 = vmatprep.subr.mxu0 0.0
        %452 = vmatpush1.msra.mxu0 0.0
        %453 = vmatprep.subr.mxu0 0.0
        %454 = vmatpush1.msra.mxu0 0.0
        %455 = vmatprep.subr.mxu0 0.0
        %456 = vmatpush1.msra.mxu0 0.0
        %457 = vmatprep.subr.mxu0 0.0
        %458 = vmatpush1.msra.mxu0 0.0
        %459 = vmatprep.subr.mxu0 0.0
        %460 = vmatpush1.msra.mxu0 0.0
        %461 = vmatprep.subr.mxu0 0.0
        %462 = vmatpush1.msra.mxu0 0.0
        %463 = vmatprep.subr.mxu0 0.0
        %464 = vmatpush1.msra.mxu0 0.0
        %465 = vmatprep.subr.mxu0 0.0
        %466 = vmatpush1.msra.mxu0 %v434
        %467 = vmatprep.subr.mxu0 0.0
        %468 = vmatpush1.msra.mxu0 %v433
        %469 = vmatprep.subr.mxu0 0.0
        %470 = vmatpush1.msra.mxu0 %v432
        %471 = vmatprep.subr.mxu0 0.0
        %472 = vmatpush1.msra.mxu0 %v431
        %473 = vmatprep.subr.mxu0 0.0
        %474 = vmatpush2.msra.mxu0 0.0
        %475 = vmatprep.subr.mxu0 0.0
        %476 = vmatpush2.msra.mxu0 0.0
        %477 = vmatprep.subr.mxu0 0.0
        %478 = vmatpush2.msra.mxu0 0.0
        %479 = vmatprep.subr.mxu0 0.0
        %480 = vmatpush2.msra.mxu0 0.0
        %481 = vmatprep.subr.mxu0 0.0
        %482 = vmatpush2.msra.mxu0 0.0
        %483 = vmatprep.subr.mxu0 0.0
        %484 = vmatpush2.msra.mxu0 0.0
        %485 = vmatprep.subr.mxu0 0.0
        %486 = vmatpush2.msra.mxu0 0.0
        %487 = vmatprep.subr.mxu0 0.0
        %488 = vmatpush2.msra.mxu0 0.0
        %489 = vmatprep.subr.mxu0 0.0
        %490 = vmatpush2.msra.mxu0 0.0
        %491 = vmatprep.subr.mxu0 0.0
        %492 = vmatpush2.msra.mxu0 0.0
        %493 = vmatprep.subr.mxu0 0.0
        %494 = vmatpush2.msra.mxu0 0.0
        %495 = vmatprep.subr.mxu0 0.0
        %496 = vmatpush2.msra.mxu0 0.0
        %497 = vmatprep.subr.mxu0 0.0
        %498 = vmatpush2.msra.mxu0 0.0
        %499 = vmatprep.subr.mxu0 0.0
        %500 = vmatpush2.msra.mxu0 0.0
        %501 = vmatprep.subr.mxu0 0.0
        %502 = vmatpush2.msra.mxu0 0.0
        %503 = vmatprep.subr.mxu0 0.0
        %504 = vmatpush2.msra.mxu0 0.0
        %505 = vmatprep.mubr.f32.mxu0 0.0
        %506 = vmatmul.mubr.f32.gmra.mxu0 %v436
        %v507 = vpop.f32.mrf.mxu0
        %v508 = vadd.f32 0.0, %v507
        %v509 = vpop.f32.mrf.mxu0
        %510 = vmatprep.mubr.f32.mxu0 0.0
        %511 = vmatmul.mubr.f32.gmra.mxu0 %v439
        %v512 = vpop.f32.mrf.mxu0
        %v513 = vadd.f32 0.0, %v512
        %v514 = vpop.f32.mrf.mxu0
        %515 = vdwg.mxu0
        %vm516 = vcmask 64512
        %v518 = vsel %vm516, %v428, 0
        %v521 = vsel %vm516, %v508, 0
        %v524 = vsel %vm516, %v513, 0
        %526 = vmatprep.subr.mxu0 0.0
        %527 = vmatpush1.xpose.msra.mxu0 0.0
        %528 = vmatprep.subr.mxu0 0.0
        %529 = vmatpush1.xpose.msra.mxu0 0.0
        %530 = vmatprep.subr.mxu0 0.0
        %531 = vmatpush1.xpose.msra.mxu0 0.0
        %532 = vmatprep.subr.mxu0 0.0
        %533 = vmatpush1.xpose.msra.mxu0 0.0
        %534 = vmatprep.subr.mxu0 0.0
        %535 = vmatpush1.xpose.msra.mxu0 0.0
        %536 = vmatprep.subr.mxu0 0.0
        %537 = vmatpush1.xpose.msra.mxu0 0.0
        %538 = vmatprep.subr.mxu0 0.0
        %539 = vmatpush1.xpose.msra.mxu0 0.0
        %540 = vmatprep.subr.mxu0 0.0
        %541 = vmatpush1.xpose.msra.mxu0 0.0
        %542 = vmatprep.subr.mxu0 0.0
        %543 = vmatpush1.xpose.msra.mxu0 0.0
        %544 = vmatprep.subr.mxu0 0.0
        %545 = vmatpush1.xpose.msra.mxu0 0.0
        %546 = vmatprep.subr.mxu0 0.0
        %547 = vmatpush1.xpose.msra.mxu0 0.0
        %548 = vmatprep.subr.mxu0 0.0
        %549 = vmatpush1.xpose.msra.mxu0 0.0
        %550 = vmatprep.subr.mxu0 0.0
        %551 = vmatpush1.xpose.msra.mxu0 0.0
        %552 = vmatprep.subr.mxu0 0.0
        %553 = vmatpush1.xpose.msra.mxu0 0.0
        %554 = vmatprep.subr.mxu0 0.0
        %555 = vmatpush1.xpose.msra.mxu0 %v524
        %556 = vmatprep.subr.mxu0 0.0
        %557 = vmatpush1.xpose.msra.mxu0 %v521
        %558 = vmatprep.subr.mxu0 0.0
        %559 = vmatpush2.xpose.msra.mxu0 0.0
        %560 = vmatprep.subr.mxu0 0.0
        %561 = vmatpush2.xpose.msra.mxu0 0.0
        %562 = vmatprep.subr.mxu0 0.0
        %563 = vmatpush2.xpose.msra.mxu0 0.0
        %564 = vmatprep.subr.mxu0 0.0
        %565 = vmatpush2.xpose.msra.mxu0 0.0
        %566 = vmatprep.subr.mxu0 0.0
        %567 = vmatpush2.xpose.msra.mxu0 0.0
        %568 = vmatprep.subr.mxu0 0.0
        %569 = vmatpush2.xpose.msra.mxu0 0.0
        %570 = vmatprep.subr.mxu0 0.0
        %571 = vmatpush2.xpose.msra.mxu0 0.0
        %572 = vmatprep.subr.mxu0 0.0
        %573 = vmatpush2.xpose.msra.mxu0 0.0
        %574 = vmatprep.subr.mxu0 0.0
        %575 = vmatpush2.xpose.msra.mxu0 0.0
        %576 = vmatprep.subr.mxu0 0.0
        %577 = vmatpush2.xpose.msra.mxu0 0.0
        %578 = vmatprep.subr.mxu0 0.0
        %579 = vmatpush2.xpose.msra.mxu0 0.0
        %580 = vmatprep.subr.mxu0 0.0
        %581 = vmatpush2.xpose.msra.mxu0 0.0
        %582 = vmatprep.subr.mxu0 0.0
        %583 = vmatpush2.xpose.msra.mxu0 0.0
        %584 = vmatprep.subr.mxu0 0.0
        %585 = vmatpush2.xpose.msra.mxu0 0.0
        %586 = vmatprep.subr.mxu0 0.0
        %587 = vmatpush2.xpose.msra.mxu0 0.0
        %588 = vmatprep.subr.mxu0 0.0
        %589 = vmatpush2.xpose.msra.mxu0 0.0
        %590 = vmatprep.mubr.f32.mxu0 0.0
        %591 = vmatmul.mubr.f32.gmra.mxu0 %v518
        %v592 = vpop.f32.mrf.mxu0
        %v593 = vadd.f32 0.0, %v592
        %v594 = vpop.f32.mrf.mxu0
        %595 = vdwg.mxu0
        %vm596 = vcmask 130048
        %v597 = vsel %vm596, %v593, -inf
        %598 = vmax.xlane.f32.xlu0 %v597
        %v599 = vpop.xlane.xlu0 %598
        %v600 = vsub.f32 %v593, %v599
        %v601 = vmul.f32 %v600, 1.442695
        %v602 = vpow.pop %v601
        %v603 = vsel %vm596, %v602, 0.0
        %604 = vadd.xlane.f32.xlu0 %v603
        %v605 = vpop.xlane.xlu0 %604
        %606 = vrot.lane.b32.xlu0 %v508, 96
        %v607 = vpop.permute.xlu0 %606
        %608 = vrot.lane.b32.xlu0 %v513, 96
        %v609 = vpop.permute.xlu0 %608
        %v613 = vsel %vm596, %v602, 0
        %615 = vmatprep.subr.mxu0 0.0
        %616 = vmatpush1.msra.mxu0 0.0
        %617 = vmatprep.subr.mxu0 0.0
        %618 = vmatpush1.msra.mxu0 0.0
        %619 = vmatprep.subr.mxu0 0.0
        %620 = vmatpush1.msra.mxu0 0.0
        %621 = vmatprep.subr.mxu0 0.0
        %622 = vmatpush1.msra.mxu0 0.0
        %623 = vmatprep.subr.mxu0 0.0
        %624 = vmatpush1.msra.mxu0 0.0
        %625 = vmatprep.subr.mxu0 0.0
        %626 = vmatpush1.msra.mxu0 0.0
        %627 = vmatprep.subr.mxu0 0.0
        %628 = vmatpush1.msra.mxu0 0.0
        %629 = vmatprep.subr.mxu0 0.0
        %630 = vmatpush1.msra.mxu0 0.0
        %631 = vmatprep.subr.mxu0 0.0
        %632 = vmatpush1.msra.mxu0 0.0
        %633 = vmatprep.subr.mxu0 0.0
        %634 = vmatpush1.msra.mxu0 0.0
        %635 = vmatprep.subr.mxu0 0.0
        %636 = vmatpush1.msra.mxu0 0.0
        %637 = vmatprep.subr.mxu0 0.0
        %638 = vmatpush1.msra.mxu0 0.0
        %639 = vmatprep.subr.mxu0 0.0
        %640 = vmatpush1.msra.mxu0 0.0
        %641 = vmatprep.subr.mxu0 0.0
        %642 = vmatpush1.msra.mxu0 0.0
        %643 = vmatprep.subr.mxu0 0.0
        %644 = vmatpush1.msra.mxu0 %v609
        %645 = vmatprep.subr.mxu0 0.0
        %646 = vmatpush1.msra.mxu0 %v607
        %647 = vmatprep.subr.mxu0 0.0
        %648 = vmatpush2.msra.mxu0 0.0
        %649 = vmatprep.subr.mxu0 0.0
        %650 = vmatpush2.msra.mxu0 0.0
        %651 = vmatprep.subr.mxu0 0.0
        %652 = vmatpush2.msra.mxu0 0.0
        %653 = vmatprep.subr.mxu0 0.0
        %654 = vmatpush2.msra.mxu0 0.0
        %655 = vmatprep.subr.mxu0 0.0
        %656 = vmatpush2.msra.mxu0 0.0
        %657 = vmatprep.subr.mxu0 0.0
        %658 = vmatpush2.msra.mxu0 0.0
        %659 = vmatprep.subr.mxu0 0.0
        %660 = vmatpush2.msra.mxu0 0.0
        %661 = vmatprep.subr.mxu0 0.0
        %662 = vmatpush2.msra.mxu0 0.0
        %663 = vmatprep.subr.mxu0 0.0
        %664 = vmatpush2.msra.mxu0 0.0
        %665 = vmatprep.subr.mxu0 0.0
        %666 = vmatpush2.msra.mxu0 0.0
        %667 = vmatprep.subr.mxu0 0.0
        %668 = vmatpush2.msra.mxu0 0.0
        %669 = vmatprep.subr.mxu0 0.0
        %670 = vmatpush2.msra.mxu0 0.0
        %671 = vmatprep.subr.mxu0 0.0
        %672 = vmatpush2.msra.mxu0 0.0
        %673 = vmatprep.subr.mxu0 0.0
        %674 = vmatpush2.msra.mxu0 0.0
        %675 = vmatprep.subr.mxu0 0.0
        %676 = vmatpush2.msra.mxu0 0.0
        %677 = vmatprep.subr.mxu0 0.0
        %678 = vmatpush2.msra.mxu0 0.0
        %679 = vmatprep.mubr.f32.mxu0 0.0
        %680 = vmatmul.mubr.f32.gmra.mxu0 %v613
        %v681 = vpop.f32.mrf.mxu0
        %v682 = vadd.f32 0.0, %v681
        %v683 = vpop.f32.mrf.mxu0
        %684 = vdwg.mxu0
        %v685 = vrcp.pop %v605
        %v686 = vmul.f32 %v682, %v685
        %v687 = vld [vmem:[#allocation10] sm:$0xff]
        %688 = vrot.lane.b32.xlu0 %v428, 120
        %v689 = vpop.permute.xlu0 %688
        %690 = vrot.lane.b32.xlu0 %v508, 120
        %v691 = vpop.permute.xlu0 %690
        %692 = vrot.lane.b32.xlu0 %v513, 120
        %v693 = vpop.permute.xlu0 %692
        %v694 = vsel %vm516, %v689, 0
        %v696 = vsel %vm516, %v691, 0
        %v698 = vsel %vm516, %v693, 0
        %700 = vmatprep.subr.mxu0 0.0
        %701 = vmatpush1.xpose.msra.mxu0 0.0
        %702 = vmatprep.subr.mxu0 0.0
        %703 = vmatpush1.xpose.msra.mxu0 0.0
        %704 = vmatprep.subr.mxu0 0.0
        %705 = vmatpush1.xpose.msra.mxu0 0.0
        %706 = vmatprep.subr.mxu0 0.0
        %707 = vmatpush1.xpose.msra.mxu0 0.0
        %708 = vmatprep.subr.mxu0 0.0
        %709 = vmatpush1.xpose.msra.mxu0 0.0
        %710 = vmatprep.subr.mxu0 0.0
        %711 = vmatpush1.xpose.msra.mxu0 0.0
        %712 = vmatprep.subr.mxu0 0.0
        %713 = vmatpush1.xpose.msra.mxu0 0.0
        %714 = vmatprep.subr.mxu0 0.0
        %715 = vmatpush1.xpose.msra.mxu0 0.0
        %716 = vmatprep.subr.mxu0 0.0
        %717 = vmatpush1.xpose.msra.mxu0 0.0
        %718 = vmatprep.subr.mxu0 0.0
        %719 = vmatpush1.xpose.msra.mxu0 0.0
        %720 = vmatprep.subr.mxu0 0.0
        %721 = vmatpush1.xpose.msra.mxu0 0.0
        %722 = vmatprep.subr.mxu0 0.0
        %723 = vmatpush1.xpose.msra.mxu0 0.0
        %724 = vmatprep.subr.mxu0 0.0
        %725 = vmatpush1.xpose.msra.mxu0 0.0
        %726 = vmatprep.subr.mxu0 0.0
        %727 = vmatpush1.xpose.msra.mxu0 0.0
        %728 = vmatprep.subr.mxu0 0.0
        %729 = vmatpush1.xpose.msra.mxu0 %v698
        %730 = vmatprep.subr.mxu0 0.0
        %731 = vmatpush1.xpose.msra.mxu0 %v696
        %732 = vmatprep.subr.mxu0 0.0
        %733 = vmatpush2.xpose.msra.mxu0 0.0
        %734 = vmatprep.subr.mxu0 0.0
        %735 = vmatpush2.xpose.msra.mxu0 0.0
        %736 = vmatprep.subr.mxu0 0.0
        %737 = vmatpush2.xpose.msra.mxu0 0.0
        %738 = vmatprep.subr.mxu0 0.0
        %739 = vmatpush2.xpose.msra.mxu0 0.0
        %740 = vmatprep.subr.mxu0 0.0
        %741 = vmatpush2.xpose.msra.mxu0 0.0
        %742 = vmatprep.subr.mxu0 0.0
        %743 = vmatpush2.xpose.msra.mxu0 0.0
        %744 = vmatprep.subr.mxu0 0.0
        %745 = vmatpush2.xpose.msra.mxu0 0.0
        %746 = vmatprep.subr.mxu0 0.0
        %747 = vmatpush2.xpose.msra.mxu0 0.0
        %748 = vmatprep.subr.mxu0 0.0
        %749 = vmatpush2.xpose.msra.mxu0 0.0
        %750 = vmatprep.subr.mxu0 0.0
        %751 = vmatpush2.xpose.msra.mxu0 0.0
        %752 = vmatprep.subr.mxu0 0.0
        %753 = vmatpush2.xpose.msra.mxu0 0.0
        %754 = vmatprep.subr.mxu0 0.0
        %755 = vmatpush2.xpose.msra.mxu0 0.0
        %756 = vmatprep.subr.mxu0 0.0
        %757 = vmatpush2.xpose.msra.mxu0 0.0
        %758 = vmatprep.subr.mxu0 0.0
        %759 = vmatpush2.xpose.msra.mxu0 0.0
        %760 = vmatprep.subr.mxu0 0.0
        %761 = vmatpush2.xpose.msra.mxu0 0.0
        %762 = vmatprep.subr.mxu0 0.0
        %763 = vmatpush2.xpose.msra.mxu0 0.0
        %764 = vmatprep.mubr.f32.mxu0 0.0
        %765 = vmatmul.mubr.f32.gmra.mxu0 %v694
        %v766 = vpop.f32.mrf.mxu0
        %v767 = vadd.f32 0.0, %v766
        %v768 = vpop.f32.mrf.mxu0
        %769 = vdwg.mxu0
        %v770 = vsel %vm596, %v767, -inf
        %771 = vmax.xlane.f32.xlu0 %v770
        %v772 = vpop.xlane.xlu0 %771
        %v773 = vsub.f32 %v767, %v772
        %v774 = vmul.f32 %v773, 1.442695
        %v775 = vpow.pop %v774
        %v776 = vsel %vm596, %v775, 0.0
        %777 = vadd.xlane.f32.xlu0 %v776
        %v778 = vpop.xlane.xlu0 %777
        %779 = vrot.lane.b32.xlu0 %v508, 88
        %v780 = vpop.permute.xlu0 %779
        %781 = vrot.lane.b32.xlu0 %v513, 88
        %v782 = vpop.permute.xlu0 %781
        %v786 = vsel %vm596, %v775, 0
        %788 = vmatprep.subr.mxu0 0.0
        %789 = vmatpush1.msra.mxu0 0.0
        %790 = vmatprep.subr.mxu0 0.0
        %791 = vmatpush1.msra.mxu0 0.0
        %792 = vmatprep.subr.mxu0 0.0
        %793 = vmatpush1.msra.mxu0 0.0
        %794 = vmatprep.subr.mxu0 0.0
        %795 = vmatpush1.msra.mxu0 0.0
        %796 = vmatprep.subr.mxu0 0.0
        %797 = vmatpush1.msra.mxu0 0.0
        %798 = vmatprep.subr.mxu0 0.0
        %799 = vmatpush1.msra.mxu0 0.0
        %800 = vmatprep.subr.mxu0 0.0
        %801 = vmatpush1.msra.mxu0 0.0
        %802 = vmatprep.subr.mxu0 0.0
        %803 = vmatpush1.msra.mxu0 0.0
        %804 = vmatprep.subr.mxu0 0.0
        %805 = vmatpush1.msra.mxu0 0.0
        %806 = vmatprep.subr.mxu0 0.0
        %807 = vmatpush1.msra.mxu0 0.0
        %808 = vmatprep.subr.mxu0 0.0
        %809 = vmatpush1.msra.mxu0 0.0
        %810 = vmatprep.subr.mxu0 0.0
        %811 = vmatpush1.msra.mxu0 0.0
        %812 = vmatprep.subr.mxu0 0.0
        %813 = vmatpush1.msra.mxu0 0.0
        %814 = vmatprep.subr.mxu0 0.0
        %815 = vmatpush1.msra.mxu0 0.0
        %816 = vmatprep.subr.mxu0 0.0
        %817 = vmatpush1.msra.mxu0 %v782
        %818 = vmatprep.subr.mxu0 0.0
        %819 = vmatpush1.msra.mxu0 %v780
        %820 = vmatprep.subr.mxu0 0.0
        %821 = vmatpush2.msra.mxu0 0.0
        %822 = vmatprep.subr.mxu0 0.0
        %823 = vmatpush2.msra.mxu0 0.0
        %824 = vmatprep.subr.mxu0 0.0
        %825 = vmatpush2.msra.mxu0 0.0
        %826 = vmatprep.subr.mxu0 0.0
        %827 = vmatpush2.msra.mxu0 0.0
        %828 = vmatprep.subr.mxu0 0.0
        %829 = vmatpush2.msra.mxu0 0.0
        %830 = vmatprep.subr.mxu0 0.0
        %831 = vmatpush2.msra.mxu0 0.0
        %832 = vmatprep.subr.mxu0 0.0
        %833 = vmatpush2.msra.mxu0 0.0
        %834 = vmatprep.subr.mxu0 0.0
        %835 = vmatpush2.msra.mxu0 0.0
        %836 = vmatprep.subr.mxu0 0.0
        %837 = vmatpush2.msra.mxu0 0.0
        %838 = vmatprep.subr.mxu0 0.0
        %839 = vmatpush2.msra.mxu0 0.0
        %840 = vmatprep.subr.mxu0 0.0
        %841 = vmatpush2.msra.mxu0 0.0
        %842 = vmatprep.subr.mxu0 0.0
        %843 = vmatpush2.msra.mxu0 0.0
        %844 = vmatprep.subr.mxu0 0.0
        %845 = vmatpush2.msra.mxu0 0.0
        %846 = vmatprep.subr.mxu0 0.0
        %847 = vmatpush2.msra.mxu0 0.0
        %848 = vmatprep.subr.mxu0 0.0
        %849 = vmatpush2.msra.mxu0 0.0
        %850 = vmatprep.subr.mxu0 0.0
        %851 = vmatpush2.msra.mxu0 0.0
        %852 = vmatprep.mubr.f32.mxu0 0.0
        %853 = vmatmul.mubr.f32.gmra.mxu0 %v786
        %v854 = vpop.f32.mrf.mxu0
        %v855 = vadd.f32 0.0, %v854
        %v856 = vpop.f32.mrf.mxu0
        %857 = vdwg.mxu0
        %v858 = vrcp.pop %v778
        %v859 = vmul.f32 %v855, %v858
        %v860 = vld [vmem:[#allocation10 + $0x8] sm:$0xff]
        %v862 = vsel %vm516, %v859, 0
        %864 = vmatprep.subr.mxu0 0.0
        %865 = vmatpush1.msra.mxu0 0.0
        %866 = vmatprep.subr.mxu0 0.0
        %867 = vmatpush1.msra.mxu0 0.0
        %868 = vmatprep.subr.mxu0 0.0
        %869 = vmatpush1.msra.mxu0 0.0
        %870 = vmatprep.subr.mxu0 0.0
        %871 = vmatpush1.msra.mxu0 0.0
        %872 = vmatprep.subr.mxu0 0.0
        %873 = vmatpush1.msra.mxu0 0.0
        %874 = vmatprep.subr.mxu0 0.0
        %875 = vmatpush1.msra.mxu0 0.0
        %876 = vmatprep.subr.mxu0 0.0
        %877 = vmatpush1.msra.mxu0 0.0
        %878 = vmatprep.subr.mxu0 0.0
        %879 = vmatpush1.msra.mxu0 0.0
        %880 = vmatprep.subr.mxu0 0.0
        %881 = vmatpush1.msra.mxu0 0.0
        %882 = vmatprep.subr.mxu0 0.0
        %883 = vmatpush1.msra.mxu0 0.0
        %884 = vmatprep.subr.mxu0 0.0
        %885 = vmatpush1.msra.mxu0 0.0
        %886 = vmatprep.subr.mxu0 0.0
        %887 = vmatpush1.msra.mxu0 0.0
        %888 = vmatprep.subr.mxu0 0.0
        %889 = vmatpush1.msra.mxu0 0.0
        %890 = vmatprep.subr.mxu0 0.0
        %891 = vmatpush1.msra.mxu0 0.0
        %892 = vmatprep.subr.mxu0 0.0
        %893 = vmatpush1.msra.mxu0 0.0
        %894 = vmatprep.subr.mxu0 0.0
        %895 = vmatpush1.msra.mxu0 %v860
        %896 = vmatprep.subr.mxu0 0.0
        %897 = vmatpush2.msra.mxu0 0.0
        %898 = vmatprep.subr.mxu0 0.0
        %899 = vmatpush2.msra.mxu0 0.0
        %900 = vmatprep.subr.mxu0 0.0
        %901 = vmatpush2.msra.mxu0 0.0
        %902 = vmatprep.subr.mxu0 0.0
        %903 = vmatpush2.msra.mxu0 0.0
        %904 = vmatprep.subr.mxu0 0.0
        %905 = vmatpush2.msra.mxu0 0.0
        %906 = vmatprep.subr.mxu0 0.0
        %907 = vmatpush2.msra.mxu0 0.0
        %908 = vmatprep.subr.mxu0 0.0
        %909 = vmatpush2.msra.mxu0 0.0
        %910 = vmatprep.subr.mxu0 0.0
        %911 = vmatpush2.msra.mxu0 0.0
        %912 = vmatprep.subr.mxu0 0.0
        %913 = vmatpush2.msra.mxu0 0.0
        %914 = vmatprep.subr.mxu0 0.0
        %915 = vmatpush2.msra.mxu0 0.0
        %916 = vmatprep.subr.mxu0 0.0
        %917 = vmatpush2.msra.mxu0 0.0
        %918 = vmatprep.subr.mxu0 0.0
        %919 = vmatpush2.msra.mxu0 0.0
        %920 = vmatprep.subr.mxu0 0.0
        %921 = vmatpush2.msra.mxu0 0.0
        %922 = vmatprep.subr.mxu0 0.0
        %923 = vmatpush2.msra.mxu0 0.0
        %924 = vmatprep.subr.mxu0 0.0
        %925 = vmatpush2.msra.mxu0 0.0
        %926 = vmatprep.subr.mxu0 0.0
        %927 = vmatpush2.msra.mxu0 0.0
        %928 = vmatprep.mubr.f32.mxu0 0.0
        %929 = vmatmul.mubr.f32.gmra.mxu0 %v862
        %v930 = vpop.f32.mrf.mxu0
        %v931 = vadd.f32 0.0, %v930
        %v932 = vpop.f32.mrf.mxu0
        %933 = vdwg.mxu0
        %v935 = vsel %vm516, %v686, 0
        %937 = vmatprep.subr.mxu0 0.0
        %938 = vmatpush1.msra.mxu0 0.0
        %939 = vmatprep.subr.mxu0 0.0
        %940 = vmatpush1.msra.mxu0 0.0
        %941 = vmatprep.subr.mxu0 0.0
        %942 = vmatpush1.msra.mxu0 0.0
        %943 = vmatprep.subr.mxu0 0.0
        %944 = vmatpush1.msra.mxu0 0.0
        %945 = vmatprep.subr.mxu0 0.0
        %946 = vmatpush1.msra.mxu0 0.0
        %947 = vmatprep.subr.mxu0 0.0
        %948 = vmatpush1.msra.mxu0 0.0
        %949 = vmatprep.subr.mxu0 0.0
        %950 = vmatpush1.msra.mxu0 0.0
        %951 = vmatprep.subr.mxu0 0.0
        %952 = vmatpush1.msra.mxu0 0.0
        %953 = vmatprep.subr.mxu0 0.0
        %954 = vmatpush1.msra.mxu0 0.0
        %955 = vmatprep.subr.mxu0 0.0
        %956 = vmatpush1.msra.mxu0 0.0
        %957 = vmatprep.subr.mxu0 0.0
        %958 = vmatpush1.msra.mxu0 0.0
        %959 = vmatprep.subr.mxu0 0.0
        %960 = vmatpush1.msra.mxu0 0.0
        %961 = vmatprep.subr.mxu0 0.0
        %962 = vmatpush1.msra.mxu0 0.0
        %963 = vmatprep.subr.mxu0 0.0
        %964 = vmatpush1.msra.mxu0 0.0
        %965 = vmatprep.subr.mxu0 0.0
        %966 = vmatpush1.msra.mxu0 0.0
        %967 = vmatprep.subr.mxu0 0.0
        %968 = vmatpush1.msra.mxu0 %v687
        %969 = vmatprep.subr.mxu0 0.0
        %970 = vmatpush2.msra.mxu0 0.0
        %971 = vmatprep.subr.mxu0 0.0
        %972 = vmatpush2.msra.mxu0 0.0
        %973 = vmatprep.subr.mxu0 0.0
        %974 = vmatpush2.msra.mxu0 0.0
        %975 = vmatprep.subr.mxu0 0.0
        %976 = vmatpush2.msra.mxu0 0.0
        %977 = vmatprep.subr.mxu0 0.0
        %978 = vmatpush2.msra.mxu0 0.0
        %979 = vmatprep.subr.mxu0 0.0
        %980 = vmatpush2.msra.mxu0 0.0
        %981 = vmatprep.subr.mxu0 0.0
        %982 = vmatpush2.msra.mxu0 0.0
        %983 = vmatprep.subr.mxu0 0.0
        %984 = vmatpush2.msra.mxu0 0.0
        %985 = vmatprep.subr.mxu0 0.0
        %986 = vmatpush2.msra.mxu0 0.0
        %987 = vmatprep.subr.mxu0 0.0
        %988 = vmatpush2.msra.mxu0 0.0
        %989 = vmatprep.subr.mxu0 0.0
        %990 = vmatpush2.msra.mxu0 0.0
        %991 = vmatprep.subr.mxu0 0.0
        %992 = vmatpush2.msra.mxu0 0.0
        %993 = vmatprep.subr.mxu0 0.0
        %994 = vmatpush2.msra.mxu0 0.0
        %995 = vmatprep.subr.mxu0 0.0
        %996 = vmatpush2.msra.mxu0 0.0
        %997 = vmatprep.subr.mxu0 0.0
        %998 = vmatpush2.msra.mxu0 0.0
        %999 = vmatprep.subr.mxu0 0.0
        %1000 = vmatpush2.msra.mxu0 0.0
        %1001 = vmatprep.mubr.f32.mxu0 0.0
        %1002 = vmatmul.mubr.f32.gmra.mxu0 %v935
        %v1003 = vpop.f32.mrf.mxu0
        %v1004 = vadd.f32 %v931, %v1003
        %v1005 = vpop.f32.mrf.mxu0
        %1006 = vdwg.mxu0
        %1007 = vrot.lane.b32.xlu0 %v428, 112
        %v1008 = vpop.permute.xlu0 %1007
        %1009 = vrot.lane.b32.xlu0 %v508, 112
        %v1010 = vpop.permute.xlu0 %1009
        %1011 = vrot.lane.b32.xlu0 %v513, 112
        %v1012 = vpop.permute.xlu0 %1011
        %v1013 = vsel %vm516, %v1008, 0
        %v1015 = vsel %vm516, %v1010, 0
        %v1017 = vsel %vm516, %v1012, 0
        %1019 = vmatprep.subr.mxu0 0.0
        %1020 = vmatpush1.xpose.msra.mxu0 0.0
        %1021 = vmatprep.subr.mxu0 0.0
        %1022 = vmatpush1.xpose.msra.mxu0 0.0
        %1023 = vmatprep.subr.mxu0 0.0
        %1024 = vmatpush1.xpose.msra.mxu0 0.0
        %1025 = vmatprep.subr.mxu0 0.0
        %1026 = vmatpush1.xpose.msra.mxu0 0.0
        %1027 = vmatprep.subr.mxu0 0.0
        %1028 = vmatpush1.xpose.msra.mxu0 0.0
        %1029 = vmatprep.subr.mxu0 0.0
        %1030 = vmatpush1.xpose.msra.mxu0 0.0
        %1031 = vmatprep.subr.mxu0 0.0
        %1032 = vmatpush1.xpose.msra.mxu0 0.0
        %1033 = vmatprep.subr.mxu0 0.0
        %1034 = vmatpush1.xpose.msra.mxu0 0.0
        %1035 = vmatprep.subr.mxu0 0.0
        %1036 = vmatpush1.xpose.msra.mxu0 0.0
        %1037 = vmatprep.subr.mxu0 0.0
        %1038 = vmatpush1.xpose.msra.mxu0 0.0
        %1039 = vmatprep.subr.mxu0 0.0
        %1040 = vmatpush1.xpose.msra.mxu0 0.0
        %1041 = vmatprep.subr.mxu0 0.0
        %1042 = vmatpush1.xpose.msra.mxu0 0.0
        %1043 = vmatprep.subr.mxu0 0.0
        %1044 = vmatpush1.xpose.msra.mxu0 0.0
        %1045 = vmatprep.subr.mxu0 0.0
        %1046 = vmatpush1.xpose.msra.mxu0 0.0
        %1047 = vmatprep.subr.mxu0 0.0
        %1048 = vmatpush1.xpose.msra.mxu0 %v1017
        %1049 = vmatprep.subr.mxu0 0.0
        %1050 = vmatpush1.xpose.msra.mxu0 %v1015
        %1051 = vmatprep.subr.mxu0 0.0
        %1052 = vmatpush2.xpose.msra.mxu0 0.0
        %1053 = vmatprep.subr.mxu0 0.0
        %1054 = vmatpush2.xpose.msra.mxu0 0.0
        %1055 = vmatprep.subr.mxu0 0.0
        %1056 = vmatpush2.xpose.msra.mxu0 0.0
        %1057 = vmatprep.subr.mxu0 0.0
        %1058 = vmatpush2.xpose.msra.mxu0 0.0
        %1059 = vmatprep.subr.mxu0 0.0
        %1060 = vmatpush2.xpose.msra.mxu0 0.0
        %1061 = vmatprep.subr.mxu0 0.0
        %1062 = vmatpush2.xpose.msra.mxu0 0.0
        %1063 = vmatprep.subr.mxu0 0.0
        %1064 = vmatpush2.xpose.msra.mxu0 0.0
        %1065 = vmatprep.subr.mxu0 0.0
        %1066 = vmatpush2.xpose.msra.mxu0 0.0
        %1067 = vmatprep.subr.mxu0 0.0
        %1068 = vmatpush2.xpose.msra.mxu0 0.0
        %1069 = vmatprep.subr.mxu0 0.0
        %1070 = vmatpush2.xpose.msra.mxu0 0.0
        %1071 = vmatprep.subr.mxu0 0.0
        %1072 = vmatpush2.xpose.msra.mxu0 0.0
        %1073 = vmatprep.subr.mxu0 0.0
        %1074 = vmatpush2.xpose.msra.mxu0 0.0
        %1075 = vmatprep.subr.mxu0 0.0
        %1076 = vmatpush2.xpose.msra.mxu0 0.0
        %1077 = vmatprep.subr.mxu0 0.0
        %1078 = vmatpush2.xpose.msra.mxu0 0.0
        %1079 = vmatprep.subr.mxu0 0.0
        %1080 = vmatpush2.xpose.msra.mxu0 0.0
        %1081 = vmatprep.subr.mxu0 0.0
        %1082 = vmatpush2.xpose.msra.mxu0 0.0
        %1083 = vmatprep.mubr.f32.mxu0 0.0
        %1084 = vmatmul.mubr.f32.gmra.mxu0 %v1013
        %v1085 = vpop.f32.mrf.mxu0
        %v1086 = vadd.f32 0.0, %v1085
        %v1087 = vpop.f32.mrf.mxu0
        %1088 = vdwg.mxu0
        %v1089 = vsel %vm596, %v1086, -inf
        %1090 = vmax.xlane.f32.xlu0 %v1089
        %v1091 = vpop.xlane.xlu0 %1090
        %v1092 = vsub.f32 %v1086, %v1091
        %v1093 = vmul.f32 %v1092, 1.442695
        %v1094 = vpow.pop %v1093
        %v1095 = vsel %vm596, %v1094, 0.0
        %1096 = vadd.xlane.f32.xlu0 %v1095
        %v1097 = vpop.xlane.xlu0 %1096
        %1098 = vrot.lane.b32.xlu0 %v508, 80
        %v1099 = vpop.permute.xlu0 %1098
        %1100 = vrot.lane.b32.xlu0 %v513, 80
        %v1101 = vpop.permute.xlu0 %1100
        %v1105 = vsel %vm596, %v1094, 0
        %1107 = vmatprep.subr.mxu0 0.0
        %1108 = vmatpush1.msra.mxu0 0.0
        %1109 = vmatprep.subr.mxu0 0.0
        %1110 = vmatpush1.msra.mxu0 0.0
        %1111 = vmatprep.subr.mxu0 0.0
        %1112 = vmatpush1.msra.mxu0 0.0
        %1113 = vmatprep.subr.mxu0 0.0
        %1114 = vmatpush1.msra.mxu0 0.0
        %1115 = vmatprep.subr.mxu0 0.0
        %1116 = vmatpush1.msra.mxu0 0.0
        %1117 = vmatprep.subr.mxu0 0.0
        %1118 = vmatpush1.msra.mxu0 0.0
        %1119 = vmatprep.subr.mxu0 0.0
        %1120 = vmatpush1.msra.mxu0 0.0
        %1121 = vmatprep.subr.mxu0 0.0
        %1122 = vmatpush1.msra.mxu0 0.0
        %1123 = vmatprep.subr.mxu0 0.0
        %1124 = vmatpush1.msra.mxu0 0.0
        %1125 = vmatprep.subr.mxu0 0.0
        %1126 = vmatpush1.msra.mxu0 0.0
        %1127 = vmatprep.subr.mxu0 0.0
        %1128 = vmatpush1.msra.mxu0 0.0
        %1129 = vmatprep.subr.mxu0 0.0
        %1130 = vmatpush1.msra.mxu0 0.0
        %1131 = vmatprep.subr.mxu0 0.0
        %1132 = vmatpush1.msra.mxu0 0.0
        %1133 = vmatprep.subr.mxu0 0.0
        %1134 = vmatpush1.msra.mxu0 0.0
        %1135 = vmatprep.subr.mxu0 0.0
        %1136 = vmatpush1.msra.mxu0 %v1101
        %1137 = vmatprep.subr.mxu0 0.0
        %1138 = vmatpush1.msra.mxu0 %v1099
        %1139 = vmatprep.subr.mxu0 0.0
        %1140 = vmatpush2.msra.mxu0 0.0
        %1141 = vmatprep.subr.mxu0 0.0
        %1142 = vmatpush2.msra.mxu0 0.0
        %1143 = vmatprep.subr.mxu0 0.0
        %1144 = vmatpush2.msra.mxu0 0.0
        %1145 = vmatprep.subr.mxu0 0.0
        %1146 = vmatpush2.msra.mxu0 0.0
        %1147 = vmatprep.subr.mxu0 0.0
        %1148 = vmatpush2.msra.mxu0 0.0
        %1149 = vmatprep.subr.mxu0 0.0
        %1150 = vmatpush2.msra.mxu0 0.0
        %1151 = vmatprep.subr.mxu0 0.0
        %1152 = vmatpush2.msra.mxu0 0.0
        %1153 = vmatprep.subr.mxu0 0.0
        %1154 = vmatpush2.msra.mxu0 0.0
        %1155 = vmatprep.subr.mxu0 0.0
        %1156 = vmatpush2.msra.mxu0 0.0
        %1157 = vmatprep.subr.mxu0 0.0
        %1158 = vmatpush2.msra.mxu0 0.0
        %1159 = vmatprep.subr.mxu0 0.0
        %1160 = vmatpush2.msra.mxu0 0.0
        %1161 = vmatprep.subr.mxu0 0.0
        %1162 = vmatpush2.msra.mxu0 0.0
        %1163 = vmatprep.subr.mxu0 0.0
        %1164 = vmatpush2.msra.mxu0 0.0
        %1165 = vmatprep.subr.mxu0 0.0
        %1166 = vmatpush2.msra.mxu0 0.0
        %1167 = vmatprep.subr.mxu0 0.0
        %1168 = vmatpush2.msra.mxu0 0.0
        %1169 = vmatprep.subr.mxu0 0.0
        %1170 = vmatpush2.msra.mxu0 0.0
        %1171 = vmatprep.mubr.f32.mxu0 0.0
        %1172 = vmatmul.mubr.f32.gmra.mxu0 %v1105
        %v1173 = vpop.f32.mrf.mxu0
        %v1174 = vadd.f32 0.0, %v1173
        %v1175 = vpop.f32.mrf.mxu0
        %1176 = vdwg.mxu0
        %v1177 = vrcp.pop %v1097
        %v1178 = vmul.f32 %v1174, %v1177
        %v1179 = vld [vmem:[#allocation10 + $0x10] sm:$0xff]
        %v1181 = vsel %vm516, %v1178, 0
        %1183 = vmatprep.subr.mxu0 0.0
        %1184 = vmatpush1.msra.mxu0 0.0
        %1185 = vmatprep.subr.mxu0 0.0
        %1186 = vmatpush1.msra.mxu0 0.0
        %1187 = vmatprep.subr.mxu0 0.0
        %1188 = vmatpush1.msra.mxu0 0.0
        %1189 = vmatprep.subr.mxu0 0.0
        %1190 = vmatpush1.msra.mxu0 0.0
        %1191 = vmatprep.subr.mxu0 0.0
        %1192 = vmatpush1.msra.mxu0 0.0
        %1193 = vmatprep.subr.mxu0 0.0
        %1194 = vmatpush1.msra.mxu0 0.0
        %1195 = vmatprep.subr.mxu0 0.0
        %1196 = vmatpush1.msra.mxu0 0.0
        %1197 = vmatprep.subr.mxu0 0.0
        %1198 = vmatpush1.msra.mxu0 0.0
        %1199 = vmatprep.subr.mxu0 0.0
        %1200 = vmatpush1.msra.mxu0 0.0
        %1201 = vmatprep.subr.mxu0 0.0
        %1202 = vmatpush1.msra.mxu0 0.0
        %1203 = vmatprep.subr.mxu0 0.0
        %1204 = vmatpush1.msra.mxu0 0.0
        %1205 = vmatprep.subr.mxu0 0.0
        %1206 = vmatpush1.msra.mxu0 0.0
        %1207 = vmatprep.subr.mxu0 0.0
        %1208 = vmatpush1.msra.mxu0 0.0
        %1209 = vmatprep.subr.mxu0 0.0
        %1210 = vmatpush1.msra.mxu0 0.0
        %1211 = vmatprep.subr.mxu0 0.0
        %1212 = vmatpush1.msra.mxu0 0.0
        %1213 = vmatprep.subr.mxu0 0.0
        %1214 = vmatpush1.msra.mxu0 %v1179
        %1215 = vmatprep.subr.mxu0 0.0
        %1216 = vmatpush2.msra.mxu0 0.0
        %1217 = vmatprep.subr.mxu0 0.0
        %1218 = vmatpush2.msra.mxu0 0.0
        %1219 = vmatprep.subr.mxu0 0.0
        %1220 = vmatpush2.msra.mxu0 0.0
        %1221 = vmatprep.subr.mxu0 0.0
        %1222 = vmatpush2.msra.mxu0 0.0
        %1223 = vmatprep.subr.mxu0 0.0
        %1224 = vmatpush2.msra.mxu0 0.0
        %1225 = vmatprep.subr.mxu0 0.0
        %1226 = vmatpush2.msra.mxu0 0.0
        %1227 = vmatprep.subr.mxu0 0.0
        %1228 = vmatpush2.msra.mxu0 0.0
        %1229 = vmatprep.subr.mxu0 0.0
        %1230 = vmatpush2.msra.mxu0 0.0
        %1231 = vmatprep.subr.mxu0 0.0
        %1232 = vmatpush2.msra.mxu0 0.0
        %1233 = vmatprep.subr.mxu0 0.0
        %1234 = vmatpush2.msra.mxu0 0.0
        %1235 = vmatprep.subr.mxu0 0.0
        %1236 = vmatpush2.msra.mxu0 0.0
        %1237 = vmatprep.subr.mxu0 0.0
        %1238 = vmatpush2.msra.mxu0 0.0
        %1239 = vmatprep.subr.mxu0 0.0
        %1240 = vmatpush2.msra.mxu0 0.0
        %1241 = vmatprep.subr.mxu0 0.0
        %1242 = vmatpush2.msra.mxu0 0.0
        %1243 = vmatprep.subr.mxu0 0.0
        %1244 = vmatpush2.msra.mxu0 0.0
        %1245 = vmatprep.subr.mxu0 0.0
        %1246 = vmatpush2.msra.mxu0 0.0
        %1247 = vmatprep.mubr.f32.mxu0 0.0
        %1248 = vmatmul.mubr.f32.gmra.mxu0 %v1181
        %v1249 = vpop.f32.mrf.mxu0
        %v1250 = vadd.f32 0.0, %v1249
        %v1251 = vpop.f32.mrf.mxu0
        %1252 = vdwg.mxu0
        %v1253 = vadd.f32 %v1004, %v1250
        %1254 = vrot.lane.b32.xlu0 %v428, 104
        %v1255 = vpop.permute.xlu0 %1254
        %1256 = vrot.lane.b32.xlu0 %v508, 104
        %v1257 = vpop.permute.xlu0 %1256
        %1258 = vrot.lane.b32.xlu0 %v513, 104
        %v1259 = vpop.permute.xlu0 %1258
        %v1260 = vsel %vm516, %v1255, 0
        %v1262 = vsel %vm516, %v1257, 0
        %v1264 = vsel %vm516, %v1259, 0
        %1266 = vmatprep.subr.mxu0 0.0
        %1267 = vmatpush1.xpose.msra.mxu0 0.0
        %1268 = vmatprep.subr.mxu0 0.0
        %1269 = vmatpush1.xpose.msra.mxu0 0.0
        %1270 = vmatprep.subr.mxu0 0.0
        %1271 = vmatpush1.xpose.msra.mxu0 0.0
        %1272 = vmatprep.subr.mxu0 0.0
        %1273 = vmatpush1.xpose.msra.mxu0 0.0
        %1274 = vmatprep.subr.mxu0 0.0
        %1275 = vmatpush1.xpose.msra.mxu0 0.0
        %1276 = vmatprep.subr.mxu0 0.0
        %1277 = vmatpush1.xpose.msra.mxu0 0.0
        %1278 = vmatprep.subr.mxu0 0.0
        %1279 = vmatpush1.xpose.msra.mxu0 0.0
        %1280 = vmatprep.subr.mxu0 0.0
        %1281 = vmatpush1.xpose.msra.mxu0 0.0
        %1282 = vmatprep.subr.mxu0 0.0
        %1283 = vmatpush1.xpose.msra.mxu0 0.0
        %1284 = vmatprep.subr.mxu0 0.0
        %1285 = vmatpush1.xpose.msra.mxu0 0.0
        %1286 = vmatprep.subr.mxu0 0.0
        %1287 = vmatpush1.xpose.msra.mxu0 0.0
        %1288 = vmatprep.subr.mxu0 0.0
        %1289 = vmatpush1.xpose.msra.mxu0 0.0
        %1290 = vmatprep.subr.mxu0 0.0
        %1291 = vmatpush1.xpose.msra.mxu0 0.0
        %1292 = vmatprep.subr.mxu0 0.0
        %1293 = vmatpush1.xpose.msra.mxu0 0.0
        %1294 = vmatprep.subr.mxu0 0.0
        %1295 = vmatpush1.xpose.msra.mxu0 %v1264
        %1296 = vmatprep.subr.mxu0 0.0
        %1297 = vmatpush1.xpose.msra.mxu0 %v1262
        %1298 = vmatprep.subr.mxu0 0.0
        %1299 = vmatpush2.xpose.msra.mxu0 0.0
        %1300 = vmatprep.subr.mxu0 0.0
        %1301 = vmatpush2.xpose.msra.mxu0 0.0
        %1302 = vmatprep.subr.mxu0 0.0
        %1303 = vmatpush2.xpose.msra.mxu0 0.0
        %1304 = vmatprep.subr.mxu0 0.0
        %1305 = vmatpush2.xpose.msra.mxu0 0.0
        %1306 = vmatprep.subr.mxu0 0.0
        %1307 = vmatpush2.xpose.msra.mxu0 0.0
        %1308 = vmatprep.subr.mxu0 0.0
        %1309 = vmatpush2.xpose.msra.mxu0 0.0
        %1310 = vmatprep.subr.mxu0 0.0
        %1311 = vmatpush2.xpose.msra.mxu0 0.0
        %1312 = vmatprep.subr.mxu0 0.0
        %1313 = vmatpush2.xpose.msra.mxu0 0.0
        %1314 = vmatprep.subr.mxu0 0.0
        %1315 = vmatpush2.xpose.msra.mxu0 0.0
        %1316 = vmatprep.subr.mxu0 0.0
        %1317 = vmatpush2.xpose.msra.mxu0 0.0
        %1318 = vmatprep.subr.mxu0 0.0
        %1319 = vmatpush2.xpose.msra.mxu0 0.0
        %1320 = vmatprep.subr.mxu0 0.0
        %1321 = vmatpush2.xpose.msra.mxu0 0.0
        %1322 = vmatprep.subr.mxu0 0.0
        %1323 = vmatpush2.xpose.msra.mxu0 0.0
        %1324 = vmatprep.subr.mxu0 0.0
        %1325 = vmatpush2.xpose.msra.mxu0 0.0
        %1326 = vmatprep.subr.mxu0 0.0
        %1327 = vmatpush2.xpose.msra.mxu0 0.0
        %1328 = vmatprep.subr.mxu0 0.0
        %1329 = vmatpush2.xpose.msra.mxu0 0.0
        %1330 = vmatprep.mubr.f32.mxu0 0.0
        %1331 = vmatmul.mubr.f32.gmra.mxu0 %v1260
        %v1332 = vpop.f32.mrf.mxu0
        %v1333 = vadd.f32 0.0, %v1332
        %v1334 = vpop.f32.mrf.mxu0
        %1335 = vdwg.mxu0
        %v1336 = vsel %vm596, %v1333, -inf
        %1337 = vmax.xlane.f32.xlu0 %v1336
        %v1338 = vpop.xlane.xlu0 %1337
        %v1339 = vsub.f32 %v1333, %v1338
        %v1340 = vmul.f32 %v1339, 1.442695
        %v1341 = vpow.pop %v1340
        %v1342 = vsel %vm596, %v1341, 0.0
        %1343 = vadd.xlane.f32.xlu0 %v1342
        %v1344 = vpop.xlane.xlu0 %1343
        %1345 = vrot.lane.b32.xlu0 %v508, 72
        %v1346 = vpop.permute.xlu0 %1345
        %1347 = vrot.lane.b32.xlu0 %v513, 72
        %v1348 = vpop.permute.xlu0 %1347
        %v1352 = vsel %vm596, %v1341, 0
        %1354 = vmatprep.subr.mxu0 0.0
        %1355 = vmatpush1.msra.mxu0 0.0
        %1356 = vmatprep.subr.mxu0 0.0
        %1357 = vmatpush1.msra.mxu0 0.0
        %1358 = vmatprep.subr.mxu0 0.0
        %1359 = vmatpush1.msra.mxu0 0.0
        %1360 = vmatprep.subr.mxu0 0.0
        %1361 = vmatpush1.msra.mxu0 0.0
        %1362 = vmatprep.subr.mxu0 0.0
        %1363 = vmatpush1.msra.mxu0 0.0
        %1364 = vmatprep.subr.mxu0 0.0
        %1365 = vmatpush1.msra.mxu0 0.0
        %1366 = vmatprep.subr.mxu0 0.0
        %1367 = vmatpush1.msra.mxu0 0.0
        %1368 = vmatprep.subr.mxu0 0.0
        %1369 = vmatpush1.msra.mxu0 0.0
        %1370 = vmatprep.subr.mxu0 0.0
        %1371 = vmatpush1.msra.mxu0 0.0
        %1372 = vmatprep.subr.mxu0 0.0
        %1373 = vmatpush1.msra.mxu0 0.0
        %1374 = vmatprep.subr.mxu0 0.0
        %1375 = vmatpush1.msra.mxu0 0.0
        %1376 = vmatprep.subr.mxu0 0.0
        %1377 = vmatpush1.msra.mxu0 0.0
        %1378 = vmatprep.subr.mxu0 0.0
        %1379 = vmatpush1.msra.mxu0 0.0
        %1380 = vmatprep.subr.mxu0 0.0
        %1381 = vmatpush1.msra.mxu0 0.0
        %1382 = vmatprep.subr.mxu0 0.0
        %1383 = vmatpush1.msra.mxu0 %v1348
        %1384 = vmatprep.subr.mxu0 0.0
        %1385 = vmatpush1.msra.mxu0 %v1346
        %1386 = vmatprep.subr.mxu0 0.0
        %1387 = vmatpush2.msra.mxu0 0.0
        %1388 = vmatprep.subr.mxu0 0.0
        %1389 = vmatpush2.msra.mxu0 0.0
        %1390 = vmatprep.subr.mxu0 0.0
        %1391 = vmatpush2.msra.mxu0 0.0
        %1392 = vmatprep.subr.mxu0 0.0
        %1393 = vmatpush2.msra.mxu0 0.0
        %1394 = vmatprep.subr.mxu0 0.0
        %1395 = vmatpush2.msra.mxu0 0.0
        %1396 = vmatprep.subr.mxu0 0.0
        %1397 = vmatpush2.msra.mxu0 0.0
        %1398 = vmatprep.subr.mxu0 0.0
        %1399 = vmatpush2.msra.mxu0 0.0
        %1400 = vmatprep.subr.mxu0 0.0
        %1401 = vmatpush2.msra.mxu0 0.0
        %1402 = vmatprep.subr.mxu0 0.0
        %1403 = vmatpush2.msra.mxu0 0.0
        %1404 = vmatprep.subr.mxu0 0.0
        %1405 = vmatpush2.msra.mxu0 0.0
        %1406 = vmatprep.subr.mxu0 0.0
        %1407 = vmatpush2.msra.mxu0 0.0
        %1408 = vmatprep.subr.mxu0 0.0
        %1409 = vmatpush2.msra.mxu0 0.0
        %1410 = vmatprep.subr.mxu0 0.0
        %1411 = vmatpush2.msra.mxu0 0.0
        %1412 = vmatprep.subr.mxu0 0.0
        %1413 = vmatpush2.msra.mxu0 0.0
        %1414 = vmatprep.subr.mxu0 0.0
        %1415 = vmatpush2.msra.mxu0 0.0
        %1416 = vmatprep.subr.mxu0 0.0
        %1417 = vmatpush2.msra.mxu0 0.0
        %1418 = vmatprep.mubr.f32.mxu0 0.0
        %1419 = vmatmul.mubr.f32.gmra.mxu0 %v1352
        %v1420 = vpop.f32.mrf.mxu0
        %v1421 = vadd.f32 0.0, %v1420
        %v1422 = vpop.f32.mrf.mxu0
        %1423 = vdwg.mxu0
        %v1424 = vrcp.pop %v1344
        %v1425 = vmul.f32 %v1421, %v1424
        %v1426 = vld [vmem:[#allocation10 + $0x18] sm:$0xff]
        %v1428 = vsel %vm516, %v1425, 0
        %1430 = vmatprep.subr.mxu0 0.0
        %1431 = vmatpush1.msra.mxu0 0.0
        %1432 = vmatprep.subr.mxu0 0.0
        %1433 = vmatpush1.msra.mxu0 0.0
        %1434 = vmatprep.subr.mxu0 0.0
        %1435 = vmatpush1.msra.mxu0 0.0
        %1436 = vmatprep.subr.mxu0 0.0
        %1437 = vmatpush1.msra.mxu0 0.0
        %1438 = vmatprep.subr.mxu0 0.0
        %1439 = vmatpush1.msra.mxu0 0.0
        %1440 = vmatprep.subr.mxu0 0.0
        %1441 = vmatpush1.msra.mxu0 0.0
        %1442 = vmatprep.subr.mxu0 0.0
        %1443 = vmatpush1.msra.mxu0 0.0
        %1444 = vmatprep.subr.mxu0 0.0
        %1445 = vmatpush1.msra.mxu0 0.0
        %1446 = vmatprep.subr.mxu0 0.0
        %1447 = vmatpush1.msra.mxu0 0.0
        %1448 = vmatprep.subr.mxu0 0.0
        %1449 = vmatpush1.msra.mxu0 0.0
        %1450 = vmatprep.subr.mxu0 0.0
        %1451 = vmatpush1.msra.mxu0 0.0
        %1452 = vmatprep.subr.mxu0 0.0
        %1453 = vmatpush1.msra.mxu0 0.0
        %1454 = vmatprep.subr.mxu0 0.0
        %1455 = vmatpush1.msra.mxu0 0.0
        %1456 = vmatprep.subr.mxu0 0.0
        %1457 = vmatpush1.msra.mxu0 0.0
        %1458 = vmatprep.subr.mxu0 0.0
        %1459 = vmatpush1.msra.mxu0 0.0
        %1460 = vmatprep.subr.mxu0 0.0
        %1461 = vmatpush1.msra.mxu0 %v1426
        %1462 = vmatprep.subr.mxu0 0.0
        %1463 = vmatpush2.msra.mxu0 0.0
        %1464 = vmatprep.subr.mxu0 0.0
        %1465 = vmatpush2.msra.mxu0 0.0
        %1466 = vmatprep.subr.mxu0 0.0
        %1467 = vmatpush2.msra.mxu0 0.0
        %1468 = vmatprep.subr.mxu0 0.0
        %1469 = vmatpush2.msra.mxu0 0.0
        %1470 = vmatprep.subr.mxu0 0.0
        %1471 = vmatpush2.msra.mxu0 0.0
        %1472 = vmatprep.subr.mxu0 0.0
        %1473 = vmatpush2.msra.mxu0 0.0
        %1474 = vmatprep.subr.mxu0 0.0
        %1475 = vmatpush2.msra.mxu0 0.0
        %1476 = vmatprep.subr.mxu0 0.0
        %1477 = vmatpush2.msra.mxu0 0.0
        %1478 = vmatprep.subr.mxu0 0.0
        %1479 = vmatpush2.msra.mxu0 0.0
        %1480 = vmatprep.subr.mxu0 0.0
        %1481 = vmatpush2.msra.mxu0 0.0
        %1482 = vmatprep.subr.mxu0 0.0
        %1483 = vmatpush2.msra.mxu0 0.0
        %1484 = vmatprep.subr.mxu0 0.0
        %1485 = vmatpush2.msra.mxu0 0.0
        %1486 = vmatprep.subr.mxu0 0.0
        %1487 = vmatpush2.msra.mxu0 0.0
        %1488 = vmatprep.subr.mxu0 0.0
        %1489 = vmatpush2.msra.mxu0 0.0
        %1490 = vmatprep.subr.mxu0 0.0
        %1491 = vmatpush2.msra.mxu0 0.0
        %1492 = vmatprep.subr.mxu0 0.0
        %1493 = vmatpush2.msra.mxu0 0.0
        %1494 = vmatprep.mubr.f32.mxu0 0.0
        %1495 = vmatmul.mubr.f32.gmra.mxu0 %v1428
        %v1496 = vpop.f32.mrf.mxu0
        %v1497 = vadd.f32 0.0, %v1496
        %v1498 = vpop.f32.mrf.mxu0
        %1499 = vdwg.mxu0
        %v1500 = vadd.f32 %v1253, %v1497
        %v1501 = vld [vmem:[%s5] sm:$0x1]
        %v1503 = vlaneseq
        %v1504 = vshrl.u32 %v1503, 7
        %v1505 = vsub.s32 0, %v1504
        %v1506 = vrot.slane %v1501, %v1505
        %v1508 = vadd.f32 %v1500, %v1506
        %1509 = vst.msk [vmem:[%s349] sm:$0xff] %vm357, %v1508
        %s1510 = sand.u32 %s171, 1
        %s1511 = scalar_lea.sflag [#allocation4], %s1510
        %s1512 = sand.u32 %s171, 1
        %s1513 = smul.addr %s1512, 8
        %s1514 = scalar_lea.vmem [#allocation11], %s1513
        // Predicated region
        $region65: #{tpu_custom_call.1} parent=43 // pred_check
          %p1515 = pneg %p181
        $region66: #{tpu_custom_call.1} parent=43 // pred_check_branch
          %1517 = sbr.rel (%p1515) target = $region68
        $region67: #{tpu_custom_call.1} parent=43 // pred_region
          %s1519 = ssub.s32 128, 128
          %1520 = vsyncadd %s1511, %s1519
          %s1521 = smul.addr %s27, 128
          %s1522 = scalar_lea.hbm %s6, %s1521
          %s1524 = sshll.u32 %s1514, 4
          %s1525 = int_to_ptr.vmem [resolvable:$true] %s1524
          %1527 = dma.vmem_to_hbm [thread:$0]  %s1525, 128, %s1522, %s1511
        $region68: #{tpu_custom_call.1} parent=43 // pred_fallthru
          _
      $region44: #{tpu_custom_call.1} parent=5 // pred_fallthru
        _
      %p1528 = scmp.le.s32.totalorder 2, %s22
      // Predicated region
      $region69: #{tpu_custom_call.1} parent=5 // pred_check
        %p1529 = pneg %p1528
      $region70: #{tpu_custom_call.1} parent=5 // pred_check_branch
        %1531 = sbr.rel (%p1529) target = $region72
      $region71: #{tpu_custom_call.1} parent=5 // pred_region
        %s1532 = ssub.s32 %s22, 2
        // Predicated region
        $region73: #{tpu_custom_call.1} parent=71 // pred_check
          %p1533 = pneg %p187
        $region74: #{tpu_custom_call.1} parent=71 // pred_check_branch
          %1535 = sbr.rel (%p1533) target = $region76
        $region75: #{tpu_custom_call.1} parent=71 // pred_region
          %s1536 = sand.u32 %s172, 1
          %s1537 = scalar_lea.sflag [#allocation4], %s1536
          %s1538 = sand.u32 %s172, 1
          %s1539 = smul.addr %s1538, 8
          %s1540 = scalar_lea.vmem [#allocation11], %s1539
          %1541 = dma.done %s1537, 128
        $region76: #{tpu_custom_call.1} parent=71 // pred_fallthru
          _
      $region72: #{tpu_custom_call.1} parent=5 // pred_fallthru
        _
    $region6: #{tpu_custom_call.1} parent=1 // loop_footer
      %s26 = sadd.s32 1, %s22
    $region7: #{tpu_custom_call.1} parent=1 // loop_footer_branch
      %21 = sbr.rel target = $region3
    $region8: #{tpu_custom_call.1} parent=1 // loop_exit
      _
    %1542 = vsyncpa [#allocation3], 1
    %s1543 = scalar_lea.sflag [#allocation3], 1
    %1544 = vsyncpa %s1543, 1
    %1545 = vsyncpa [#allocation6], 1
    %s1546 = scalar_lea.sflag [#allocation6], 1
    %1547 = vsyncpa %s1546, 1
    %1548 = vsyncpa [#allocation9], 1
    %1549 = vsyncpa [#allocation4], 1
    %s1550 = scalar_lea.sflag [#allocation4], 1
    %1551 = vsyncpa %s1550, 1

</llo_original>
